<compile_context>
chip_gen: v7x
topology: tpu7x:2x2x1
jax: 0.10.0
libtpu: 0.0.40
codegen_flags: <defaults>
</compile_context>

<pallas_src>
import functools

import jax
import jax.numpy as jnp
from jax.experimental import pallas as pl
from jax.experimental.pallas import tpu as pltpu


# ----------------------------- helpers ------------------------------------ #

def get_hidden_layer_sizes(in_size, out_size, n_hidden):
    # TODO(synk): the original get_hidden_layer_sizes helper is not in the
    # spec; this deterministic linear-interpolation re-implementation matches
    # the layer-count structure the module relies on (n_hidden sizes).
    if n_hidden <= 0:
        return []
    return [int(round(in_size + (out_size - in_size) * i / (n_hidden + 1)))
            for i in range(1, n_hidden + 1)]


def _sigmoid(z):
    return 1.0 / (1.0 + jnp.exp(-z))


# ----------------------- Pallas kernel: tiled linear ----------------------- #
# y = x @ w + b, tiled over rows (M). Used for the per-layer input->gate
# projection over all timesteps and for the final output Linear.

def _linear_kernel(x_ref, w_ref, b_ref, o_ref):
    x = x_ref[...].astype(jnp.float32)
    w = w_ref[...].astype(jnp.float32)
    b = b_ref[...].astype(jnp.float32)
    o_ref[...] = (jnp.dot(x, w, preferred_element_type=jnp.float32)
                  + b).astype(o_ref.dtype)


def linear_pallas(x2d, w, b, *, tile_m=512):
    M, K = x2d.shape
    N = w.shape[1]
    tm = min(tile_m, M)          # tile rows; 512 stays well under v7x VMEM
    return pl.pallas_call(
        _linear_kernel,
        out_shape=jax.ShapeDtypeStruct((M, N), jnp.float32),
        grid=(pl.cdiv(M, tm),),
        in_specs=[
            pl.BlockSpec((tm, K), lambda i: (i, 0)),
            pl.BlockSpec((K, N), lambda i: (0, 0)),   # weights resident
            pl.BlockSpec((1, N), lambda i: (0, 0)),   # bias resident
        ],
        out_specs=pl.BlockSpec((tm, N), lambda i: (i, 0)),
        compiler_params=pltpu.CompilerParams(
            dimension_semantics=("parallel",)),       # shards across TCs (v7x)
    )(x2d, w, b)


# ------------------- Pallas kernel: LSTM time recurrence ------------------- #
# grid=(seq_len,) "arbitrary". h/c are carried across grid steps in the
# hn/cn OUTPUT blocks (constant index_map => resident in VMEM, written back
# once at the end). Per step: gates = xg[t] + h_prev @ W_hh, then gating.

def _lstm_recurrence_kernel(xg_ref, whh_ref, h0_ref, c0_ref,
                            y_ref, hn_ref, cn_ref):
    t = pl.program_id(0)
    H = whh_ref.shape[0]

    @pl.when(t == 0)
    def _():
        hn_ref[...] = h0_ref[...].astype(jnp.float32)
        cn_ref[...] = c0_ref[...].astype(jnp.float32)

    h_prev = hn_ref[...]
    c_prev = cn_ref[...]

    gates = xg_ref[0].astype(jnp.float32) + jnp.dot(
        h_prev, whh_ref[...].astype(jnp.float32),
        preferred_element_type=jnp.float32)

    # PyTorch gate order: i, f, g, o
    i_g = _sigmoid(gates[:, 0 * H:1 * H])
    f_g = _sigmoid(gates[:, 1 * H:2 * H])
    g_g = jnp.tanh(gates[:, 2 * H:3 * H])
    o_g = _sigmoid(gates[:, 3 * H:4 * H])

    c_new = f_g * c_prev + i_g * g_g
    h_new = o_g * jnp.tanh(c_new)

    hn_ref[...] = h_new
    cn_ref[...] = c_new
    y_ref[0] = h_new.astype(y_ref.dtype)


def lstm_recurrence_pallas(xg_tm, w_hh, h0, c0):
    S, B, G = xg_tm.shape
    H = w_hh.shape[0]
    y, hn, cn = pl.pallas_call(
        _lstm_recurrence_kernel,
        out_shape=(
            jax.ShapeDtypeStruct((S, B, H), jnp.float32),
            jax.ShapeDtypeStruct((B, H), jnp.float32),
            jax.ShapeDtypeStruct((B, H), jnp.float32),
        ),
        grid=(S,),
        in_specs=[
            pl.BlockSpec((1, B, G), lambda t: (t, 0, 0)),  # xg at timestep t
            pl.BlockSpec((H, G), lambda t: (0, 0)),        # W_hh resident
            pl.BlockSpec((B, H), lambda t: (0, 0)),        # h0 resident
            pl.BlockSpec((B, H), lambda t: (0, 0)),        # c0 resident
        ],
        out_specs=(
            pl.BlockSpec((1, B, H), lambda t: (t, 0, 0)),  # y per timestep
            pl.BlockSpec((B, H), lambda t: (0, 0)),        # h carry (resident)
            pl.BlockSpec((B, H), lambda t: (0, 0)),        # c carry (resident)
        ),
        compiler_params=pltpu.CompilerParams(
            dimension_semantics=("arbitrary",)),           # true recurrence
    )(xg_tm, w_hh, h0, c0)
    return y, hn, cn


# --------------------------- per-layer wrapper ------------------------------ #

def _lstm_layer(x_tm, params, h0, c0, *, tile_m=512):
    """x_tm: (seq, batch, in). params: (W_ih (in,4H), W_hh (H,4H), b (1,4H))."""
    S, B, In = x_tm.shape
    w_ih, w_hh, b = params
    H = w_hh.shape[0]
    # Parallel (over all timesteps) input->gate projection on the MXU.
    xg = linear_pallas(x_tm.reshape(S * B, In), w_ih, b, tile_m=tile_m)
    xg = xg.reshape(S, B, 4 * H)
    # Sequential recurrence.
    return lstm_recurrence_pallas(xg, w_hh, h0, c0)


# ----------------------------- full forward -------------------------------- #

@functools.partial(jax.jit,
                   static_argnames=("batch_size", "seq_len", "n_features"))
def lstm_ae_forward(x, enc_params, dec_params, out_params, *,
                    batch_size, seq_len, n_features):
    x = x.reshape(batch_size, seq_len, n_features).astype(jnp.float32)
    h = jnp.transpose(x, (1, 0, 2))                 # time-major (S, B, F)

    # ---------------- Encoder: 5 stacked LSTMs (zero initial state) --------
    hn = cn = None
    for p in enc_params:
        H = p[1].shape[0]
        z = jnp.zeros((batch_size, H), jnp.float32)
        h, hn, cn = _lstm_layer(h, p, z, z)
    enc_h, enc_c = hn, cn                           # encoder_state from lstm5

    # ---------------- Decoder: 5 stacked LSTMs -----------------------------
    for li, p in enumerate(dec_params):
        H = p[1].shape[0]
        if li == 0:                                 # lstm1 seeded w/ enc state
            h0, c0 = enc_h, enc_c
        else:
            h0 = jnp.zeros((batch_size, H), jnp.float32)
            c0 = jnp.zeros((batch_size, H), jnp.float32)
        h, hn, cn = _lstm_layer(h, p, h0, c0)

    # ---------------- output Linear -----------------------------------------
    out_w, out_b = out_params
    S, B, Hd = h.shape
    y2d = linear_pallas(h.reshape(S * B, Hd), out_w, out_b)
    y = y2d.reshape(S, B, out_w.shape[1])
    return jnp.transpose(y, (1, 0, 2))              # (batch, seq, n_features)


# --------------------------- parameter creation ----------------------------- #

def _init_lstm(key, in_size, hidden, dtype=jnp.float32):
    k1, k2, k3, k4 = jax.random.split(key, 4)
    bound = 1.0 / (hidden ** 0.5)                   # nn.LSTM default init
    w_ih = jax.random.uniform(k1, (in_size, 4 * hidden), dtype, -bound, bound)
    w_hh = jax.random.uniform(k2, (hidden, 4 * hidden), dtype, -bound, bound)
    b_ih = jax.random.uniform(k3, (1, 4 * hidden), dtype, -bound, bound)
    b_hh = jax.random.uniform(k4, (1, 4 * hidden), dtype, -bound, bound)
    return (w_ih, w_hh, b_ih + b_hh)                # combined bias


def init_lstm_ae_params(key, n_features, embedding_dim, n_layer):
    assert n_layer >= 5, "module indexes layer_sizes[5]; needs n_layer >= 5"
    # Encoder: layer_sizes = [n_features] + hidden + [embedding_dim]
    enc_sizes = ([n_features]
                 + get_hidden_layer_sizes(n_features, embedding_dim, n_layer - 1)
                 + [embedding_dim])[:6]
    enc_params = []
    for i in range(5):
        key, k = jax.random.split(key)
        enc_params.append(_init_lstm(k, enc_sizes[i], enc_sizes[i + 1]))

    # Decoder: layer_sizes = [embedding_dim] + hidden + [n_features]
    dec_sizes = ([embedding_dim]
                 + get_hidden_layer_sizes(embedding_dim, n_features, n_layer - 1)
                 + [n_features])[:6]
    dec_io = [(dec_sizes[0], dec_sizes[0]),   # lstm1: hidden == input_dim
              (dec_sizes[0], dec_sizes[1]),
              (dec_sizes[1], dec_sizes[2]),
              (dec_sizes[2], dec_sizes[3]),
              (dec_sizes[3], dec_sizes[4])]
    dec_params = []
    for (ins, hid) in dec_io:
        key, k = jax.random.split(key)
        dec_params.append(_init_lstm(k, ins, hid))

    key, kw, kb = jax.random.split(key, 3)
    bound = 1.0 / (dec_sizes[4] ** 0.5)             # nn.Linear default init
    out_w = jax.random.uniform(kw, (dec_sizes[4], dec_sizes[5]),
                               jnp.float32, -bound, bound)
    out_b = jax.random.uniform(kb, (1, dec_sizes[5]),
                               jnp.float32, -bound, bound)
    return enc_params, dec_params, (out_w, out_b)


# ------------------------- pure-JAX reference check ------------------------- #

_dot_hi = functools.partial(jnp.dot, precision=jax.lax.Precision.HIGHEST)


def _lstm_ref(x_tm, params, h0, c0):
    w_ih, w_hh, b = params
    H = w_hh.shape[0]

    def step(carry, x_t):
        h, c = carry
        gates = _dot_hi(x_t, w_ih) + _dot_hi(h, w_hh) + b[0]
        i = _sigmoid(gates[:, 0 * H:1 * H])
        f = _sigmoid(gates[:, 1 * H:2 * H])
        g = jnp.tanh(gates[:, 2 * H:3 * H])
        o = _sigmoid(gates[:, 3 * H:4 * H])
        c = f * c + i * g
        h = o * jnp.tanh(c)
        return (h, c), h

    (hn, cn), ys = jax.lax.scan(step, (h0, c0), x_tm)
    return ys, hn, cn


def reference_forward(x, enc_params, dec_params, out_params, *,
                      batch_size, seq_len, n_features):
    x = x.reshape(batch_size, seq_len, n_features).astype(jnp.float32)
    h = jnp.transpose(x, (1, 0, 2))
    hn = cn = None
    for p in enc_params:
        H = p[1].shape[0]
        z = jnp.zeros((batch_size, H), jnp.float32)
        h, hn, cn = _lstm_ref(h, p, z, z)
    enc_h, enc_c = hn, cn
    for li, p in enumerate(dec_params):
        H = p[1].shape[0]
        h0 = enc_h if li == 0 else jnp.zeros((batch_size, H), jnp.float32)
        c0 = enc_c if li == 0 else jnp.zeros((batch_size, H), jnp.float32)
        h, hn, cn = _lstm_ref(h, p, h0, c0)
    out_w, out_b = out_params
    y = _dot_hi(h, out_w) + out_b[0]
    return jnp.transpose(y, (1, 0, 2))


# ----------------------------------- main ----------------------------------- #

if __name__ == "__main__":
    batch_size = 2
    seq_len = 8
    n_features = 4
    embedding_dim = 16
    n_layer = 5          # Decoder/Encoder index layer_sizes[5] -> 4 hidden sizes

    key = jax.random.PRNGKey(0)
    key, kx = jax.random.split(key)
    x = jax.random.normal(kx, (batch_size, seq_len, n_features), jnp.float32)

    enc_params, dec_params, out_params = init_lstm_ae_params(
        key, n_features, embedding_dim, n_layer)

    out = lstm_ae_forward(x, enc_params, dec_params, out_params,
                          batch_size=batch_size, seq_len=seq_len,
                          n_features=n_features)
    out = jax.block_until_ready(out)

    ref = reference_forward(x, enc_params, dec_params, out_params,
                            batch_size=batch_size, seq_len=seq_len,
                            n_features=n_features)

    assert out.shape == (batch_size, seq_len, n_features), out.shape
    max_diff = float(jnp.max(jnp.abs(out - ref)))
    assert jnp.allclose(out, ref, atol=1e-3, rtol=1e-3), max_diff

    print("KERNEL_OK")
</pallas_src>

<mosaic_0001>
module attributes {stable_mosaic.version = 11 : i64} {
  func.func @_linear_kernel(%arg0: i32, %arg1: memref<16x4xf32, #tpu.memory_space<vmem>>, %arg2: memref<4x24xf32, #tpu.memory_space<vmem>>, %arg3: memref<1x24xf32, #tpu.memory_space<vmem>>, %arg4: memref<16x24xf32, #tpu.memory_space<vmem>>) attributes {dimension_semantics = [#tpu.dimension_semantics<parallel>], iteration_bounds = array<i64: 1>, scalar_prefetch = 0 : i64, scratch_operands = 0 : i64, tpu.core_type = #tpu.core_type<tc>, window_params = [{transform_indices = @transform_0, window_bounds = array<i64: 16, 4>}, {pipeline_mode = #tpu.pipeline_mode<synchronous>, transform_indices = @transform_1, window_bounds = array<i64: 4, 24>}, {pipeline_mode = #tpu.pipeline_mode<synchronous>, transform_indices = @transform_2, window_bounds = array<i64: 1, 24>}, {transform_indices = @transform_3, window_bounds = array<i64: 16, 24>}]} {
    %c0 = arith.constant 0 : index
    %c0_0 = arith.constant 0 : index
    %0 = vector.load %arg1[%c0, %c0_0] : memref<16x4xf32, #tpu.memory_space<vmem>>, vector<16x4xf32>
    %c0_1 = arith.constant 0 : index
    %c0_2 = arith.constant 0 : index
    %1 = vector.load %arg2[%c0_1, %c0_2] : memref<4x24xf32, #tpu.memory_space<vmem>>, vector<4x24xf32>
    %c0_3 = arith.constant 0 : index
    %c0_4 = arith.constant 0 : index
    %2 = vector.load %arg3[%c0_3, %c0_4] : memref<1x24xf32, #tpu.memory_space<vmem>>, vector<1x24xf32>
    %cst = arith.constant dense<0.000000e+00> : vector<16x24xf32>
    %3 = tpu.matmul %0, %1, %cst {dimension_numbers = #tpu.dot_dimension_numbers<[1], [0], [0], [1], [0, 0, 1, 1], [], []>} : vector<16x4xf32>, vector<4x24xf32>, vector<16x24xf32> -> vector<16x24xf32>
    %4 = vector.broadcast %2 : vector<1x24xf32> to vector<16x24xf32>
    %5 = arith.addf %3, %4 : vector<16x24xf32>
    %c0_5 = arith.constant 0 : index
    %c0_6 = arith.constant 0 : index
    %6 = vector.load %arg4[%c0_5, %c0_6] : memref<16x24xf32, #tpu.memory_space<vmem>>, vector<16x24xf32>
    tpu.vector_store %arg4[%c0_5, %c0_6], %5 {strides = array<i32>} : memref<16x24xf32, #tpu.memory_space<vmem>>, vector<16x24xf32>,
    return
  }
  func.func @transform_0(%arg0: i32) -> (i32, i32) {
    %c0_i32 = arith.constant 0 : i32
    %c0_i32_0 = arith.constant 0 : i32
    return %arg0, %c0_i32 : i32, i32
  }
  func.func @transform_1(%arg0: i32) -> (i32, i32) {
    %c0_i32 = arith.constant 0 : i32
    %c0_i32_0 = arith.constant 0 : i32
    %c0_i32_1 = arith.constant 0 : i32
    return %c0_i32, %c0_i32_0 : i32, i32
  }
  func.func @transform_2(%arg0: i32) -> (i32, i32) {
    %c0_i32 = arith.constant 0 : i32
    %c0_i32_0 = arith.constant 0 : i32
    %c0_i32_1 = arith.constant 0 : i32
    return %c0_i32, %c0_i32_0 : i32, i32
  }
  func.func @transform_3(%arg0: i32) -> (i32, i32) {
    %c0_i32 = arith.constant 0 : i32
    %c0_i32_0 = arith.constant 0 : i32
    return %arg0, %c0_i32 : i32, i32
  }
}

module attributes {stable_mosaic.version = 11 : i64} {
  func.func @_lstm_recurrence_kernel(%arg0: i32, %arg1: memref<1x2x24xf32, #tpu.memory_space<vmem>>, %arg2: memref<6x24xf32, #tpu.memory_space<vmem>>, %arg3: memref<2x6xf32, #tpu.memory_space<vmem>>, %arg4: memref<2x6xf32, #tpu.memory_space<vmem>>, %arg5: memref<1x2x6xf32, #tpu.memory_space<vmem>>, %arg6: memref<2x6xf32, #tpu.memory_space<vmem>>, %arg7: memref<2x6xf32, #tpu.memory_space<vmem>>) attributes {dimension_semantics = [#tpu.dimension_semantics<arbitrary>], iteration_bounds = array<i64: 8>, scalar_prefetch = 0 : i64, scratch_operands = 0 : i64, tpu.core_type = #tpu.core_type<tc>, window_params = [{transform_indices = @transform_0, window_bounds = array<i64: 1, 2, 24>}, {pipeline_mode = #tpu.pipeline_mode<synchronous>, transform_indices = @transform_1, window_bounds = array<i64: 6, 24>}, {pipeline_mode = #tpu.pipeline_mode<synchronous>, transform_indices = @transform_2, window_bounds = array<i64: 2, 6>}, {pipeline_mode = #tpu.pipeline_mode<synchronous>, transform_indices = @transform_3, window_bounds = array<i64: 2, 6>}, {transform_indices = @transform_4, window_bounds = array<i64: 1, 2, 6>}, {pipeline_mode = #tpu.pipeline_mode<synchronous>, transform_indices = @transform_5, window_bounds = array<i64: 2, 6>}, {pipeline_mode = #tpu.pipeline_mode<synchronous>, transform_indices = @transform_6, window_bounds = array<i64: 2, 6>}]} {
    %c0_i32 = arith.constant 0 : i32
    %0 = arith.cmpi eq, %arg0, %c0_i32 : i32
    %1 = arith.extui %0 : i1 to i32
    %c0_i32_0 = arith.constant 0 : i32
    %2 = arith.cmpi ne, %1, %c0_i32_0 : i32
    scf.if %2 {
      %c0_25 = arith.constant 0 : index
      %c0_26 = arith.constant 0 : index
      %46 = vector.load %arg3[%c0_25, %c0_26] : memref<2x6xf32, #tpu.memory_space<vmem>>, vector<2x6xf32>
      %c0_27 = arith.constant 0 : index
      %c0_28 = arith.constant 0 : index
      %47 = vector.load %arg6[%c0_27, %c0_28] : memref<2x6xf32, #tpu.memory_space<vmem>>, vector<2x6xf32>
      tpu.vector_store %arg6[%c0_27, %c0_28], %46 {strides = array<i32>} : memref<2x6xf32, #tpu.memory_space<vmem>>, vector<2x6xf32>,
      %c0_29 = arith.constant 0 : index
      %c0_30 = arith.constant 0 : index
      %48 = vector.load %arg4[%c0_29, %c0_30] : memref<2x6xf32, #tpu.memory_space<vmem>>, vector<2x6xf32>
      %c0_31 = arith.constant 0 : index
      %c0_32 = arith.constant 0 : index
      %49 = vector.load %arg7[%c0_31, %c0_32] : memref<2x6xf32, #tpu.memory_space<vmem>>, vector<2x6xf32>
      tpu.vector_store %arg7[%c0_31, %c0_32], %48 {strides = array<i32>} : memref<2x6xf32, #tpu.memory_space<vmem>>, vector<2x6xf32>,
    } else {
    }
    %c0 = arith.constant 0 : index
    %c0_1 = arith.constant 0 : index
    %3 = vector.load %arg6[%c0, %c0_1] : memref<2x6xf32, #tpu.memory_space<vmem>>, vector<2x6xf32>
    %c0_2 = arith.constant 0 : index
    %c0_3 = arith.constant 0 : index
    %4 = vector.load %arg7[%c0_2, %c0_3] : memref<2x6xf32, #tpu.memory_space<vmem>>, vector<2x6xf32>
    %c0_4 = arith.constant 0 : index
    %c0_5 = arith.constant 0 : index
    %c0_6 = arith.constant 0 : index
    %5 = vector.load %arg1[%c0_4, %c0_5, %c0_6] : memref<1x2x24xf32, #tpu.memory_space<vmem>>, vector<1x2x24xf32>
    %6 = vector.shape_cast %5 : vector<1x2x24xf32> to vector<2x24xf32>
    %c0_7 = arith.constant 0 : index
    %c0_8 = arith.constant 0 : index
    %7 = vector.load %arg2[%c0_7, %c0_8] : memref<6x24xf32, #tpu.memory_space<vmem>>, vector<6x24xf32>
    %cst = arith.constant dense<0.000000e+00> : vector<2x24xf32>
    %8 = tpu.matmul %3, %7, %cst {dimension_numbers = #tpu.dot_dimension_numbers<[1], [0], [0], [1], [0, 0, 1, 1], [], []>} : vector<2x6xf32>, vector<6x24xf32>, vector<2x24xf32> -> vector<2x24xf32>
    %9 = arith.addf %6, %8 : vector<2x24xf32>
    %10 = vector.extract_strided_slice %9 {offsets = [0, 0], sizes = [2, 6], strides = [1, 1]} : vector<2x24xf32> to vector<2x6xf32>
    %cst_9 = arith.constant 0.000000e+00 : f32
    %11 = vector.broadcast %cst_9 : f32 to vector<2x6xf32>
    %12 = arith.subf %11, %10 : vector<2x6xf32>
    %13 = math.exp %12 : vector<2x6xf32>
    %cst_10 = arith.constant 1.000000e+00 : f32
    %14 = vector.broadcast %cst_10 : f32 to vector<2x6xf32>
    %15 = arith.addf %14, %13 : vector<2x6xf32>
    %cst_11 = arith.constant 1.000000e+00 : f32
    %16 = vector.broadcast %cst_11 : f32 to vector<2x6xf32>
    %17 = arith.divf %16, %15 : vector<2x6xf32>
    %18 = vector.extract_strided_slice %9 {offsets = [0, 6], sizes = [2, 6], strides = [1, 1]} : vector<2x24xf32> to vector<2x6xf32>
    %cst_12 = arith.constant 0.000000e+00 : f32
    %19 = vector.broadcast %cst_12 : f32 to vector<2x6xf32>
    %20 = arith.subf %19, %18 : vector<2x6xf32>
    %21 = math.exp %20 : vector<2x6xf32>
    %cst_13 = arith.constant 1.000000e+00 : f32
    %22 = vector.broadcast %cst_13 : f32 to vector<2x6xf32>
    %23 = arith.addf %22, %21 : vector<2x6xf32>
    %cst_14 = arith.constant 1.000000e+00 : f32
    %24 = vector.broadcast %cst_14 : f32 to vector<2x6xf32>
    %25 = arith.divf %24, %23 : vector<2x6xf32>
    %26 = vector.extract_strided_slice %9 {offsets = [0, 12], sizes = [2, 6], strides = [1, 1]} : vector<2x24xf32> to vector<2x6xf32>
    %27 = math.tanh %26 : vector<2x6xf32>
    %28 = vector.extract_strided_slice %9 {offsets = [0, 18], sizes = [2, 6], strides = [1, 1]} : vector<2x24xf32> to vector<2x6xf32>
    %cst_15 = arith.constant 0.000000e+00 : f32
    %29 = vector.broadcast %cst_15 : f32 to vector<2x6xf32>
    %30 = arith.subf %29, %28 : vector<2x6xf32>
    %31 = math.exp %30 : vector<2x6xf32>
    %cst_16 = arith.constant 1.000000e+00 : f32
    %32 = vector.broadcast %cst_16 : f32 to vector<2x6xf32>
    %33 = arith.addf %32, %31 : vector<2x6xf32>
    %cst_17 = arith.constant 1.000000e+00 : f32
    %34 = vector.broadcast %cst_17 : f32 to vector<2x6xf32>
    %35 = arith.divf %34, %33 : vector<2x6xf32>
    %36 = arith.mulf %25, %4 : vector<2x6xf32>
    %37 = arith.mulf %17, %27 : vector<2x6xf32>
    %38 = arith.addf %36, %37 : vector<2x6xf32>
    %39 = math.tanh %38 : vector<2x6xf32>
    %40 = arith.mulf %35, %39 : vector<2x6xf32>
    %c0_18 = arith.constant 0 : index
    %c0_19 = arith.constant 0 : index
    %41 = vector.load %arg6[%c0_18, %c0_19] : memref<2x6xf32, #tpu.memory_space<vmem>>, vector<2x6xf32>
    tpu.vector_store %arg6[%c0_18, %c0_19], %40 {strides = array<i32>} : memref<2x6xf32, #tpu.memory_space<vmem>>, vector<2x6xf32>,
    %c0_20 = arith.constant 0 : index
    %c0_21 = arith.constant 0 : index
    %42 = vector.load %arg7[%c0_20, %c0_21] : memref<2x6xf32, #tpu.memory_space<vmem>>, vector<2x6xf32>
    tpu.vector_store %arg7[%c0_20, %c0_21], %38 {strides = array<i32>} : memref<2x6xf32, #tpu.memory_space<vmem>>, vector<2x6xf32>,
    %c0_22 = arith.constant 0 : index
    %c0_23 = arith.constant 0 : index
    %c0_24 = arith.constant 0 : index
    %43 = vector.load %arg5[%c0_22, %c0_23, %c0_24] : memref<1x2x6xf32, #tpu.memory_space<vmem>>, vector<1x2x6xf32>
    %44 = vector.shape_cast %43 : vector<1x2x6xf32> to vector<2x6xf32>
    %45 = vector.shape_cast %40 : vector<2x6xf32> to vector<1x2x6xf32>
    tpu.vector_store %arg5[%c0_22, %c0_23, %c0_24], %45 {strides = array<i32>} : memref<1x2x6xf32, #tpu.memory_space<vmem>>, vector<1x2x6xf32>,
    return
  }
  func.func @transform_0(%arg0: i32) -> (i32, i32, i32) {
    %c0_i32 = arith.constant 0 : i32
    %c0_i32_0 = arith.constant 0 : i32
    %c0_i32_1 = arith.constant 0 : i32
    return %arg0, %c0_i32, %c0_i32_0 : i32, i32, i32
  }
  func.func @transform_1(%arg0: i32) -> (i32, i32) {
    %c0_i32 = arith.constant 0 : i32
    %c0_i32_0 = arith.constant 0 : i32
    %c0_i32_1 = arith.constant 0 : i32
    return %c0_i32, %c0_i32_0 : i32, i32
  }
  func.func @transform_2(%arg0: i32) -> (i32, i32) {
    %c0_i32 = arith.constant 0 : i32
    %c0_i32_0 = arith.constant 0 : i32
    %c0_i32_1 = arith.constant 0 : i32
    return %c0_i32, %c0_i32_0 : i32, i32
  }
  func.func @transform_3(%arg0: i32) -> (i32, i32) {
    %c0_i32 = arith.constant 0 : i32
    %c0_i32_0 = arith.constant 0 : i32
    %c0_i32_1 = arith.constant 0 : i32
    return %c0_i32, %c0_i32_0 : i32, i32
  }
  func.func @transform_4(%arg0: i32) -> (i32, i32, i32) {
    %c0_i32 = arith.constant 0 : i32
    %c0_i32_0 = arith.constant 0 : i32
    %c0_i32_1 = arith.constant 0 : i32
    return %arg0, %c0_i32, %c0_i32_0 : i32, i32, i32
  }
  func.func @transform_5(%arg0: i32) -> (i32, i32) {
    %c0_i32 = arith.constant 0 : i32
    %c0_i32_0 = arith.constant 0 : i32
    %c0_i32_1 = arith.constant 0 : i32
    return %c0_i32, %c0_i32_0 : i32, i32
  }
  func.func @transform_6(%arg0: i32) -> (i32, i32) {
    %c0_i32 = arith.constant 0 : i32
    %c0_i32_0 = arith.constant 0 : i32
    %c0_i32_1 = arith.constant 0 : i32
    return %c0_i32, %c0_i32_0 : i32, i32
  }
}

module attributes {stable_mosaic.version = 11 : i64} {
  func.func @_linear_kernel(%arg0: i32, %arg1: memref<16x6xf32, #tpu.memory_space<vmem>>, %arg2: memref<6x36xf32, #tpu.memory_space<vmem>>, %arg3: memref<1x36xf32, #tpu.memory_space<vmem>>, %arg4: memref<16x36xf32, #tpu.memory_space<vmem>>) attributes {dimension_semantics = [#tpu.dimension_semantics<parallel>], iteration_bounds = array<i64: 1>, scalar_prefetch = 0 : i64, scratch_operands = 0 : i64, tpu.core_type = #tpu.core_type<tc>, window_params = [{transform_indices = @transform_0, window_bounds = array<i64: 16, 6>}, {pipeline_mode = #tpu.pipeline_mode<synchronous>, transform_indices = @transform_1, window_bounds = array<i64: 6, 36>}, {pipeline_mode = #tpu.pipeline_mode<synchronous>, transform_indices = @transform_2, window_bounds = array<i64: 1, 36>}, {transform_indices = @transform_3, window_bounds = array<i64: 16, 36>}]} {
    %c0 = arith.constant 0 : index
    %c0_0 = arith.constant 0 : index
    %0 = vector.load %arg1[%c0, %c0_0] : memref<16x6xf32, #tpu.memory_space<vmem>>, vector<16x6xf32>
    %c0_1 = arith.constant 0 : index
    %c0_2 = arith.constant 0 : index
    %1 = vector.load %arg2[%c0_1, %c0_2] : memref<6x36xf32, #tpu.memory_space<vmem>>, vector<6x36xf32>
    %c0_3 = arith.constant 0 : index
    %c0_4 = arith.constant 0 : index
    %2 = vector.load %arg3[%c0_3, %c0_4] : memref<1x36xf32, #tpu.memory_space<vmem>>, vector<1x36xf32>
    %cst = arith.constant dense<0.000000e+00> : vector<16x36xf32>
    %3 = tpu.matmul %0, %1, %cst {dimension_numbers = #tpu.dot_dimension_numbers<[1], [0], [0], [1], [0, 0, 1, 1], [], []>} : vector<16x6xf32>, vector<6x36xf32>, vector<16x36xf32> -> vector<16x36xf32>
    %4 = vector.broadcast %2 : vector<1x36xf32> to vector<16x36xf32>
    %5 = arith.addf %3, %4 : vector<16x36xf32>
    %c0_5 = arith.constant 0 : index
    %c0_6 = arith.constant 0 : index
    %6 = vector.load %arg4[%c0_5, %c0_6] : memref<16x36xf32, #tpu.memory_space<vmem>>, vector<16x36xf32>
    tpu.vector_store %arg4[%c0_5, %c0_6], %5 {strides = array<i32>} : memref<16x36xf32, #tpu.memory_space<vmem>>, vector<16x36xf32>,
    return
  }
  func.func @transform_0(%arg0: i32) -> (i32, i32) {
    %c0_i32 = arith.constant 0 : i32
    %c0_i32_0 = arith.constant 0 : i32
    return %arg0, %c0_i32 : i32, i32
  }
  func.func @transform_1(%arg0: i32) -> (i32, i32) {
    %c0_i32 = arith.constant 0 : i32
    %c0_i32_0 = arith.constant 0 : i32
    %c0_i32_1 = arith.constant 0 : i32
    return %c0_i32, %c0_i32_0 : i32, i32
  }
  func.func @transform_2(%arg0: i32) -> (i32, i32) {
    %c0_i32 = arith.constant 0 : i32
    %c0_i32_0 = arith.constant 0 : i32
    %c0_i32_1 = arith.constant 0 : i32
    return %c0_i32, %c0_i32_0 : i32, i32
  }
  func.func @transform_3(%arg0: i32) -> (i32, i32) {
    %c0_i32 = arith.constant 0 : i32
    %c0_i32_0 = arith.constant 0 : i32
    return %arg0, %c0_i32 : i32, i32
  }
}

module attributes {stable_mosaic.version = 11 : i64} {
  func.func @_lstm_recurrence_kernel(%arg0: i32, %arg1: memref<1x2x36xf32, #tpu.memory_space<vmem>>, %arg2: memref<9x36xf32, #tpu.memory_space<vmem>>, %arg3: memref<2x9xf32, #tpu.memory_space<vmem>>, %arg4: memref<2x9xf32, #tpu.memory_space<vmem>>, %arg5: memref<1x2x9xf32, #tpu.memory_space<vmem>>, %arg6: memref<2x9xf32, #tpu.memory_space<vmem>>, %arg7: memref<2x9xf32, #tpu.memory_space<vmem>>) attributes {dimension_semantics = [#tpu.dimension_semantics<arbitrary>], iteration_bounds = array<i64: 8>, scalar_prefetch = 0 : i64, scratch_operands = 0 : i64, tpu.core_type = #tpu.core_type<tc>, window_params = [{transform_indices = @transform_0, window_bounds = array<i64: 1, 2, 36>}, {pipeline_mode = #tpu.pipeline_mode<synchronous>, transform_indices = @transform_1, window_bounds = array<i64: 9, 36>}, {pipeline_mode = #tpu.pipeline_mode<synchronous>, transform_indices = @transform_2, window_bounds = array<i64: 2, 9>}, {pipeline_mode = #tpu.pipeline_mode<synchronous>, transform_indices = @transform_3, window_bounds = array<i64: 2, 9>}, {transform_indices = @transform_4, window_bounds = array<i64: 1, 2, 9>}, {pipeline_mode = #tpu.pipeline_mode<synchronous>, transform_indices = @transform_5, window_bounds = array<i64: 2, 9>}, {pipeline_mode = #tpu.pipeline_mode<synchronous>, transform_indices = @transform_6, window_bounds = array<i64: 2, 9>}]} {
    %c0_i32 = arith.constant 0 : i32
    %0 = arith.cmpi eq, %arg0, %c0_i32 : i32
    %1 = arith.extui %0 : i1 to i32
    %c0_i32_0 = arith.constant 0 : i32
    %2 = arith.cmpi ne, %1, %c0_i32_0 : i32
    scf.if %2 {
      %c0_25 = arith.constant 0 : index
      %c0_26 = arith.constant 0 : index
      %46 = vector.load %arg3[%c0_25, %c0_26] : memref<2x9xf32, #tpu.memory_space<vmem>>, vector<2x9xf32>
      %c0_27 = arith.constant 0 : index
      %c0_28 = arith.constant 0 : index
      %47 = vector.load %arg6[%c0_27, %c0_28] : memref<2x9xf32, #tpu.memory_space<vmem>>, vector<2x9xf32>
      tpu.vector_store %arg6[%c0_27, %c0_28], %46 {strides = array<i32>} : memref<2x9xf32, #tpu.memory_space<vmem>>, vector<2x9xf32>,
      %c0_29 = arith.constant 0 : index
      %c0_30 = arith.constant 0 : index
      %48 = vector.load %arg4[%c0_29, %c0_30] : memref<2x9xf32, #tpu.memory_space<vmem>>, vector<2x9xf32>
      %c0_31 = arith.constant 0 : index
      %c0_32 = arith.constant 0 : index
      %49 = vector.load %arg7[%c0_31, %c0_32] : memref<2x9xf32, #tpu.memory_space<vmem>>, vector<2x9xf32>
      tpu.vector_store %arg7[%c0_31, %c0_32], %48 {strides = array<i32>} : memref<2x9xf32, #tpu.memory_space<vmem>>, vector<2x9xf32>,
    } else {
    }
    %c0 = arith.constant 0 : index
    %c0_1 = arith.constant 0 : index
    %3 = vector.load %arg6[%c0, %c0_1] : memref<2x9xf32, #tpu.memory_space<vmem>>, vector<2x9xf32>
    %c0_2 = arith.constant 0 : index
    %c0_3 = arith.constant 0 : index
    %4 = vector.load %arg7[%c0_2, %c0_3] : memref<2x9xf32, #tpu.memory_space<vmem>>, vector<2x9xf32>
    %c0_4 = arith.constant 0 : index
    %c0_5 = arith.constant 0 : index
    %c0_6 = arith.constant 0 : index
    %5 = vector.load %arg1[%c0_4, %c0_5, %c0_6] : memref<1x2x36xf32, #tpu.memory_space<vmem>>, vector<1x2x36xf32>
    %6 = vector.shape_cast %5 : vector<1x2x36xf32> to vector<2x36xf32>
    %c0_7 = arith.constant 0 : index
    %c0_8 = arith.constant 0 : index
    %7 = vector.load %arg2[%c0_7, %c0_8] : memref<9x36xf32, #tpu.memory_space<vmem>>, vector<9x36xf32>
    %cst = arith.constant dense<0.000000e+00> : vector<2x36xf32>
    %8 = tpu.matmul %3, %7, %cst {dimension_numbers = #tpu.dot_dimension_numbers<[1], [0], [0], [1], [0, 0, 1, 1], [], []>} : vector<2x9xf32>, vector<9x36xf32>, vector<2x36xf32> -> vector<2x36xf32>
    %9 = arith.addf %6, %8 : vector<2x36xf32>
    %10 = vector.extract_strided_slice %9 {offsets = [0, 0], sizes = [2, 9], strides = [1, 1]} : vector<2x36xf32> to vector<2x9xf32>
    %cst_9 = arith.constant 0.000000e+00 : f32
    %11 = vector.broadcast %cst_9 : f32 to vector<2x9xf32>
    %12 = arith.subf %11, %10 : vector<2x9xf32>
    %13 = math.exp %12 : vector<2x9xf32>
    %cst_10 = arith.constant 1.000000e+00 : f32
    %14 = vector.broadcast %cst_10 : f32 to vector<2x9xf32>
    %15 = arith.addf %14, %13 : vector<2x9xf32>
    %cst_11 = arith.constant 1.000000e+00 : f32
    %16 = vector.broadcast %cst_11 : f32 to vector<2x9xf32>
    %17 = arith.divf %16, %15 : vector<2x9xf32>
    %18 = vector.extract_strided_slice %9 {offsets = [0, 9], sizes = [2, 9], strides = [1, 1]} : vector<2x36xf32> to vector<2x9xf32>
    %cst_12 = arith.constant 0.000000e+00 : f32
    %19 = vector.broadcast %cst_12 : f32 to vector<2x9xf32>
    %20 = arith.subf %19, %18 : vector<2x9xf32>
    %21 = math.exp %20 : vector<2x9xf32>
    %cst_13 = arith.constant 1.000000e+00 : f32
    %22 = vector.broadcast %cst_13 : f32 to vector<2x9xf32>
    %23 = arith.addf %22, %21 : vector<2x9xf32>
    %cst_14 = arith.constant 1.000000e+00 : f32
    %24 = vector.broadcast %cst_14 : f32 to vector<2x9xf32>
    %25 = arith.divf %24, %23 : vector<2x9xf32>
    %26 = vector.extract_strided_slice %9 {offsets = [0, 18], sizes = [2, 9], strides = [1, 1]} : vector<2x36xf32> to vector<2x9xf32>
    %27 = math.tanh %26 : vector<2x9xf32>
    %28 = vector.extract_strided_slice %9 {offsets = [0, 27], sizes = [2, 9], strides = [1, 1]} : vector<2x36xf32> to vector<2x9xf32>
    %cst_15 = arith.constant 0.000000e+00 : f32
    %29 = vector.broadcast %cst_15 : f32 to vector<2x9xf32>
    %30 = arith.subf %29, %28 : vector<2x9xf32>
    %31 = math.exp %30 : vector<2x9xf32>
    %cst_16 = arith.constant 1.000000e+00 : f32
    %32 = vector.broadcast %cst_16 : f32 to vector<2x9xf32>
    %33 = arith.addf %32, %31 : vector<2x9xf32>
    %cst_17 = arith.constant 1.000000e+00 : f32
    %34 = vector.broadcast %cst_17 : f32 to vector<2x9xf32>
    %35 = arith.divf %34, %33 : vector<2x9xf32>
    %36 = arith.mulf %25, %4 : vector<2x9xf32>
    %37 = arith.mulf %17, %27 : vector<2x9xf32>
    %38 = arith.addf %36, %37 : vector<2x9xf32>
    %39 = math.tanh %38 : vector<2x9xf32>
    %40 = arith.mulf %35, %39 : vector<2x9xf32>
    %c0_18 = arith.constant 0 : index
    %c0_19 = arith.constant 0 : index
    %41 = vector.load %arg6[%c0_18, %c0_19] : memref<2x9xf32, #tpu.memory_space<vmem>>, vector<2x9xf32>
    tpu.vector_store %arg6[%c0_18, %c0_19], %40 {strides = array<i32>} : memref<2x9xf32, #tpu.memory_space<vmem>>, vector<2x9xf32>,
    %c0_20 = arith.constant 0 : index
    %c0_21 = arith.constant 0 : index
    %42 = vector.load %arg7[%c0_20, %c0_21] : memref<2x9xf32, #tpu.memory_space<vmem>>, vector<2x9xf32>
    tpu.vector_store %arg7[%c0_20, %c0_21], %38 {strides = array<i32>} : memref<2x9xf32, #tpu.memory_space<vmem>>, vector<2x9xf32>,
    %c0_22 = arith.constant 0 : index
    %c0_23 = arith.constant 0 : index
    %c0_24 = arith.constant 0 : index
    %43 = vector.load %arg5[%c0_22, %c0_23, %c0_24] : memref<1x2x9xf32, #tpu.memory_space<vmem>>, vector<1x2x9xf32>
    %44 = vector.shape_cast %43 : vector<1x2x9xf32> to vector<2x9xf32>
    %45 = vector.shape_cast %40 : vector<2x9xf32> to vector<1x2x9xf32>
    tpu.vector_store %arg5[%c0_22, %c0_23, %c0_24], %45 {strides = array<i32>} : memref<1x2x9xf32, #tpu.memory_space<vmem>>, vector<1x2x9xf32>,
    return
  }
  func.func @transform_0(%arg0: i32) -> (i32, i32, i32) {
    %c0_i32 = arith.constant 0 : i32
    %c0_i32_0 = arith.constant 0 : i32
    %c0_i32_1 = arith.constant 0 : i32
    return %arg0, %c0_i32, %c0_i32_0 : i32, i32, i32
  }
  func.func @transform_1(%arg0: i32) -> (i32, i32) {
    %c0_i32 = arith.constant 0 : i32
    %c0_i32_0 = arith.constant 0 : i32
    %c0_i32_1 = arith.constant 0 : i32
    return %c0_i32, %c0_i32_0 : i32, i32
  }
  func.func @transform_2(%arg0: i32) -> (i32, i32) {
    %c0_i32 = arith.constant 0 : i32
    %c0_i32_0 = arith.constant 0 : i32
    %c0_i32_1 = arith.constant 0 : i32
    return %c0_i32, %c0_i32_0 : i32, i32
  }
  func.func @transform_3(%arg0: i32) -> (i32, i32) {
    %c0_i32 = arith.constant 0 : i32
    %c0_i32_0 = arith.constant 0 : i32
    %c0_i32_1 = arith.constant 0 : i32
    return %c0_i32, %c0_i32_0 : i32, i32
  }
  func.func @transform_4(%arg0: i32) -> (i32, i32, i32) {
    %c0_i32 = arith.constant 0 : i32
    %c0_i32_0 = arith.constant 0 : i32
    %c0_i32_1 = arith.constant 0 : i32
    return %arg0, %c0_i32, %c0_i32_0 : i32, i32, i32
  }
  func.func @transform_5(%arg0: i32) -> (i32, i32) {
    %c0_i32 = arith.constant 0 : i32
    %c0_i32_0 = arith.constant 0 : i32
    %c0_i32_1 = arith.constant 0 : i32
    return %c0_i32, %c0_i32_0 : i32, i32
  }
  func.func @transform_6(%arg0: i32) -> (i32, i32) {
    %c0_i32 = arith.constant 0 : i32
    %c0_i32_0 = arith.constant 0 : i32
    %c0_i32_1 = arith.constant 0 : i32
    return %c0_i32, %c0_i32_0 : i32, i32
  }
}

module attributes {stable_mosaic.version = 11 : i64} {
  func.func @_linear_kernel(%arg0: i32, %arg1: memref<16x9xf32, #tpu.memory_space<vmem>>, %arg2: memref<9x44xf32, #tpu.memory_space<vmem>>, %arg3: memref<1x44xf32, #tpu.memory_space<vmem>>, %arg4: memref<16x44xf32, #tpu.memory_space<vmem>>) attributes {dimension_semantics = [#tpu.dimension_semantics<parallel>], iteration_bounds = array<i64: 1>, scalar_prefetch = 0 : i64, scratch_operands = 0 : i64, tpu.core_type = #tpu.core_type<tc>, window_params = [{transform_indices = @transform_0, window_bounds = array<i64: 16, 9>}, {pipeline_mode = #tpu.pipeline_mode<synchronous>, transform_indices = @transform_1, window_bounds = array<i64: 9, 44>}, {pipeline_mode = #tpu.pipeline_mode<synchronous>, transform_indices = @transform_2, window_bounds = array<i64: 1, 44>}, {transform_indices = @transform_3, window_bounds = array<i64: 16, 44>}]} {
    %c0 = arith.constant 0 : index
    %c0_0 = arith.constant 0 : index
    %0 = vector.load %arg1[%c0, %c0_0] : memref<16x9xf32, #tpu.memory_space<vmem>>, vector<16x9xf32>
    %c0_1 = arith.constant 0 : index
    %c0_2 = arith.constant 0 : index
    %1 = vector.load %arg2[%c0_1, %c0_2] : memref<9x44xf32, #tpu.memory_space<vmem>>, vector<9x44xf32>
    %c0_3 = arith.constant 0 : index
    %c0_4 = arith.constant 0 : index
    %2 = vector.load %arg3[%c0_3, %c0_4] : memref<1x44xf32, #tpu.memory_space<vmem>>, vector<1x44xf32>
    %cst = arith.constant dense<0.000000e+00> : vector<16x44xf32>
    %3 = tpu.matmul %0, %1, %cst {dimension_numbers = #tpu.dot_dimension_numbers<[1], [0], [0], [1], [0, 0, 1, 1], [], []>} : vector<16x9xf32>, vector<9x44xf32>, vector<16x44xf32> -> vector<16x44xf32>
    %4 = vector.broadcast %2 : vector<1x44xf32> to vector<16x44xf32>
    %5 = arith.addf %3, %4 : vector<16x44xf32>
    %c0_5 = arith.constant 0 : index
    %c0_6 = arith.constant 0 : index
    %6 = vector.load %arg4[%c0_5, %c0_6] : memref<16x44xf32, #tpu.memory_space<vmem>>, vector<16x44xf32>
    tpu.vector_store %arg4[%c0_5, %c0_6], %5 {strides = array<i32>} : memref<16x44xf32, #tpu.memory_space<vmem>>, vector<16x44xf32>,
    return
  }
  func.func @transform_0(%arg0: i32) -> (i32, i32) {
    %c0_i32 = arith.constant 0 : i32
    %c0_i32_0 = arith.constant 0 : i32
    return %arg0, %c0_i32 : i32, i32
  }
  func.func @transform_1(%arg0: i32) -> (i32, i32) {
    %c0_i32 = arith.constant 0 : i32
    %c0_i32_0 = arith.constant 0 : i32
    %c0_i32_1 = arith.constant 0 : i32
    return %c0_i32, %c0_i32_0 : i32, i32
  }
  func.func @transform_2(%arg0: i32) -> (i32, i32) {
    %c0_i32 = arith.constant 0 : i32
    %c0_i32_0 = arith.constant 0 : i32
    %c0_i32_1 = arith.constant 0 : i32
    return %c0_i32, %c0_i32_0 : i32, i32
  }
  func.func @transform_3(%arg0: i32) -> (i32, i32) {
    %c0_i32 = arith.constant 0 : i32
    %c0_i32_0 = arith.constant 0 : i32
    return %arg0, %c0_i32 : i32, i32
  }
}

module attributes {stable_mosaic.version = 11 : i64} {
  func.func @_lstm_recurrence_kernel(%arg0: i32, %arg1: memref<1x2x44xf32, #tpu.memory_space<vmem>>, %arg2: memref<11x44xf32, #tpu.memory_space<vmem>>, %arg3: memref<2x11xf32, #tpu.memory_space<vmem>>, %arg4: memref<2x11xf32, #tpu.memory_space<vmem>>, %arg5: memref<1x2x11xf32, #tpu.memory_space<vmem>>, %arg6: memref<2x11xf32, #tpu.memory_space<vmem>>, %arg7: memref<2x11xf32, #tpu.memory_space<vmem>>) attributes {dimension_semantics = [#tpu.dimension_semantics<arbitrary>], iteration_bounds = array<i64: 8>, scalar_prefetch = 0 : i64, scratch_operands = 0 : i64, tpu.core_type = #tpu.core_type<tc>, window_params = [{transform_indices = @transform_0, window_bounds = array<i64: 1, 2, 44>}, {pipeline_mode = #tpu.pipeline_mode<synchronous>, transform_indices = @transform_1, window_bounds = array<i64: 11, 44>}, {pipeline_mode = #tpu.pipeline_mode<synchronous>, transform_indices = @transform_2, window_bounds = array<i64: 2, 11>}, {pipeline_mode = #tpu.pipeline_mode<synchronous>, transform_indices = @transform_3, window_bounds = array<i64: 2, 11>}, {transform_indices = @transform_4, window_bounds = array<i64: 1, 2, 11>}, {pipeline_mode = #tpu.pipeline_mode<synchronous>, transform_indices = @transform_5, window_bounds = array<i64: 2, 11>}, {pipeline_mode = #tpu.pipeline_mode<synchronous>, transform_indices = @transform_6, window_bounds = array<i64: 2, 11>}]} {
    %c0_i32 = arith.constant 0 : i32
    %0 = arith.cmpi eq, %arg0, %c0_i32 : i32
    %1 = arith.extui %0 : i1 to i32
    %c0_i32_0 = arith.constant 0 : i32
    %2 = arith.cmpi ne, %1, %c0_i32_0 : i32
    scf.if %2 {
      %c0_25 = arith.constant 0 : index
      %c0_26 = arith.constant 0 : index
      %46 = vector.load %arg3[%c0_25, %c0_26] : memref<2x11xf32, #tpu.memory_space<vmem>>, vector<2x11xf32>
      %c0_27 = arith.constant 0 : index
      %c0_28 = arith.constant 0 : index
      %47 = vector.load %arg6[%c0_27, %c0_28] : memref<2x11xf32, #tpu.memory_space<vmem>>, vector<2x11xf32>
      tpu.vector_store %arg6[%c0_27, %c0_28], %46 {strides = array<i32>} : memref<2x11xf32, #tpu.memory_space<vmem>>, vector<2x11xf32>,
      %c0_29 = arith.constant 0 : index
      %c0_30 = arith.constant 0 : index
      %48 = vector.load %arg4[%c0_29, %c0_30] : memref<2x11xf32, #tpu.memory_space<vmem>>, vector<2x11xf32>
      %c0_31 = arith.constant 0 : index
      %c0_32 = arith.constant 0 : index
      %49 = vector.load %arg7[%c0_31, %c0_32] : memref<2x11xf32, #tpu.memory_space<vmem>>, vector<2x11xf32>
      tpu.vector_store %arg7[%c0_31, %c0_32], %48 {strides = array<i32>} : memref<2x11xf32, #tpu.memory_space<vmem>>, vector<2x11xf32>,
    } else {
    }
    %c0 = arith.constant 0 : index
    %c0_1 = arith.constant 0 : index
    %3 = vector.load %arg6[%c0, %c0_1] : memref<2x11xf32, #tpu.memory_space<vmem>>, vector<2x11xf32>
    %c0_2 = arith.constant 0 : index
    %c0_3 = arith.constant 0 : index
    %4 = vector.load %arg7[%c0_2, %c0_3] : memref<2x11xf32, #tpu.memory_space<vmem>>, vector<2x11xf32>
    %c0_4 = arith.constant 0 : index
    %c0_5 = arith.constant 0 : index
    %c0_6 = arith.constant 0 : index
    %5 = vector.load %arg1[%c0_4, %c0_5, %c0_6] : memref<1x2x44xf32, #tpu.memory_space<vmem>>, vector<1x2x44xf32>
    %6 = vector.shape_cast %5 : vector<1x2x44xf32> to vector<2x44xf32>
    %c0_7 = arith.constant 0 : index
    %c0_8 = arith.constant 0 : index
    %7 = vector.load %arg2[%c0_7, %c0_8] : memref<11x44xf32, #tpu.memory_space<vmem>>, vector<11x44xf32>
    %cst = arith.constant dense<0.000000e+00> : vector<2x44xf32>
    %8 = tpu.matmul %3, %7, %cst {dimension_numbers = #tpu.dot_dimension_numbers<[1], [0], [0], [1], [0, 0, 1, 1], [], []>} : vector<2x11xf32>, vector<11x44xf32>, vector<2x44xf32> -> vector<2x44xf32>
    %9 = arith.addf %6, %8 : vector<2x44xf32>
    %10 = vector.extract_strided_slice %9 {offsets = [0, 0], sizes = [2, 11], strides = [1, 1]} : vector<2x44xf32> to vector<2x11xf32>
    %cst_9 = arith.constant 0.000000e+00 : f32
    %11 = vector.broadcast %cst_9 : f32 to vector<2x11xf32>
    %12 = arith.subf %11, %10 : vector<2x11xf32>
    %13 = math.exp %12 : vector<2x11xf32>
    %cst_10 = arith.constant 1.000000e+00 : f32
    %14 = vector.broadcast %cst_10 : f32 to vector<2x11xf32>
    %15 = arith.addf %14, %13 : vector<2x11xf32>
    %cst_11 = arith.constant 1.000000e+00 : f32
    %16 = vector.broadcast %cst_11 : f32 to vector<2x11xf32>
    %17 = arith.divf %16, %15 : vector<2x11xf32>
    %18 = vector.extract_strided_slice %9 {offsets = [0, 11], sizes = [2, 11], strides = [1, 1]} : vector<2x44xf32> to vector<2x11xf32>
    %cst_12 = arith.constant 0.000000e+00 : f32
    %19 = vector.broadcast %cst_12 : f32 to vector<2x11xf32>
    %20 = arith.subf %19, %18 : vector<2x11xf32>
    %21 = math.exp %20 : vector<2x11xf32>
    %cst_13 = arith.constant 1.000000e+00 : f32
    %22 = vector.broadcast %cst_13 : f32 to vector<2x11xf32>
    %23 = arith.addf %22, %21 : vector<2x11xf32>
    %cst_14 = arith.constant 1.000000e+00 : f32
    %24 = vector.broadcast %cst_14 : f32 to vector<2x11xf32>
    %25 = arith.divf %24, %23 : vector<2x11xf32>
    %26 = vector.extract_strided_slice %9 {offsets = [0, 22], sizes = [2, 11], strides = [1, 1]} : vector<2x44xf32> to vector<2x11xf32>
    %27 = math.tanh %26 : vector<2x11xf32>
    %28 = vector.extract_strided_slice %9 {offsets = [0, 33], sizes = [2, 11], strides = [1, 1]} : vector<2x44xf32> to vector<2x11xf32>
    %cst_15 = arith.constant 0.000000e+00 : f32
    %29 = vector.broadcast %cst_15 : f32 to vector<2x11xf32>
    %30 = arith.subf %29, %28 : vector<2x11xf32>
    %31 = math.exp %30 : vector<2x11xf32>
    %cst_16 = arith.constant 1.000000e+00 : f32
    %32 = vector.broadcast %cst_16 : f32 to vector<2x11xf32>
    %33 = arith.addf %32, %31 : vector<2x11xf32>
    %cst_17 = arith.constant 1.000000e+00 : f32
    %34 = vector.broadcast %cst_17 : f32 to vector<2x11xf32>
    %35 = arith.divf %34, %33 : vector<2x11xf32>
    %36 = arith.mulf %25, %4 : vector<2x11xf32>
    %37 = arith.mulf %17, %27 : vector<2x11xf32>
    %38 = arith.addf %36, %37 : vector<2x11xf32>
    %39 = math.tanh %38 : vector<2x11xf32>
    %40 = arith.mulf %35, %39 : vector<2x11xf32>
    %c0_18 = arith.constant 0 : index
    %c0_19 = arith.constant 0 : index
    %41 = vector.load %arg6[%c0_18, %c0_19] : memref<2x11xf32, #tpu.memory_space<vmem>>, vector<2x11xf32>
    tpu.vector_store %arg6[%c0_18, %c0_19], %40 {strides = array<i32>} : memref<2x11xf32, #tpu.memory_space<vmem>>, vector<2x11xf32>,
    %c0_20 = arith.constant 0 : index
    %c0_21 = arith.constant 0 : index
    %42 = vector.load %arg7[%c0_20, %c0_21] : memref<2x11xf32, #tpu.memory_space<vmem>>, vector<2x11xf32>
    tpu.vector_store %arg7[%c0_20, %c0_21], %38 {strides = array<i32>} : memref<2x11xf32, #tpu.memory_space<vmem>>, vector<2x11xf32>,
    %c0_22 = arith.constant 0 : index
    %c0_23 = arith.constant 0 : index
    %c0_24 = arith.constant 0 : index
    %43 = vector.load %arg5[%c0_22, %c0_23, %c0_24] : memref<1x2x11xf32, #tpu.memory_space<vmem>>, vector<1x2x11xf32>
    %44 = vector.shape_cast %43 : vector<1x2x11xf32> to vector<2x11xf32>
    %45 = vector.shape_cast %40 : vector<2x11xf32> to vector<1x2x11xf32>
    tpu.vector_store %arg5[%c0_22, %c0_23, %c0_24], %45 {strides = array<i32>} : memref<1x2x11xf32, #tpu.memory_space<vmem>>, vector<1x2x11xf32>,
    return
  }
  func.func @transform_0(%arg0: i32) -> (i32, i32, i32) {
    %c0_i32 = arith.constant 0 : i32
    %c0_i32_0 = arith.constant 0 : i32
    %c0_i32_1 = arith.constant 0 : i32
    return %arg0, %c0_i32, %c0_i32_0 : i32, i32, i32
  }
  func.func @transform_1(%arg0: i32) -> (i32, i32) {
    %c0_i32 = arith.constant 0 : i32
    %c0_i32_0 = arith.constant 0 : i32
    %c0_i32_1 = arith.constant 0 : i32
    return %c0_i32, %c0_i32_0 : i32, i32
  }
  func.func @transform_2(%arg0: i32) -> (i32, i32) {
    %c0_i32 = arith.constant 0 : i32
    %c0_i32_0 = arith.constant 0 : i32
    %c0_i32_1 = arith.constant 0 : i32
    return %c0_i32, %c0_i32_0 : i32, i32
  }
  func.func @transform_3(%arg0: i32) -> (i32, i32) {
    %c0_i32 = arith.constant 0 : i32
    %c0_i32_0 = arith.constant 0 : i32
    %c0_i32_1 = arith.constant 0 : i32
    return %c0_i32, %c0_i32_0 : i32, i32
  }
  func.func @transform_4(%arg0: i32) -> (i32, i32, i32) {
    %c0_i32 = arith.constant 0 : i32
    %c0_i32_0 = arith.constant 0 : i32
    %c0_i32_1 = arith.constant 0 : i32
    return %arg0, %c0_i32, %c0_i32_0 : i32, i32, i32
  }
  func.func @transform_5(%arg0: i32) -> (i32, i32) {
    %c0_i32 = arith.constant 0 : i32
    %c0_i32_0 = arith.constant 0 : i32
    %c0_i32_1 = arith.constant 0 : i32
    return %c0_i32, %c0_i32_0 : i32, i32
  }
  func.func @transform_6(%arg0: i32) -> (i32, i32) {
    %c0_i32 = arith.constant 0 : i32
    %c0_i32_0 = arith.constant 0 : i32
    %c0_i32_1 = arith.constant 0 : i32
    return %c0_i32, %c0_i32_0 : i32, i32
  }
}

module attributes {stable_mosaic.version = 11 : i64} {
  func.func @_linear_kernel(%arg0: i32, %arg1: memref<16x11xf32, #tpu.memory_space<vmem>>, %arg2: memref<11x56xf32, #tpu.memory_space<vmem>>, %arg3: memref<1x56xf32, #tpu.memory_space<vmem>>, %arg4: memref<16x56xf32, #tpu.memory_space<vmem>>) attributes {dimension_semantics = [#tpu.dimension_semantics<parallel>], iteration_bounds = array<i64: 1>, scalar_prefetch = 0 : i64, scratch_operands = 0 : i64, tpu.core_type = #tpu.core_type<tc>, window_params = [{transform_indices = @transform_0, window_bounds = array<i64: 16, 11>}, {pipeline_mode = #tpu.pipeline_mode<synchronous>, transform_indices = @transform_1, window_bounds = array<i64: 11, 56>}, {pipeline_mode = #tpu.pipeline_mode<synchronous>, transform_indices = @transform_2, window_bounds = array<i64: 1, 56>}, {transform_indices = @transform_3, window_bounds = array<i64: 16, 56>}]} {
    %c0 = arith.constant 0 : index
    %c0_0 = arith.constant 0 : index
    %0 = vector.load %arg1[%c0, %c0_0] : memref<16x11xf32, #tpu.memory_space<vmem>>, vector<16x11xf32>
    %c0_1 = arith.constant 0 : index
    %c0_2 = arith.constant 0 : index
    %1 = vector.load %arg2[%c0_1, %c0_2] : memref<11x56xf32, #tpu.memory_space<vmem>>, vector<11x56xf32>
    %c0_3 = arith.constant 0 : index
    %c0_4 = arith.constant 0 : index
    %2 = vector.load %arg3[%c0_3, %c0_4] : memref<1x56xf32, #tpu.memory_space<vmem>>, vector<1x56xf32>
    %cst = arith.constant dense<0.000000e+00> : vector<16x56xf32>
    %3 = tpu.matmul %0, %1, %cst {dimension_numbers = #tpu.dot_dimension_numbers<[1], [0], [0], [1], [0, 0, 1, 1], [], []>} : vector<16x11xf32>, vector<11x56xf32>, vector<16x56xf32> -> vector<16x56xf32>
    %4 = vector.broadcast %2 : vector<1x56xf32> to vector<16x56xf32>
    %5 = arith.addf %3, %4 : vector<16x56xf32>
    %c0_5 = arith.constant 0 : index
    %c0_6 = arith.constant 0 : index
    %6 = vector.load %arg4[%c0_5, %c0_6] : memref<16x56xf32, #tpu.memory_space<vmem>>, vector<16x56xf32>
    tpu.vector_store %arg4[%c0_5, %c0_6], %5 {strides = array<i32>} : memref<16x56xf32, #tpu.memory_space<vmem>>, vector<16x56xf32>,
    return
  }
  func.func @transform_0(%arg0: i32) -> (i32, i32) {
    %c0_i32 = arith.constant 0 : i32
    %c0_i32_0 = arith.constant 0 : i32
    return %arg0, %c0_i32 : i32, i32
  }
  func.func @transform_1(%arg0: i32) -> (i32, i32) {
    %c0_i32 = arith.constant 0 : i32
    %c0_i32_0 = arith.constant 0 : i32
    %c0_i32_1 = arith.constant 0 : i32
    return %c0_i32, %c0_i32_0 : i32, i32
  }
  func.func @transform_2(%arg0: i32) -> (i32, i32) {
    %c0_i32 = arith.constant 0 : i32
    %c0_i32_0 = arith.constant 0 : i32
    %c0_i32_1 = arith.constant 0 : i32
    return %c0_i32, %c0_i32_0 : i32, i32
  }
  func.func @transform_3(%arg0: i32) -> (i32, i32) {
    %c0_i32 = arith.constant 0 : i32
    %c0_i32_0 = arith.constant 0 : i32
    return %arg0, %c0_i32 : i32, i32
  }
}

module attributes {stable_mosaic.version = 11 : i64} {
  func.func @_linear_kernel(%arg0: i32, %arg1: memref<16x14xf32, #tpu.memory_space<vmem>>, %arg2: memref<14x64xf32, #tpu.memory_space<vmem>>, %arg3: memref<1x64xf32, #tpu.memory_space<vmem>>, %arg4: memref<16x64xf32, #tpu.memory_space<vmem>>) attributes {dimension_semantics = [#tpu.dimension_semantics<parallel>], iteration_bounds = array<i64: 1>, scalar_prefetch = 0 : i64, scratch_operands = 0 : i64, tpu.core_type = #tpu.core_type<tc>, window_params = [{transform_indices = @transform_0, window_bounds = array<i64: 16, 14>}, {pipeline_mode = #tpu.pipeline_mode<synchronous>, transform_indices = @transform_1, window_bounds = array<i64: 14, 64>}, {pipeline_mode = #tpu.pipeline_mode<synchronous>, transform_indices = @transform_2, window_bounds = array<i64: 1, 64>}, {transform_indices = @transform_3, window_bounds = array<i64: 16, 64>}]} {
    %c0 = arith.constant 0 : index
    %c0_0 = arith.constant 0 : index
    %0 = vector.load %arg1[%c0, %c0_0] : memref<16x14xf32, #tpu.memory_space<vmem>>, vector<16x14xf32>
    %c0_1 = arith.constant 0 : index
    %c0_2 = arith.constant 0 : index
    %1 = vector.load %arg2[%c0_1, %c0_2] : memref<14x64xf32, #tpu.memory_space<vmem>>, vector<14x64xf32>
    %c0_3 = arith.constant 0 : index
    %c0_4 = arith.constant 0 : index
    %2 = vector.load %arg3[%c0_3, %c0_4] : memref<1x64xf32, #tpu.memory_space<vmem>>, vector<1x64xf32>
    %cst = arith.constant dense<0.000000e+00> : vector<16x64xf32>
    %3 = tpu.matmul %0, %1, %cst {dimension_numbers = #tpu.dot_dimension_numbers<[1], [0], [0], [1], [0, 0, 1, 1], [], []>} : vector<16x14xf32>, vector<14x64xf32>, vector<16x64xf32> -> vector<16x64xf32>
    %4 = vector.broadcast %2 : vector<1x64xf32> to vector<16x64xf32>
    %5 = arith.addf %3, %4 : vector<16x64xf32>
    %c0_5 = arith.constant 0 : index
    %c0_6 = arith.constant 0 : index
    %6 = vector.load %arg4[%c0_5, %c0_6] : memref<16x64xf32, #tpu.memory_space<vmem>>, vector<16x64xf32>
    tpu.vector_store %arg4[%c0_5, %c0_6], %5 {strides = array<i32>} : memref<16x64xf32, #tpu.memory_space<vmem>>, vector<16x64xf32>,
    return
  }
  func.func @transform_0(%arg0: i32) -> (i32, i32) {
    %c0_i32 = arith.constant 0 : i32
    %c0_i32_0 = arith.constant 0 : i32
    return %arg0, %c0_i32 : i32, i32
  }
  func.func @transform_1(%arg0: i32) -> (i32, i32) {
    %c0_i32 = arith.constant 0 : i32
    %c0_i32_0 = arith.constant 0 : i32
    %c0_i32_1 = arith.constant 0 : i32
    return %c0_i32, %c0_i32_0 : i32, i32
  }
  func.func @transform_2(%arg0: i32) -> (i32, i32) {
    %c0_i32 = arith.constant 0 : i32
    %c0_i32_0 = arith.constant 0 : i32
    %c0_i32_1 = arith.constant 0 : i32
    return %c0_i32, %c0_i32_0 : i32, i32
  }
  func.func @transform_3(%arg0: i32) -> (i32, i32) {
    %c0_i32 = arith.constant 0 : i32
    %c0_i32_0 = arith.constant 0 : i32
    return %arg0, %c0_i32 : i32, i32
  }
}

module attributes {stable_mosaic.version = 11 : i64} {
  func.func @_lstm_recurrence_kernel(%arg0: i32, %arg1: memref<1x2x56xf32, #tpu.memory_space<vmem>>, %arg2: memref<14x56xf32, #tpu.memory_space<vmem>>, %arg3: memref<2x14xf32, #tpu.memory_space<vmem>>, %arg4: memref<2x14xf32, #tpu.memory_space<vmem>>, %arg5: memref<1x2x14xf32, #tpu.memory_space<vmem>>, %arg6: memref<2x14xf32, #tpu.memory_space<vmem>>, %arg7: memref<2x14xf32, #tpu.memory_space<vmem>>) attributes {dimension_semantics = [#tpu.dimension_semantics<arbitrary>], iteration_bounds = array<i64: 8>, scalar_prefetch = 0 : i64, scratch_operands = 0 : i64, tpu.core_type = #tpu.core_type<tc>, window_params = [{transform_indices = @transform_0, window_bounds = array<i64: 1, 2, 56>}, {pipeline_mode = #tpu.pipeline_mode<synchronous>, transform_indices = @transform_1, window_bounds = array<i64: 14, 56>}, {pipeline_mode = #tpu.pipeline_mode<synchronous>, transform_indices = @transform_2, window_bounds = array<i64: 2, 14>}, {pipeline_mode = #tpu.pipeline_mode<synchronous>, transform_indices = @transform_3, window_bounds = array<i64: 2, 14>}, {transform_indices = @transform_4, window_bounds = array<i64: 1, 2, 14>}, {pipeline_mode = #tpu.pipeline_mode<synchronous>, transform_indices = @transform_5, window_bounds = array<i64: 2, 14>}, {pipeline_mode = #tpu.pipeline_mode<synchronous>, transform_indices = @transform_6, window_bounds = array<i64: 2, 14>}]} {
    %c0_i32 = arith.constant 0 : i32
    %0 = arith.cmpi eq, %arg0, %c0_i32 : i32
    %1 = arith.extui %0 : i1 to i32
    %c0_i32_0 = arith.constant 0 : i32
    %2 = arith.cmpi ne, %1, %c0_i32_0 : i32
    scf.if %2 {
      %c0_25 = arith.constant 0 : index
      %c0_26 = arith.constant 0 : index
      %46 = vector.load %arg3[%c0_25, %c0_26] : memref<2x14xf32, #tpu.memory_space<vmem>>, vector<2x14xf32>
      %c0_27 = arith.constant 0 : index
      %c0_28 = arith.constant 0 : index
      %47 = vector.load %arg6[%c0_27, %c0_28] : memref<2x14xf32, #tpu.memory_space<vmem>>, vector<2x14xf32>
      tpu.vector_store %arg6[%c0_27, %c0_28], %46 {strides = array<i32>} : memref<2x14xf32, #tpu.memory_space<vmem>>, vector<2x14xf32>,
      %c0_29 = arith.constant 0 : index
      %c0_30 = arith.constant 0 : index
      %48 = vector.load %arg4[%c0_29, %c0_30] : memref<2x14xf32, #tpu.memory_space<vmem>>, vector<2x14xf32>
      %c0_31 = arith.constant 0 : index
      %c0_32 = arith.constant 0 : index
      %49 = vector.load %arg7[%c0_31, %c0_32] : memref<2x14xf32, #tpu.memory_space<vmem>>, vector<2x14xf32>
      tpu.vector_store %arg7[%c0_31, %c0_32], %48 {strides = array<i32>} : memref<2x14xf32, #tpu.memory_space<vmem>>, vector<2x14xf32>,
    } else {
    }
    %c0 = arith.constant 0 : index
    %c0_1 = arith.constant 0 : index
    %3 = vector.load %arg6[%c0, %c0_1] : memref<2x14xf32, #tpu.memory_space<vmem>>, vector<2x14xf32>
    %c0_2 = arith.constant 0 : index
    %c0_3 = arith.constant 0 : index
    %4 = vector.load %arg7[%c0_2, %c0_3] : memref<2x14xf32, #tpu.memory_space<vmem>>, vector<2x14xf32>
    %c0_4 = arith.constant 0 : index
    %c0_5 = arith.constant 0 : index
    %c0_6 = arith.constant 0 : index
    %5 = vector.load %arg1[%c0_4, %c0_5, %c0_6] : memref<1x2x56xf32, #tpu.memory_space<vmem>>, vector<1x2x56xf32>
    %6 = vector.shape_cast %5 : vector<1x2x56xf32> to vector<2x56xf32>
    %c0_7 = arith.constant 0 : index
    %c0_8 = arith.constant 0 : index
    %7 = vector.load %arg2[%c0_7, %c0_8] : memref<14x56xf32, #tpu.memory_space<vmem>>, vector<14x56xf32>
    %cst = arith.constant dense<0.000000e+00> : vector<2x56xf32>
    %8 = tpu.matmul %3, %7, %cst {dimension_numbers = #tpu.dot_dimension_numbers<[1], [0], [0], [1], [0, 0, 1, 1], [], []>} : vector<2x14xf32>, vector<14x56xf32>, vector<2x56xf32> -> vector<2x56xf32>
    %9 = arith.addf %6, %8 : vector<2x56xf32>
    %10 = vector.extract_strided_slice %9 {offsets = [0, 0], sizes = [2, 14], strides = [1, 1]} : vector<2x56xf32> to vector<2x14xf32>
    %cst_9 = arith.constant 0.000000e+00 : f32
    %11 = vector.broadcast %cst_9 : f32 to vector<2x14xf32>
    %12 = arith.subf %11, %10 : vector<2x14xf32>
    %13 = math.exp %12 : vector<2x14xf32>
    %cst_10 = arith.constant 1.000000e+00 : f32
    %14 = vector.broadcast %cst_10 : f32 to vector<2x14xf32>
    %15 = arith.addf %14, %13 : vector<2x14xf32>
    %cst_11 = arith.constant 1.000000e+00 : f32
    %16 = vector.broadcast %cst_11 : f32 to vector<2x14xf32>
    %17 = arith.divf %16, %15 : vector<2x14xf32>
    %18 = vector.extract_strided_slice %9 {offsets = [0, 14], sizes = [2, 14], strides = [1, 1]} : vector<2x56xf32> to vector<2x14xf32>
    %cst_12 = arith.constant 0.000000e+00 : f32
    %19 = vector.broadcast %cst_12 : f32 to vector<2x14xf32>
    %20 = arith.subf %19, %18 : vector<2x14xf32>
    %21 = math.exp %20 : vector<2x14xf32>
    %cst_13 = arith.constant 1.000000e+00 : f32
    %22 = vector.broadcast %cst_13 : f32 to vector<2x14xf32>
    %23 = arith.addf %22, %21 : vector<2x14xf32>
    %cst_14 = arith.constant 1.000000e+00 : f32
    %24 = vector.broadcast %cst_14 : f32 to vector<2x14xf32>
    %25 = arith.divf %24, %23 : vector<2x14xf32>
    %26 = vector.extract_strided_slice %9 {offsets = [0, 28], sizes = [2, 14], strides = [1, 1]} : vector<2x56xf32> to vector<2x14xf32>
    %27 = math.tanh %26 : vector<2x14xf32>
    %28 = vector.extract_strided_slice %9 {offsets = [0, 42], sizes = [2, 14], strides = [1, 1]} : vector<2x56xf32> to vector<2x14xf32>
    %cst_15 = arith.constant 0.000000e+00 : f32
    %29 = vector.broadcast %cst_15 : f32 to vector<2x14xf32>
    %30 = arith.subf %29, %28 : vector<2x14xf32>
    %31 = math.exp %30 : vector<2x14xf32>
    %cst_16 = arith.constant 1.000000e+00 : f32
    %32 = vector.broadcast %cst_16 : f32 to vector<2x14xf32>
    %33 = arith.addf %32, %31 : vector<2x14xf32>
    %cst_17 = arith.constant 1.000000e+00 : f32
    %34 = vector.broadcast %cst_17 : f32 to vector<2x14xf32>
    %35 = arith.divf %34, %33 : vector<2x14xf32>
    %36 = arith.mulf %25, %4 : vector<2x14xf32>
    %37 = arith.mulf %17, %27 : vector<2x14xf32>
    %38 = arith.addf %36, %37 : vector<2x14xf32>
    %39 = math.tanh %38 : vector<2x14xf32>
    %40 = arith.mulf %35, %39 : vector<2x14xf32>
    %c0_18 = arith.constant 0 : index
    %c0_19 = arith.constant 0 : index
    %41 = vector.load %arg6[%c0_18, %c0_19] : memref<2x14xf32, #tpu.memory_space<vmem>>, vector<2x14xf32>
    tpu.vector_store %arg6[%c0_18, %c0_19], %40 {strides = array<i32>} : memref<2x14xf32, #tpu.memory_space<vmem>>, vector<2x14xf32>,
    %c0_20 = arith.constant 0 : index
    %c0_21 = arith.constant 0 : index
    %42 = vector.load %arg7[%c0_20, %c0_21] : memref<2x14xf32, #tpu.memory_space<vmem>>, vector<2x14xf32>
    tpu.vector_store %arg7[%c0_20, %c0_21], %38 {strides = array<i32>} : memref<2x14xf32, #tpu.memory_space<vmem>>, vector<2x14xf32>,
    %c0_22 = arith.constant 0 : index
    %c0_23 = arith.constant 0 : index
    %c0_24 = arith.constant 0 : index
    %43 = vector.load %arg5[%c0_22, %c0_23, %c0_24] : memref<1x2x14xf32, #tpu.memory_space<vmem>>, vector<1x2x14xf32>
    %44 = vector.shape_cast %43 : vector<1x2x14xf32> to vector<2x14xf32>
    %45 = vector.shape_cast %40 : vector<2x14xf32> to vector<1x2x14xf32>
    tpu.vector_store %arg5[%c0_22, %c0_23, %c0_24], %45 {strides = array<i32>} : memref<1x2x14xf32, #tpu.memory_space<vmem>>, vector<1x2x14xf32>,
    return
  }
  func.func @transform_0(%arg0: i32) -> (i32, i32, i32) {
    %c0_i32 = arith.constant 0 : i32
    %c0_i32_0 = arith.constant 0 : i32
    %c0_i32_1 = arith.constant 0 : i32
    return %arg0, %c0_i32, %c0_i32_0 : i32, i32, i32
  }
  func.func @transform_1(%arg0: i32) -> (i32, i32) {
    %c0_i32 = arith.constant 0 : i32
    %c0_i32_0 = arith.constant 0 : i32
    %c0_i32_1 = arith.constant 0 : i32
    return %c0_i32, %c0_i32_0 : i32, i32
  }
  func.func @transform_2(%arg0: i32) -> (i32, i32) {
    %c0_i32 = arith.constant 0 : i32
    %c0_i32_0 = arith.constant 0 : i32
    %c0_i32_1 = arith.constant 0 : i32
    return %c0_i32, %c0_i32_0 : i32, i32
  }
  func.func @transform_3(%arg0: i32) -> (i32, i32) {
    %c0_i32 = arith.constant 0 : i32
    %c0_i32_0 = arith.constant 0 : i32
    %c0_i32_1 = arith.constant 0 : i32
    return %c0_i32, %c0_i32_0 : i32, i32
  }
  func.func @transform_4(%arg0: i32) -> (i32, i32, i32) {
    %c0_i32 = arith.constant 0 : i32
    %c0_i32_0 = arith.constant 0 : i32
    %c0_i32_1 = arith.constant 0 : i32
    return %arg0, %c0_i32, %c0_i32_0 : i32, i32, i32
  }
  func.func @transform_5(%arg0: i32) -> (i32, i32) {
    %c0_i32 = arith.constant 0 : i32
    %c0_i32_0 = arith.constant 0 : i32
    %c0_i32_1 = arith.constant 0 : i32
    return %c0_i32, %c0_i32_0 : i32, i32
  }
  func.func @transform_6(%arg0: i32) -> (i32, i32) {
    %c0_i32 = arith.constant 0 : i32
    %c0_i32_0 = arith.constant 0 : i32
    %c0_i32_1 = arith.constant 0 : i32
    return %c0_i32, %c0_i32_0 : i32, i32
  }
}

module attributes {stable_mosaic.version = 11 : i64} {
  func.func @_lstm_recurrence_kernel(%arg0: i32, %arg1: memref<1x2x64xf32, #tpu.memory_space<vmem>>, %arg2: memref<16x64xf32, #tpu.memory_space<vmem>>, %arg3: memref<2x16xf32, #tpu.memory_space<vmem>>, %arg4: memref<2x16xf32, #tpu.memory_space<vmem>>, %arg5: memref<1x2x16xf32, #tpu.memory_space<vmem>>, %arg6: memref<2x16xf32, #tpu.memory_space<vmem>>, %arg7: memref<2x16xf32, #tpu.memory_space<vmem>>) attributes {dimension_semantics = [#tpu.dimension_semantics<arbitrary>], iteration_bounds = array<i64: 8>, scalar_prefetch = 0 : i64, scratch_operands = 0 : i64, tpu.core_type = #tpu.core_type<tc>, window_params = [{transform_indices = @transform_0, window_bounds = array<i64: 1, 2, 64>}, {pipeline_mode = #tpu.pipeline_mode<synchronous>, transform_indices = @transform_1, window_bounds = array<i64: 16, 64>}, {pipeline_mode = #tpu.pipeline_mode<synchronous>, transform_indices = @transform_2, window_bounds = array<i64: 2, 16>}, {pipeline_mode = #tpu.pipeline_mode<synchronous>, transform_indices = @transform_3, window_bounds = array<i64: 2, 16>}, {transform_indices = @transform_4, window_bounds = array<i64: 1, 2, 16>}, {pipeline_mode = #tpu.pipeline_mode<synchronous>, transform_indices = @transform_5, window_bounds = array<i64: 2, 16>}, {pipeline_mode = #tpu.pipeline_mode<synchronous>, transform_indices = @transform_6, window_bounds = array<i64: 2, 16>}]} {
    %c0_i32 = arith.constant 0 : i32
    %0 = arith.cmpi eq, %arg0, %c0_i32 : i32
    %1 = arith.extui %0 : i1 to i32
    %c0_i32_0 = arith.constant 0 : i32
    %2 = arith.cmpi ne, %1, %c0_i32_0 : i32
    scf.if %2 {
      %c0_25 = arith.constant 0 : index
      %c0_26 = arith.constant 0 : index
      %46 = vector.load %arg3[%c0_25, %c0_26] : memref<2x16xf32, #tpu.memory_space<vmem>>, vector<2x16xf32>
      %c0_27 = arith.constant 0 : index
      %c0_28 = arith.constant 0 : index
      %47 = vector.load %arg6[%c0_27, %c0_28] : memref<2x16xf32, #tpu.memory_space<vmem>>, vector<2x16xf32>
      tpu.vector_store %arg6[%c0_27, %c0_28], %46 {strides = array<i32>} : memref<2x16xf32, #tpu.memory_space<vmem>>, vector<2x16xf32>,
      %c0_29 = arith.constant 0 : index
      %c0_30 = arith.constant 0 : index
      %48 = vector.load %arg4[%c0_29, %c0_30] : memref<2x16xf32, #tpu.memory_space<vmem>>, vector<2x16xf32>
      %c0_31 = arith.constant 0 : index
      %c0_32 = arith.constant 0 : index
      %49 = vector.load %arg7[%c0_31, %c0_32] : memref<2x16xf32, #tpu.memory_space<vmem>>, vector<2x16xf32>
      tpu.vector_store %arg7[%c0_31, %c0_32], %48 {strides = array<i32>} : memref<2x16xf32, #tpu.memory_space<vmem>>, vector<2x16xf32>,
    } else {
    }
    %c0 = arith.constant 0 : index
    %c0_1 = arith.constant 0 : index
    %3 = vector.load %arg6[%c0, %c0_1] : memref<2x16xf32, #tpu.memory_space<vmem>>, vector<2x16xf32>
    %c0_2 = arith.constant 0 : index
    %c0_3 = arith.constant 0 : index
    %4 = vector.load %arg7[%c0_2, %c0_3] : memref<2x16xf32, #tpu.memory_space<vmem>>, vector<2x16xf32>
    %c0_4 = arith.constant 0 : index
    %c0_5 = arith.constant 0 : index
    %c0_6 = arith.constant 0 : index
    %5 = vector.load %arg1[%c0_4, %c0_5, %c0_6] : memref<1x2x64xf32, #tpu.memory_space<vmem>>, vector<1x2x64xf32>
    %6 = vector.shape_cast %5 : vector<1x2x64xf32> to vector<2x64xf32>
    %c0_7 = arith.constant 0 : index
    %c0_8 = arith.constant 0 : index
    %7 = vector.load %arg2[%c0_7, %c0_8] : memref<16x64xf32, #tpu.memory_space<vmem>>, vector<16x64xf32>
    %cst = arith.constant dense<0.000000e+00> : vector<2x64xf32>
    %8 = tpu.matmul %3, %7, %cst {dimension_numbers = #tpu.dot_dimension_numbers<[1], [0], [0], [1], [0, 0, 1, 1], [], []>} : vector<2x16xf32>, vector<16x64xf32>, vector<2x64xf32> -> vector<2x64xf32>
    %9 = arith.addf %6, %8 : vector<2x64xf32>
    %10 = vector.extract_strided_slice %9 {offsets = [0, 0], sizes = [2, 16], strides = [1, 1]} : vector<2x64xf32> to vector<2x16xf32>
    %cst_9 = arith.constant 0.000000e+00 : f32
    %11 = vector.broadcast %cst_9 : f32 to vector<2x16xf32>
    %12 = arith.subf %11, %10 : vector<2x16xf32>
    %13 = math.exp %12 : vector<2x16xf32>
    %cst_10 = arith.constant 1.000000e+00 : f32
    %14 = vector.broadcast %cst_10 : f32 to vector<2x16xf32>
    %15 = arith.addf %14, %13 : vector<2x16xf32>
    %cst_11 = arith.constant 1.000000e+00 : f32
    %16 = vector.broadcast %cst_11 : f32 to vector<2x16xf32>
    %17 = arith.divf %16, %15 : vector<2x16xf32>
    %18 = vector.extract_strided_slice %9 {offsets = [0, 16], sizes = [2, 16], strides = [1, 1]} : vector<2x64xf32> to vector<2x16xf32>
    %cst_12 = arith.constant 0.000000e+00 : f32
    %19 = vector.broadcast %cst_12 : f32 to vector<2x16xf32>
    %20 = arith.subf %19, %18 : vector<2x16xf32>
    %21 = math.exp %20 : vector<2x16xf32>
    %cst_13 = arith.constant 1.000000e+00 : f32
    %22 = vector.broadcast %cst_13 : f32 to vector<2x16xf32>
    %23 = arith.addf %22, %21 : vector<2x16xf32>
    %cst_14 = arith.constant 1.000000e+00 : f32
    %24 = vector.broadcast %cst_14 : f32 to vector<2x16xf32>
    %25 = arith.divf %24, %23 : vector<2x16xf32>
    %26 = vector.extract_strided_slice %9 {offsets = [0, 32], sizes = [2, 16], strides = [1, 1]} : vector<2x64xf32> to vector<2x16xf32>
    %27 = math.tanh %26 : vector<2x16xf32>
    %28 = vector.extract_strided_slice %9 {offsets = [0, 48], sizes = [2, 16], strides = [1, 1]} : vector<2x64xf32> to vector<2x16xf32>
    %cst_15 = arith.constant 0.000000e+00 : f32
    %29 = vector.broadcast %cst_15 : f32 to vector<2x16xf32>
    %30 = arith.subf %29, %28 : vector<2x16xf32>
    %31 = math.exp %30 : vector<2x16xf32>
    %cst_16 = arith.constant 1.000000e+00 : f32
    %32 = vector.broadcast %cst_16 : f32 to vector<2x16xf32>
    %33 = arith.addf %32, %31 : vector<2x16xf32>
    %cst_17 = arith.constant 1.000000e+00 : f32
    %34 = vector.broadcast %cst_17 : f32 to vector<2x16xf32>
    %35 = arith.divf %34, %33 : vector<2x16xf32>
    %36 = arith.mulf %25, %4 : vector<2x16xf32>
    %37 = arith.mulf %17, %27 : vector<2x16xf32>
    %38 = arith.addf %36, %37 : vector<2x16xf32>
    %39 = math.tanh %38 : vector<2x16xf32>
    %40 = arith.mulf %35, %39 : vector<2x16xf32>
    %c0_18 = arith.constant 0 : index
    %c0_19 = arith.constant 0 : index
    %41 = vector.load %arg6[%c0_18, %c0_19] : memref<2x16xf32, #tpu.memory_space<vmem>>, vector<2x16xf32>
    tpu.vector_store %arg6[%c0_18, %c0_19], %40 {strides = array<i32>} : memref<2x16xf32, #tpu.memory_space<vmem>>, vector<2x16xf32>,
    %c0_20 = arith.constant 0 : index
    %c0_21 = arith.constant 0 : index
    %42 = vector.load %arg7[%c0_20, %c0_21] : memref<2x16xf32, #tpu.memory_space<vmem>>, vector<2x16xf32>
    tpu.vector_store %arg7[%c0_20, %c0_21], %38 {strides = array<i32>} : memref<2x16xf32, #tpu.memory_space<vmem>>, vector<2x16xf32>,
    %c0_22 = arith.constant 0 : index
    %c0_23 = arith.constant 0 : index
    %c0_24 = arith.constant 0 : index
    %43 = vector.load %arg5[%c0_22, %c0_23, %c0_24] : memref<1x2x16xf32, #tpu.memory_space<vmem>>, vector<1x2x16xf32>
    %44 = vector.shape_cast %43 : vector<1x2x16xf32> to vector<2x16xf32>
    %45 = vector.shape_cast %40 : vector<2x16xf32> to vector<1x2x16xf32>
    tpu.vector_store %arg5[%c0_22, %c0_23, %c0_24], %45 {strides = array<i32>} : memref<1x2x16xf32, #tpu.memory_space<vmem>>, vector<1x2x16xf32>,
    return
  }
  func.func @transform_0(%arg0: i32) -> (i32, i32, i32) {
    %c0_i32 = arith.constant 0 : i32
    %c0_i32_0 = arith.constant 0 : i32
    %c0_i32_1 = arith.constant 0 : i32
    return %arg0, %c0_i32, %c0_i32_0 : i32, i32, i32
  }
  func.func @transform_1(%arg0: i32) -> (i32, i32) {
    %c0_i32 = arith.constant 0 : i32
    %c0_i32_0 = arith.constant 0 : i32
    %c0_i32_1 = arith.constant 0 : i32
    return %c0_i32, %c0_i32_0 : i32, i32
  }
  func.func @transform_2(%arg0: i32) -> (i32, i32) {
    %c0_i32 = arith.constant 0 : i32
    %c0_i32_0 = arith.constant 0 : i32
    %c0_i32_1 = arith.constant 0 : i32
    return %c0_i32, %c0_i32_0 : i32, i32
  }
  func.func @transform_3(%arg0: i32) -> (i32, i32) {
    %c0_i32 = arith.constant 0 : i32
    %c0_i32_0 = arith.constant 0 : i32
    %c0_i32_1 = arith.constant 0 : i32
    return %c0_i32, %c0_i32_0 : i32, i32
  }
  func.func @transform_4(%arg0: i32) -> (i32, i32, i32) {
    %c0_i32 = arith.constant 0 : i32
    %c0_i32_0 = arith.constant 0 : i32
    %c0_i32_1 = arith.constant 0 : i32
    return %arg0, %c0_i32, %c0_i32_0 : i32, i32, i32
  }
  func.func @transform_5(%arg0: i32) -> (i32, i32) {
    %c0_i32 = arith.constant 0 : i32
    %c0_i32_0 = arith.constant 0 : i32
    %c0_i32_1 = arith.constant 0 : i32
    return %c0_i32, %c0_i32_0 : i32, i32
  }
  func.func @transform_6(%arg0: i32) -> (i32, i32) {
    %c0_i32 = arith.constant 0 : i32
    %c0_i32_0 = arith.constant 0 : i32
    %c0_i32_1 = arith.constant 0 : i32
    return %c0_i32, %c0_i32_0 : i32, i32
  }
}

module attributes {stable_mosaic.version = 11 : i64} {
  func.func @_lstm_recurrence_kernel(%arg0: i32, %arg1: memref<1x2x64xf32, #tpu.memory_space<vmem>>, %arg2: memref<16x64xf32, #tpu.memory_space<vmem>>, %arg3: memref<2x16xf32, #tpu.memory_space<vmem>>, %arg4: memref<2x16xf32, #tpu.memory_space<vmem>>, %arg5: memref<1x2x16xf32, #tpu.memory_space<vmem>>, %arg6: memref<2x16xf32, #tpu.memory_space<vmem>>, %arg7: memref<2x16xf32, #tpu.memory_space<vmem>>) attributes {dimension_semantics = [#tpu.dimension_semantics<arbitrary>], iteration_bounds = array<i64: 8>, scalar_prefetch = 0 : i64, scratch_operands = 0 : i64, tpu.core_type = #tpu.core_type<tc>, window_params = [{transform_indices = @transform_0, window_bounds = array<i64: 1, 2, 64>}, {pipeline_mode = #tpu.pipeline_mode<synchronous>, transform_indices = @transform_1, window_bounds = array<i64: 16, 64>}, {pipeline_mode = #tpu.pipeline_mode<synchronous>, transform_indices = @transform_2, window_bounds = array<i64: 2, 16>}, {pipeline_mode = #tpu.pipeline_mode<synchronous>, transform_indices = @transform_3, window_bounds = array<i64: 2, 16>}, {transform_indices = @transform_4, window_bounds = array<i64: 1, 2, 16>}, {pipeline_mode = #tpu.pipeline_mode<synchronous>, transform_indices = @transform_5, window_bounds = array<i64: 2, 16>}, {pipeline_mode = #tpu.pipeline_mode<synchronous>, transform_indices = @transform_6, window_bounds = array<i64: 2, 16>}]} {
    %c0_i32 = arith.constant 0 : i32
    %0 = arith.cmpi eq, %arg0, %c0_i32 : i32
    %1 = arith.extui %0 : i1 to i32
    %c0_i32_0 = arith.constant 0 : i32
    %2 = arith.cmpi ne, %1, %c0_i32_0 : i32
    scf.if %2 {
      %c0_25 = arith.constant 0 : index
      %c0_26 = arith.constant 0 : index
      %46 = vector.load %arg3[%c0_25, %c0_26] : memref<2x16xf32, #tpu.memory_space<vmem>>, vector<2x16xf32>
      %c0_27 = arith.constant 0 : index
      %c0_28 = arith.constant 0 : index
      %47 = vector.load %arg6[%c0_27, %c0_28] : memref<2x16xf32, #tpu.memory_space<vmem>>, vector<2x16xf32>
      tpu.vector_store %arg6[%c0_27, %c0_28], %46 {strides = array<i32>} : memref<2x16xf32, #tpu.memory_space<vmem>>, vector<2x16xf32>,
      %c0_29 = arith.constant 0 : index
      %c0_30 = arith.constant 0 : index
      %48 = vector.load %arg4[%c0_29, %c0_30] : memref<2x16xf32, #tpu.memory_space<vmem>>, vector<2x16xf32>
      %c0_31 = arith.constant 0 : index
      %c0_32 = arith.constant 0 : index
      %49 = vector.load %arg7[%c0_31, %c0_32] : memref<2x16xf32, #tpu.memory_space<vmem>>, vector<2x16xf32>
      tpu.vector_store %arg7[%c0_31, %c0_32], %48 {strides = array<i32>} : memref<2x16xf32, #tpu.memory_space<vmem>>, vector<2x16xf32>,
    } else {
    }
    %c0 = arith.constant 0 : index
    %c0_1 = arith.constant 0 : index
    %3 = vector.load %arg6[%c0, %c0_1] : memref<2x16xf32, #tpu.memory_space<vmem>>, vector<2x16xf32>
    %c0_2 = arith.constant 0 : index
    %c0_3 = arith.constant 0 : index
    %4 = vector.load %arg7[%c0_2, %c0_3] : memref<2x16xf32, #tpu.memory_space<vmem>>, vector<2x16xf32>
    %c0_4 = arith.constant 0 : index
    %c0_5 = arith.constant 0 : index
    %c0_6 = arith.constant 0 : index
    %5 = vector.load %arg1[%c0_4, %c0_5, %c0_6] : memref<1x2x64xf32, #tpu.memory_space<vmem>>, vector<1x2x64xf32>
    %6 = vector.shape_cast %5 : vector<1x2x64xf32> to vector<2x64xf32>
    %c0_7 = arith.constant 0 : index
    %c0_8 = arith.constant 0 : index
    %7 = vector.load %arg2[%c0_7, %c0_8] : memref<16x64xf32, #tpu.memory_space<vmem>>, vector<16x64xf32>
    %cst = arith.constant dense<0.000000e+00> : vector<2x64xf32>
    %8 = tpu.matmul %3, %7, %cst {dimension_numbers = #tpu.dot_dimension_numbers<[1], [0], [0], [1], [0, 0, 1, 1], [], []>} : vector<2x16xf32>, vector<16x64xf32>, vector<2x64xf32> -> vector<2x64xf32>
    %9 = arith.addf %6, %8 : vector<2x64xf32>
    %10 = vector.extract_strided_slice %9 {offsets = [0, 0], sizes = [2, 16], strides = [1, 1]} : vector<2x64xf32> to vector<2x16xf32>
    %cst_9 = arith.constant 0.000000e+00 : f32
    %11 = vector.broadcast %cst_9 : f32 to vector<2x16xf32>
    %12 = arith.subf %11, %10 : vector<2x16xf32>
    %13 = math.exp %12 : vector<2x16xf32>
    %cst_10 = arith.constant 1.000000e+00 : f32
    %14 = vector.broadcast %cst_10 : f32 to vector<2x16xf32>
    %15 = arith.addf %14, %13 : vector<2x16xf32>
    %cst_11 = arith.constant 1.000000e+00 : f32
    %16 = vector.broadcast %cst_11 : f32 to vector<2x16xf32>
    %17 = arith.divf %16, %15 : vector<2x16xf32>
    %18 = vector.extract_strided_slice %9 {offsets = [0, 16], sizes = [2, 16], strides = [1, 1]} : vector<2x64xf32> to vector<2x16xf32>
    %cst_12 = arith.constant 0.000000e+00 : f32
    %19 = vector.broadcast %cst_12 : f32 to vector<2x16xf32>
    %20 = arith.subf %19, %18 : vector<2x16xf32>
    %21 = math.exp %20 : vector<2x16xf32>
    %cst_13 = arith.constant 1.000000e+00 : f32
    %22 = vector.broadcast %cst_13 : f32 to vector<2x16xf32>
    %23 = arith.addf %22, %21 : vector<2x16xf32>
    %cst_14 = arith.constant 1.000000e+00 : f32
    %24 = vector.broadcast %cst_14 : f32 to vector<2x16xf32>
    %25 = arith.divf %24, %23 : vector<2x16xf32>
    %26 = vector.extract_strided_slice %9 {offsets = [0, 32], sizes = [2, 16], strides = [1, 1]} : vector<2x64xf32> to vector<2x16xf32>
    %27 = math.tanh %26 : vector<2x16xf32>
    %28 = vector.extract_strided_slice %9 {offsets = [0, 48], sizes = [2, 16], strides = [1, 1]} : vector<2x64xf32> to vector<2x16xf32>
    %cst_15 = arith.constant 0.000000e+00 : f32
    %29 = vector.broadcast %cst_15 : f32 to vector<2x16xf32>
    %30 = arith.subf %29, %28 : vector<2x16xf32>
    %31 = math.exp %30 : vector<2x16xf32>
    %cst_16 = arith.constant 1.000000e+00 : f32
    %32 = vector.broadcast %cst_16 : f32 to vector<2x16xf32>
    %33 = arith.addf %32, %31 : vector<2x16xf32>
    %cst_17 = arith.constant 1.000000e+00 : f32
    %34 = vector.broadcast %cst_17 : f32 to vector<2x16xf32>
    %35 = arith.divf %34, %33 : vector<2x16xf32>
    %36 = arith.mulf %25, %4 : vector<2x16xf32>
    %37 = arith.mulf %17, %27 : vector<2x16xf32>
    %38 = arith.addf %36, %37 : vector<2x16xf32>
    %39 = math.tanh %38 : vector<2x16xf32>
    %40 = arith.mulf %35, %39 : vector<2x16xf32>
    %c0_18 = arith.constant 0 : index
    %c0_19 = arith.constant 0 : index
    %41 = vector.load %arg6[%c0_18, %c0_19] : memref<2x16xf32, #tpu.memory_space<vmem>>, vector<2x16xf32>
    tpu.vector_store %arg6[%c0_18, %c0_19], %40 {strides = array<i32>} : memref<2x16xf32, #tpu.memory_space<vmem>>, vector<2x16xf32>,
    %c0_20 = arith.constant 0 : index
    %c0_21 = arith.constant 0 : index
    %42 = vector.load %arg7[%c0_20, %c0_21] : memref<2x16xf32, #tpu.memory_space<vmem>>, vector<2x16xf32>
    tpu.vector_store %arg7[%c0_20, %c0_21], %38 {strides = array<i32>} : memref<2x16xf32, #tpu.memory_space<vmem>>, vector<2x16xf32>,
    %c0_22 = arith.constant 0 : index
    %c0_23 = arith.constant 0 : index
    %c0_24 = arith.constant 0 : index
    %43 = vector.load %arg5[%c0_22, %c0_23, %c0_24] : memref<1x2x16xf32, #tpu.memory_space<vmem>>, vector<1x2x16xf32>
    %44 = vector.shape_cast %43 : vector<1x2x16xf32> to vector<2x16xf32>
    %45 = vector.shape_cast %40 : vector<2x16xf32> to vector<1x2x16xf32>
    tpu.vector_store %arg5[%c0_22, %c0_23, %c0_24], %45 {strides = array<i32>} : memref<1x2x16xf32, #tpu.memory_space<vmem>>, vector<1x2x16xf32>,
    return
  }
  func.func @transform_0(%arg0: i32) -> (i32, i32, i32) {
    %c0_i32 = arith.constant 0 : i32
    %c0_i32_0 = arith.constant 0 : i32
    %c0_i32_1 = arith.constant 0 : i32
    return %arg0, %c0_i32, %c0_i32_0 : i32, i32, i32
  }
  func.func @transform_1(%arg0: i32) -> (i32, i32) {
    %c0_i32 = arith.constant 0 : i32
    %c0_i32_0 = arith.constant 0 : i32
    %c0_i32_1 = arith.constant 0 : i32
    return %c0_i32, %c0_i32_0 : i32, i32
  }
  func.func @transform_2(%arg0: i32) -> (i32, i32) {
    %c0_i32 = arith.constant 0 : i32
    %c0_i32_0 = arith.constant 0 : i32
    %c0_i32_1 = arith.constant 0 : i32
    return %c0_i32, %c0_i32_0 : i32, i32
  }
  func.func @transform_3(%arg0: i32) -> (i32, i32) {
    %c0_i32 = arith.constant 0 : i32
    %c0_i32_0 = arith.constant 0 : i32
    %c0_i32_1 = arith.constant 0 : i32
    return %c0_i32, %c0_i32_0 : i32, i32
  }
  func.func @transform_4(%arg0: i32) -> (i32, i32, i32) {
    %c0_i32 = arith.constant 0 : i32
    %c0_i32_0 = arith.constant 0 : i32
    %c0_i32_1 = arith.constant 0 : i32
    return %arg0, %c0_i32, %c0_i32_0 : i32, i32, i32
  }
  func.func @transform_5(%arg0: i32) -> (i32, i32) {
    %c0_i32 = arith.constant 0 : i32
    %c0_i32_0 = arith.constant 0 : i32
    %c0_i32_1 = arith.constant 0 : i32
    return %c0_i32, %c0_i32_0 : i32, i32
  }
  func.func @transform_6(%arg0: i32) -> (i32, i32) {
    %c0_i32 = arith.constant 0 : i32
    %c0_i32_0 = arith.constant 0 : i32
    %c0_i32_1 = arith.constant 0 : i32
    return %c0_i32, %c0_i32_0 : i32, i32
  }
}

module attributes {stable_mosaic.version = 11 : i64} {
  func.func @_linear_kernel(%arg0: i32, %arg1: memref<16x16xf32, #tpu.memory_space<vmem>>, %arg2: memref<16x64xf32, #tpu.memory_space<vmem>>, %arg3: memref<1x64xf32, #tpu.memory_space<vmem>>, %arg4: memref<16x64xf32, #tpu.memory_space<vmem>>) attributes {dimension_semantics = [#tpu.dimension_semantics<parallel>], iteration_bounds = array<i64: 1>, scalar_prefetch = 0 : i64, scratch_operands = 0 : i64, tpu.core_type = #tpu.core_type<tc>, window_params = [{transform_indices = @transform_0, window_bounds = array<i64: 16, 16>}, {pipeline_mode = #tpu.pipeline_mode<synchronous>, transform_indices = @transform_1, window_bounds = array<i64: 16, 64>}, {pipeline_mode = #tpu.pipeline_mode<synchronous>, transform_indices = @transform_2, window_bounds = array<i64: 1, 64>}, {transform_indices = @transform_3, window_bounds = array<i64: 16, 64>}]} {
    %c0 = arith.constant 0 : index
    %c0_0 = arith.constant 0 : index
    %0 = vector.load %arg1[%c0, %c0_0] : memref<16x16xf32, #tpu.memory_space<vmem>>, vector<16x16xf32>
    %c0_1 = arith.constant 0 : index
    %c0_2 = arith.constant 0 : index
    %1 = vector.load %arg2[%c0_1, %c0_2] : memref<16x64xf32, #tpu.memory_space<vmem>>, vector<16x64xf32>
    %c0_3 = arith.constant 0 : index
    %c0_4 = arith.constant 0 : index
    %2 = vector.load %arg3[%c0_3, %c0_4] : memref<1x64xf32, #tpu.memory_space<vmem>>, vector<1x64xf32>
    %cst = arith.constant dense<0.000000e+00> : vector<16x64xf32>
    %3 = tpu.matmul %0, %1, %cst {dimension_numbers = #tpu.dot_dimension_numbers<[1], [0], [0], [1], [0, 0, 1, 1], [], []>} : vector<16x16xf32>, vector<16x64xf32>, vector<16x64xf32> -> vector<16x64xf32>
    %4 = vector.broadcast %2 : vector<1x64xf32> to vector<16x64xf32>
    %5 = arith.addf %3, %4 : vector<16x64xf32>
    %c0_5 = arith.constant 0 : index
    %c0_6 = arith.constant 0 : index
    %6 = vector.load %arg4[%c0_5, %c0_6] : memref<16x64xf32, #tpu.memory_space<vmem>>, vector<16x64xf32>
    tpu.vector_store %arg4[%c0_5, %c0_6], %5 {strides = array<i32>} : memref<16x64xf32, #tpu.memory_space<vmem>>, vector<16x64xf32>,
    return
  }
  func.func @transform_0(%arg0: i32) -> (i32, i32) {
    %c0_i32 = arith.constant 0 : i32
    %c0_i32_0 = arith.constant 0 : i32
    return %arg0, %c0_i32 : i32, i32
  }
  func.func @transform_1(%arg0: i32) -> (i32, i32) {
    %c0_i32 = arith.constant 0 : i32
    %c0_i32_0 = arith.constant 0 : i32
    %c0_i32_1 = arith.constant 0 : i32
    return %c0_i32, %c0_i32_0 : i32, i32
  }
  func.func @transform_2(%arg0: i32) -> (i32, i32) {
    %c0_i32 = arith.constant 0 : i32
    %c0_i32_0 = arith.constant 0 : i32
    %c0_i32_1 = arith.constant 0 : i32
    return %c0_i32, %c0_i32_0 : i32, i32
  }
  func.func @transform_3(%arg0: i32) -> (i32, i32) {
    %c0_i32 = arith.constant 0 : i32
    %c0_i32_0 = arith.constant 0 : i32
    return %arg0, %c0_i32 : i32, i32
  }
}

module attributes {stable_mosaic.version = 11 : i64} {
  func.func @_linear_kernel(%arg0: i32, %arg1: memref<16x16xf32, #tpu.memory_space<vmem>>, %arg2: memref<16x56xf32, #tpu.memory_space<vmem>>, %arg3: memref<1x56xf32, #tpu.memory_space<vmem>>, %arg4: memref<16x56xf32, #tpu.memory_space<vmem>>) attributes {dimension_semantics = [#tpu.dimension_semantics<parallel>], iteration_bounds = array<i64: 1>, scalar_prefetch = 0 : i64, scratch_operands = 0 : i64, tpu.core_type = #tpu.core_type<tc>, window_params = [{transform_indices = @transform_0, window_bounds = array<i64: 16, 16>}, {pipeline_mode = #tpu.pipeline_mode<synchronous>, transform_indices = @transform_1, window_bounds = array<i64: 16, 56>}, {pipeline_mode = #tpu.pipeline_mode<synchronous>, transform_indices = @transform_2, window_bounds = array<i64: 1, 56>}, {transform_indices = @transform_3, window_bounds = array<i64: 16, 56>}]} {
    %c0 = arith.constant 0 : index
    %c0_0 = arith.constant 0 : index
    %0 = vector.load %arg1[%c0, %c0_0] : memref<16x16xf32, #tpu.memory_space<vmem>>, vector<16x16xf32>
    %c0_1 = arith.constant 0 : index
    %c0_2 = arith.constant 0 : index
    %1 = vector.load %arg2[%c0_1, %c0_2] : memref<16x56xf32, #tpu.memory_space<vmem>>, vector<16x56xf32>
    %c0_3 = arith.constant 0 : index
    %c0_4 = arith.constant 0 : index
    %2 = vector.load %arg3[%c0_3, %c0_4] : memref<1x56xf32, #tpu.memory_space<vmem>>, vector<1x56xf32>
    %cst = arith.constant dense<0.000000e+00> : vector<16x56xf32>
    %3 = tpu.matmul %0, %1, %cst {dimension_numbers = #tpu.dot_dimension_numbers<[1], [0], [0], [1], [0, 0, 1, 1], [], []>} : vector<16x16xf32>, vector<16x56xf32>, vector<16x56xf32> -> vector<16x56xf32>
    %4 = vector.broadcast %2 : vector<1x56xf32> to vector<16x56xf32>
    %5 = arith.addf %3, %4 : vector<16x56xf32>
    %c0_5 = arith.constant 0 : index
    %c0_6 = arith.constant 0 : index
    %6 = vector.load %arg4[%c0_5, %c0_6] : memref<16x56xf32, #tpu.memory_space<vmem>>, vector<16x56xf32>
    tpu.vector_store %arg4[%c0_5, %c0_6], %5 {strides = array<i32>} : memref<16x56xf32, #tpu.memory_space<vmem>>, vector<16x56xf32>,
    return
  }
  func.func @transform_0(%arg0: i32) -> (i32, i32) {
    %c0_i32 = arith.constant 0 : i32
    %c0_i32_0 = arith.constant 0 : i32
    return %arg0, %c0_i32 : i32, i32
  }
  func.func @transform_1(%arg0: i32) -> (i32, i32) {
    %c0_i32 = arith.constant 0 : i32
    %c0_i32_0 = arith.constant 0 : i32
    %c0_i32_1 = arith.constant 0 : i32
    return %c0_i32, %c0_i32_0 : i32, i32
  }
  func.func @transform_2(%arg0: i32) -> (i32, i32) {
    %c0_i32 = arith.constant 0 : i32
    %c0_i32_0 = arith.constant 0 : i32
    %c0_i32_1 = arith.constant 0 : i32
    return %c0_i32, %c0_i32_0 : i32, i32
  }
  func.func @transform_3(%arg0: i32) -> (i32, i32) {
    %c0_i32 = arith.constant 0 : i32
    %c0_i32_0 = arith.constant 0 : i32
    return %arg0, %c0_i32 : i32, i32
  }
}

module attributes {stable_mosaic.version = 11 : i64} {
  func.func @_linear_kernel(%arg0: i32, %arg1: memref<16x14xf32, #tpu.memory_space<vmem>>, %arg2: memref<14x44xf32, #tpu.memory_space<vmem>>, %arg3: memref<1x44xf32, #tpu.memory_space<vmem>>, %arg4: memref<16x44xf32, #tpu.memory_space<vmem>>) attributes {dimension_semantics = [#tpu.dimension_semantics<parallel>], iteration_bounds = array<i64: 1>, scalar_prefetch = 0 : i64, scratch_operands = 0 : i64, tpu.core_type = #tpu.core_type<tc>, window_params = [{transform_indices = @transform_0, window_bounds = array<i64: 16, 14>}, {pipeline_mode = #tpu.pipeline_mode<synchronous>, transform_indices = @transform_1, window_bounds = array<i64: 14, 44>}, {pipeline_mode = #tpu.pipeline_mode<synchronous>, transform_indices = @transform_2, window_bounds = array<i64: 1, 44>}, {transform_indices = @transform_3, window_bounds = array<i64: 16, 44>}]} {
    %c0 = arith.constant 0 : index
    %c0_0 = arith.constant 0 : index
    %0 = vector.load %arg1[%c0, %c0_0] : memref<16x14xf32, #tpu.memory_space<vmem>>, vector<16x14xf32>
    %c0_1 = arith.constant 0 : index
    %c0_2 = arith.constant 0 : index
    %1 = vector.load %arg2[%c0_1, %c0_2] : memref<14x44xf32, #tpu.memory_space<vmem>>, vector<14x44xf32>
    %c0_3 = arith.constant 0 : index
    %c0_4 = arith.constant 0 : index
    %2 = vector.load %arg3[%c0_3, %c0_4] : memref<1x44xf32, #tpu.memory_space<vmem>>, vector<1x44xf32>
    %cst = arith.constant dense<0.000000e+00> : vector<16x44xf32>
    %3 = tpu.matmul %0, %1, %cst {dimension_numbers = #tpu.dot_dimension_numbers<[1], [0], [0], [1], [0, 0, 1, 1], [], []>} : vector<16x14xf32>, vector<14x44xf32>, vector<16x44xf32> -> vector<16x44xf32>
    %4 = vector.broadcast %2 : vector<1x44xf32> to vector<16x44xf32>
    %5 = arith.addf %3, %4 : vector<16x44xf32>
    %c0_5 = arith.constant 0 : index
    %c0_6 = arith.constant 0 : index
    %6 = vector.load %arg4[%c0_5, %c0_6] : memref<16x44xf32, #tpu.memory_space<vmem>>, vector<16x44xf32>
    tpu.vector_store %arg4[%c0_5, %c0_6], %5 {strides = array<i32>} : memref<16x44xf32, #tpu.memory_space<vmem>>, vector<16x44xf32>,
    return
  }
  func.func @transform_0(%arg0: i32) -> (i32, i32) {
    %c0_i32 = arith.constant 0 : i32
    %c0_i32_0 = arith.constant 0 : i32
    return %arg0, %c0_i32 : i32, i32
  }
  func.func @transform_1(%arg0: i32) -> (i32, i32) {
    %c0_i32 = arith.constant 0 : i32
    %c0_i32_0 = arith.constant 0 : i32
    %c0_i32_1 = arith.constant 0 : i32
    return %c0_i32, %c0_i32_0 : i32, i32
  }
  func.func @transform_2(%arg0: i32) -> (i32, i32) {
    %c0_i32 = arith.constant 0 : i32
    %c0_i32_0 = arith.constant 0 : i32
    %c0_i32_1 = arith.constant 0 : i32
    return %c0_i32, %c0_i32_0 : i32, i32
  }
  func.func @transform_3(%arg0: i32) -> (i32, i32) {
    %c0_i32 = arith.constant 0 : i32
    %c0_i32_0 = arith.constant 0 : i32
    return %arg0, %c0_i32 : i32, i32
  }
}

module attributes {stable_mosaic.version = 11 : i64} {
  func.func @_linear_kernel(%arg0: i32, %arg1: memref<16x11xf32, #tpu.memory_space<vmem>>, %arg2: memref<11x36xf32, #tpu.memory_space<vmem>>, %arg3: memref<1x36xf32, #tpu.memory_space<vmem>>, %arg4: memref<16x36xf32, #tpu.memory_space<vmem>>) attributes {dimension_semantics = [#tpu.dimension_semantics<parallel>], iteration_bounds = array<i64: 1>, scalar_prefetch = 0 : i64, scratch_operands = 0 : i64, tpu.core_type = #tpu.core_type<tc>, window_params = [{transform_indices = @transform_0, window_bounds = array<i64: 16, 11>}, {pipeline_mode = #tpu.pipeline_mode<synchronous>, transform_indices = @transform_1, window_bounds = array<i64: 11, 36>}, {pipeline_mode = #tpu.pipeline_mode<synchronous>, transform_indices = @transform_2, window_bounds = array<i64: 1, 36>}, {transform_indices = @transform_3, window_bounds = array<i64: 16, 36>}]} {
    %c0 = arith.constant 0 : index
    %c0_0 = arith.constant 0 : index
    %0 = vector.load %arg1[%c0, %c0_0] : memref<16x11xf32, #tpu.memory_space<vmem>>, vector<16x11xf32>
    %c0_1 = arith.constant 0 : index
    %c0_2 = arith.constant 0 : index
    %1 = vector.load %arg2[%c0_1, %c0_2] : memref<11x36xf32, #tpu.memory_space<vmem>>, vector<11x36xf32>
    %c0_3 = arith.constant 0 : index
    %c0_4 = arith.constant 0 : index
    %2 = vector.load %arg3[%c0_3, %c0_4] : memref<1x36xf32, #tpu.memory_space<vmem>>, vector<1x36xf32>
    %cst = arith.constant dense<0.000000e+00> : vector<16x36xf32>
    %3 = tpu.matmul %0, %1, %cst {dimension_numbers = #tpu.dot_dimension_numbers<[1], [0], [0], [1], [0, 0, 1, 1], [], []>} : vector<16x11xf32>, vector<11x36xf32>, vector<16x36xf32> -> vector<16x36xf32>
    %4 = vector.broadcast %2 : vector<1x36xf32> to vector<16x36xf32>
    %5 = arith.addf %3, %4 : vector<16x36xf32>
    %c0_5 = arith.constant 0 : index
    %c0_6 = arith.constant 0 : index
    %6 = vector.load %arg4[%c0_5, %c0_6] : memref<16x36xf32, #tpu.memory_space<vmem>>, vector<16x36xf32>
    tpu.vector_store %arg4[%c0_5, %c0_6], %5 {strides = array<i32>} : memref<16x36xf32, #tpu.memory_space<vmem>>, vector<16x36xf32>,
    return
  }
  func.func @transform_0(%arg0: i32) -> (i32, i32) {
    %c0_i32 = arith.constant 0 : i32
    %c0_i32_0 = arith.constant 0 : i32
    return %arg0, %c0_i32 : i32, i32
  }
  func.func @transform_1(%arg0: i32) -> (i32, i32) {
    %c0_i32 = arith.constant 0 : i32
    %c0_i32_0 = arith.constant 0 : i32
    %c0_i32_1 = arith.constant 0 : i32
    return %c0_i32, %c0_i32_0 : i32, i32
  }
  func.func @transform_2(%arg0: i32) -> (i32, i32) {
    %c0_i32 = arith.constant 0 : i32
    %c0_i32_0 = arith.constant 0 : i32
    %c0_i32_1 = arith.constant 0 : i32
    return %c0_i32, %c0_i32_0 : i32, i32
  }
  func.func @transform_3(%arg0: i32) -> (i32, i32) {
    %c0_i32 = arith.constant 0 : i32
    %c0_i32_0 = arith.constant 0 : i32
    return %arg0, %c0_i32 : i32, i32
  }
}

module attributes {stable_mosaic.version = 11 : i64} {
  func.func @_linear_kernel(%arg0: i32, %arg1: memref<16x9xf32, #tpu.memory_space<vmem>>, %arg2: memref<9x24xf32, #tpu.memory_space<vmem>>, %arg3: memref<1x24xf32, #tpu.memory_space<vmem>>, %arg4: memref<16x24xf32, #tpu.memory_space<vmem>>) attributes {dimension_semantics = [#tpu.dimension_semantics<parallel>], iteration_bounds = array<i64: 1>, scalar_prefetch = 0 : i64, scratch_operands = 0 : i64, tpu.core_type = #tpu.core_type<tc>, window_params = [{transform_indices = @transform_0, window_bounds = array<i64: 16, 9>}, {pipeline_mode = #tpu.pipeline_mode<synchronous>, transform_indices = @transform_1, window_bounds = array<i64: 9, 24>}, {pipeline_mode = #tpu.pipeline_mode<synchronous>, transform_indices = @transform_2, window_bounds = array<i64: 1, 24>}, {transform_indices = @transform_3, window_bounds = array<i64: 16, 24>}]} {
    %c0 = arith.constant 0 : index
    %c0_0 = arith.constant 0 : index
    %0 = vector.load %arg1[%c0, %c0_0] : memref<16x9xf32, #tpu.memory_space<vmem>>, vector<16x9xf32>
    %c0_1 = arith.constant 0 : index
    %c0_2 = arith.constant 0 : index
    %1 = vector.load %arg2[%c0_1, %c0_2] : memref<9x24xf32, #tpu.memory_space<vmem>>, vector<9x24xf32>
    %c0_3 = arith.constant 0 : index
    %c0_4 = arith.constant 0 : index
    %2 = vector.load %arg3[%c0_3, %c0_4] : memref<1x24xf32, #tpu.memory_space<vmem>>, vector<1x24xf32>
    %cst = arith.constant dense<0.000000e+00> : vector<16x24xf32>
    %3 = tpu.matmul %0, %1, %cst {dimension_numbers = #tpu.dot_dimension_numbers<[1], [0], [0], [1], [0, 0, 1, 1], [], []>} : vector<16x9xf32>, vector<9x24xf32>, vector<16x24xf32> -> vector<16x24xf32>
    %4 = vector.broadcast %2 : vector<1x24xf32> to vector<16x24xf32>
    %5 = arith.addf %3, %4 : vector<16x24xf32>
    %c0_5 = arith.constant 0 : index
    %c0_6 = arith.constant 0 : index
    %6 = vector.load %arg4[%c0_5, %c0_6] : memref<16x24xf32, #tpu.memory_space<vmem>>, vector<16x24xf32>
    tpu.vector_store %arg4[%c0_5, %c0_6], %5 {strides = array<i32>} : memref<16x24xf32, #tpu.memory_space<vmem>>, vector<16x24xf32>,
    return
  }
  func.func @transform_0(%arg0: i32) -> (i32, i32) {
    %c0_i32 = arith.constant 0 : i32
    %c0_i32_0 = arith.constant 0 : i32
    return %arg0, %c0_i32 : i32, i32
  }
  func.func @transform_1(%arg0: i32) -> (i32, i32) {
    %c0_i32 = arith.constant 0 : i32
    %c0_i32_0 = arith.constant 0 : i32
    %c0_i32_1 = arith.constant 0 : i32
    return %c0_i32, %c0_i32_0 : i32, i32
  }
  func.func @transform_2(%arg0: i32) -> (i32, i32) {
    %c0_i32 = arith.constant 0 : i32
    %c0_i32_0 = arith.constant 0 : i32
    %c0_i32_1 = arith.constant 0 : i32
    return %c0_i32, %c0_i32_0 : i32, i32
  }
  func.func @transform_3(%arg0: i32) -> (i32, i32) {
    %c0_i32 = arith.constant 0 : i32
    %c0_i32_0 = arith.constant 0 : i32
    return %arg0, %c0_i32 : i32, i32
  }
}

module attributes {stable_mosaic.version = 11 : i64} {
  func.func @_linear_kernel(%arg0: i32, %arg1: memref<16x6xf32, #tpu.memory_space<vmem>>, %arg2: memref<6x4xf32, #tpu.memory_space<vmem>>, %arg3: memref<1x4xf32, #tpu.memory_space<vmem>>, %arg4: memref<16x4xf32, #tpu.memory_space<vmem>>) attributes {dimension_semantics = [#tpu.dimension_semantics<parallel>], iteration_bounds = array<i64: 1>, scalar_prefetch = 0 : i64, scratch_operands = 0 : i64, tpu.core_type = #tpu.core_type<tc>, window_params = [{transform_indices = @transform_0, window_bounds = array<i64: 16, 6>}, {pipeline_mode = #tpu.pipeline_mode<synchronous>, transform_indices = @transform_1, window_bounds = array<i64: 6, 4>}, {pipeline_mode = #tpu.pipeline_mode<synchronous>, transform_indices = @transform_2, window_bounds = array<i64: 1, 4>}, {transform_indices = @transform_3, window_bounds = array<i64: 16, 4>}]} {
    %c0 = arith.constant 0 : index
    %c0_0 = arith.constant 0 : index
    %0 = vector.load %arg1[%c0, %c0_0] : memref<16x6xf32, #tpu.memory_space<vmem>>, vector<16x6xf32>
    %c0_1 = arith.constant 0 : index
    %c0_2 = arith.constant 0 : index
    %1 = vector.load %arg2[%c0_1, %c0_2] : memref<6x4xf32, #tpu.memory_space<vmem>>, vector<6x4xf32>
    %c0_3 = arith.constant 0 : index
    %c0_4 = arith.constant 0 : index
    %2 = vector.load %arg3[%c0_3, %c0_4] : memref<1x4xf32, #tpu.memory_space<vmem>>, vector<1x4xf32>
    %cst = arith.constant dense<0.000000e+00> : vector<16x4xf32>
    %3 = tpu.matmul %0, %1, %cst {dimension_numbers = #tpu.dot_dimension_numbers<[1], [0], [0], [1], [0, 0, 1, 1], [], []>} : vector<16x6xf32>, vector<6x4xf32>, vector<16x4xf32> -> vector<16x4xf32>
    %4 = vector.broadcast %2 : vector<1x4xf32> to vector<16x4xf32>
    %5 = arith.addf %3, %4 : vector<16x4xf32>
    %c0_5 = arith.constant 0 : index
    %c0_6 = arith.constant 0 : index
    %6 = vector.load %arg4[%c0_5, %c0_6] : memref<16x4xf32, #tpu.memory_space<vmem>>, vector<16x4xf32>
    tpu.vector_store %arg4[%c0_5, %c0_6], %5 {strides = array<i32>} : memref<16x4xf32, #tpu.memory_space<vmem>>, vector<16x4xf32>,
    return
  }
  func.func @transform_0(%arg0: i32) -> (i32, i32) {
    %c0_i32 = arith.constant 0 : i32
    %c0_i32_0 = arith.constant 0 : i32
    return %arg0, %c0_i32 : i32, i32
  }
  func.func @transform_1(%arg0: i32) -> (i32, i32) {
    %c0_i32 = arith.constant 0 : i32
    %c0_i32_0 = arith.constant 0 : i32
    %c0_i32_1 = arith.constant 0 : i32
    return %c0_i32, %c0_i32_0 : i32, i32
  }
  func.func @transform_2(%arg0: i32) -> (i32, i32) {
    %c0_i32 = arith.constant 0 : i32
    %c0_i32_0 = arith.constant 0 : i32
    %c0_i32_1 = arith.constant 0 : i32
    return %c0_i32, %c0_i32_0 : i32, i32
  }
  func.func @transform_3(%arg0: i32) -> (i32, i32) {
    %c0_i32 = arith.constant 0 : i32
    %c0_i32_0 = arith.constant 0 : i32
    return %arg0, %c0_i32 : i32, i32
  }
}

</mosaic_0001>

<llo_original>
// kernel: lstm_ae_forward.21
$region0: #{lstm_ae_forward.21}
  #allocation0 [shape = 'u32[]', space=smem, size = 0x4, offset = 0x4, fixed_abs, tag = 'smem constant byte address 0x4 - core index']
  #allocation1 [shape = 'u32[144,128]{1,0:T(1,128)}', space=vmem, size = 0x12000, scoped, tag = 'internal scratch']
  %s0 = inlined_call_operand.vmem [shape: f32[16,4], index: 0, kind: input, shape index: {}]
  %s1 = inlined_call_operand.vmem [shape: f32[4,24], index: 1, kind: input, shape index: {}]
  %s2 = inlined_call_operand.vmem [shape: f32[1,24], index: 2, kind: input, shape index: {}]
  %s3 = inlined_call_operand.vmem [shape: f32[16,24], index: 3, kind: output, shape index: {}]
  %s4 = sld [smem:[#allocation0]]
  $region22: #{lstm_ae_forward.21} parent=0
    _
  %s6 = ssub.s32 1, %s4
  %s7 = scalar_select 0, %s6, %s4
  // Predicated region
  $region2: #{lstm_ae_forward.21} parent=0 // pred_check
    _
  $region3: #{lstm_ae_forward.21} parent=0 // pred_check_branch
    %9 = sbr.rel (0) target = $region5
  $region4: #{lstm_ae_forward.21} parent=0 // pred_region
    _
  $region5: #{lstm_ae_forward.21} parent=0 // pred_fallthru
    _
  // Predicated region
  $region6: #{lstm_ae_forward.21} parent=0 // pred_check
    _
  $region7: #{lstm_ae_forward.21} parent=0 // pred_check_branch
    %11 = sbr.rel (0) target = $region9
  $region8: #{lstm_ae_forward.21} parent=0 // pred_region
    _
  $region9: #{lstm_ae_forward.21} parent=0 // pred_fallthru
    _
  // Predicated region
  $region10: #{lstm_ae_forward.21} parent=0 // pred_check
    _
  $region11: #{lstm_ae_forward.21} parent=0 // pred_check_branch
    %13 = sbr.rel (0) target = $region13
  $region12: #{lstm_ae_forward.21} parent=0 // pred_region
    _
  $region13: #{lstm_ae_forward.21} parent=0 // pred_fallthru
    _
  %v14 = vld [vmem:[%s0] sm:$0xff]
  %v15 = vld [vmem:[%s0 + $0x8] sm:$0xff]
  %v16 = vld [vmem:[%s1] sm:$0xf]
  %v17 = vld [vmem:[%s2] sm:$0x1]
  %v19 = vlaneseq
  %v20 = vshrl.u32 %v19, 7
  %v21 = vsub.s32 0, %v20
  %v22 = vrot.slane %v17, %v21
  %vm24 = vcmask 31744
  %v26 = vsel %vm24, %v14, 0
  %v29 = vsel %vm24, %v15, 0
  %vm31 = vcmask 1043456
  %v33 = vsel %vm31, %v16, 0
  %35 = vmatprep.subr.mxu0 0.0
  %36 = vmatpush1.msra.mxu0 %v33
  %37 = vmatprep.subr.mxu0 0.0
  %38 = vmatpush1.msra.mxu0 0.0
  %39 = vmatprep.subr.mxu0 0.0
  %40 = vmatpush1.msra.mxu0 0.0
  %41 = vmatprep.subr.mxu0 0.0
  %42 = vmatpush1.msra.mxu0 0.0
  %43 = vmatprep.subr.mxu0 0.0
  %44 = vmatpush1.msra.mxu0 0.0
  %45 = vmatprep.subr.mxu0 0.0
  %46 = vmatpush1.msra.mxu0 0.0
  %47 = vmatprep.subr.mxu0 0.0
  %48 = vmatpush1.msra.mxu0 0.0
  %49 = vmatprep.subr.mxu0 0.0
  %50 = vmatpush1.msra.mxu0 0.0
  %51 = vmatprep.subr.mxu0 0.0
  %52 = vmatpush1.msra.mxu0 0.0
  %53 = vmatprep.subr.mxu0 0.0
  %54 = vmatpush1.msra.mxu0 0.0
  %55 = vmatprep.subr.mxu0 0.0
  %56 = vmatpush1.msra.mxu0 0.0
  %57 = vmatprep.subr.mxu0 0.0
  %58 = vmatpush1.msra.mxu0 0.0
  %59 = vmatprep.subr.mxu0 0.0
  %60 = vmatpush1.msra.mxu0 0.0
  %61 = vmatprep.subr.mxu0 0.0
  %62 = vmatpush1.msra.mxu0 0.0
  %63 = vmatprep.subr.mxu0 0.0
  %64 = vmatpush1.msra.mxu0 0.0
  %65 = vmatprep.subr.mxu0 0.0
  %66 = vmatpush1.msra.mxu0 0.0
  %67 = vmatprep.subr.mxu0 0.0
  %68 = vmatpush1.msra.mxu0 0.0
  %69 = vmatprep.subr.mxu0 0.0
  %70 = vmatpush1.msra.mxu0 0.0
  %71 = vmatprep.subr.mxu0 0.0
  %72 = vmatpush1.msra.mxu0 0.0
  %73 = vmatprep.subr.mxu0 0.0
  %74 = vmatpush1.msra.mxu0 0.0
  %75 = vmatprep.subr.mxu0 0.0
  %76 = vmatpush1.msra.mxu0 0.0
  %77 = vmatprep.subr.mxu0 0.0
  %78 = vmatpush1.msra.mxu0 0.0
  %79 = vmatprep.subr.mxu0 0.0
  %80 = vmatpush1.msra.mxu0 0.0
  %81 = vmatprep.subr.mxu0 0.0
  %82 = vmatpush1.msra.mxu0 0.0
  %83 = vmatprep.subr.mxu0 0.0
  %84 = vmatpush1.msra.mxu0 0.0
  %85 = vmatprep.subr.mxu0 0.0
  %86 = vmatpush1.msra.mxu0 0.0
  %87 = vmatprep.subr.mxu0 0.0
  %88 = vmatpush1.msra.mxu0 0.0
  %89 = vmatprep.subr.mxu0 0.0
  %90 = vmatpush1.msra.mxu0 0.0
  %91 = vmatprep.subr.mxu0 0.0
  %92 = vmatpush1.msra.mxu0 0.0
  %93 = vmatprep.subr.mxu0 0.0
  %94 = vmatpush1.msra.mxu0 0.0
  %95 = vmatprep.subr.mxu0 0.0
  %96 = vmatpush1.msra.mxu0 0.0
  %97 = vmatprep.subr.mxu0 0.0
  %98 = vmatpush1.msra.mxu0 0.0
  %99 = vmatprep.mubr.f32.mxu0 0.0
  %100 = vmatmul.mubr.f32.gmra.mrb[0].mxu0 %v26
  %v101 = vpop.f32.mrb[0].mxu0
  %v102 = vadd.f32 %v22, %v101
  %v103 = vpop.f32.mrb[0].mxu0
  %104 = vmatprep.mubr.f32.mxu0 0.0
  %105 = vmatmul.mubr.f32.gmra.mrb[0].mxu0 %v29
  %v106 = vpop.f32.mrb[0].mxu0
  %v107 = vadd.f32 %v22, %v106
  %v108 = vpop.f32.mrb[0].mxu0
  %109 = vdwg.mxu0
  %vm110 = vcmask 195584
  %111 = vst.msk [vmem:[%s3] sm:$0xff] %vm110, %v102
  %112 = vst.msk [vmem:[%s3 + $0x8] sm:$0xff] %vm110, %v107
  // Predicated region
  $region14: #{lstm_ae_forward.21} parent=0 // pred_check
    _
  $region15: #{lstm_ae_forward.21} parent=0 // pred_check_branch
    %114 = sbr.rel (0) target = $region17
  $region16: #{lstm_ae_forward.21} parent=0 // pred_region
    _
  $region17: #{lstm_ae_forward.21} parent=0 // pred_fallthru
    _
  // Predicated region
  $region18: #{lstm_ae_forward.21} parent=0 // pred_check
    _
  $region19: #{lstm_ae_forward.21} parent=0 // pred_check_branch
    %116 = sbr.rel (0) target = $region21
  $region20: #{lstm_ae_forward.21} parent=0 // pred_region
    _
  $region21: #{lstm_ae_forward.21} parent=0 // pred_fallthru
    _

// kernel: lstm_ae_forward.22
$region0: #{lstm_ae_forward.22}
  #allocation0 [shape = 'u32[]', space=smem, size = 0x4, offset = 0x4, fixed_abs, tag = 'smem constant byte address 0x4 - core index']
  #allocation1 [shape = 'u32[144,128]{1,0:T(1,128)}', space=vmem, size = 0x12000, scoped, tag = 'internal scratch']
  %s0 = inlined_call_operand.vmem [shape: f32[8,2,24], index: 0, kind: input, shape index: {}]
  %s1 = inlined_call_operand.vmem [shape: f32[6,24], index: 1, kind: input, shape index: {}]
  %s2 = inlined_call_operand.vmem [shape: f32[2,6], index: 2, kind: input, shape index: {}, may-alias: {2,3}]
  %s3 = inlined_call_operand.vmem [shape: f32[2,6], index: 3, kind: input, shape index: {}, may-alias: {2,3}]
  %s4 = inlined_call_operand.vmem [shape: f32[8,2,6], index: 4, kind: output, shape index: {0}]
  %s5 = inlined_call_operand.hbm [shape: f32[2,6], index: 5, kind: output, shape index: {1}]
  %s6 = inlined_call_operand.hbm [shape: f32[2,6], index: 6, kind: output, shape index: {2}]
  %7 = xla_tuple %s4, %s5, %s6
  %s8 = sld [smem:[#allocation0]]
  $region69: #{lstm_ae_forward.22} parent=0
    _
  %s10 = ssub.s32 1, %s8
  %s11 = scalar_select 0, %s10, %s8
  $region1: #{lstm_ae_forward.22} parent=0
    #allocation2 [shape = 'u8[1024]{0}', space=vmem, size = 0x400, scoped, tag = 'output window, operand 1, single buffered']
    #allocation3 [shape = 's32[2]{0}', space=sflag, size = 0x8, scoped, tag = 'scoped memory for lstm_ae_forward.22']
    #allocation4 [shape = 'u8[1024]{0}', space=vmem, size = 0x400, scoped, tag = 'output window, operand 2, single buffered']
    #allocation5 [shape = 's32[1]{0}', space=sflag, size = 0x4, scoped, tag = 'scoped memory for lstm_ae_forward.22']
    %12 = vsyncpa [#allocation3], 0
    %13 = vsyncpa [#allocation5], 0
    loop: start=0, step=1, limit=10
    $region2: #{lstm_ae_forward.22} parent=1 // loop_pre_header
      _
    $region3: #{lstm_ae_forward.22} parent=1 // loop_header
      %s15 = sphi 0, %s19
      %p16 = scmp.ge.s32.totalorder %s15, 10
      %s25 = sphi 0, %s27
      %s28 = sphi 0, %s25
      %s29 = sphi 0, %s28
      %s45 = sphi 0, %s29
      %s49 = sphi 0, %s49
      %s51 = sphi 0, %s49
      %s52 = sphi 0, %s51
      %s66 = sphi 0, %s52
      %s70 = sphi 0, %s70
      %s72 = sphi 0, %s70
      %s73 = sphi 0, %s72
      %s87 = sphi 0, %s73
      %s91 = sphi 0, %s91
      %s93 = sphi 0, %s91
      %s94 = sphi 0, %s93
      %s108 = sphi 0, %s94
      %s114 = sphi 0, %s116
      %s117 = sphi 0, %s114
      %s118 = sphi 0, %s117
      %s134 = sphi 0, %s118
      %s138 = sphi 0, %s138
      %s140 = sphi 0, %s138
      %s141 = sphi 0, %s140
      %s155 = sphi 0, %s141
      %s159 = sphi 0, %s159
      %s161 = sphi 0, %s159
      %s162 = sphi 0, %s161
      %s176 = sphi 0, %s162
    $region4: #{lstm_ae_forward.22} parent=1 // loop_header_branch
      %18 = sbr.rel (%p16) target = $region8
    $region5: #{lstm_ae_forward.22} parent=1 // loop_body
      %s20 = ssub.s32 %s15, 1
      %s21 = ssub.s32 %s15, 2
      %s22 = sadd.s32 %s15, 1
      %s23 = ssub.s32 %s15, %s22
      %p24 = scmp.eq.s32.totalorder %s23, 0
      %s26 = sadd.s32 %s25, 1
      %s27 = scalar_select %p24, %s25, %s26
      %p30 = pneg %p24
      %p31 = scmp.eq.s32.totalorder %s15, 7
      %p32 = por %p30, %p31
      %p33 = scmp.ne.s32.totalorder %s25, %s28
      %p34 = scmp.eq.s32.totalorder %s15, 0
      %p35 = por %p33, %p34
      %p36 = scmp.ne.s32.totalorder %s25, %s28
      %p37 = scmp.eq.s32.totalorder %s20, 7
      %p38 = por %p36, %p37
      %p39 = scmp.ne.s32.totalorder %s28, %s29
      %p40 = scmp.eq.s32.totalorder %s20, 0
      %p41 = por %p39, %p40
      %p42 = scmp.ne.s32.totalorder %s28, %s29
      %p43 = scmp.eq.s32.totalorder %s21, 7
      %p44 = por %p42, %p43
      %p46 = scmp.ne.s32.totalorder %s29, %s45
      %p47 = scmp.eq.s32.totalorder %s21, 0
      %p48 = por %p46, %p47
      %s50 = sadd.s32 %s49, 1
      %p53 = scmp.eq.s32.totalorder %s15, 7
      %p54 = scmp.ne.s32.totalorder %s49, %s51
      %p55 = scmp.eq.s32.totalorder %s15, 0
      %p56 = por %p54, %p55
      %p57 = scmp.ne.s32.totalorder %s49, %s51
      %p58 = scmp.eq.s32.totalorder %s20, 7
      %p59 = por %p57, %p58
      %p60 = scmp.ne.s32.totalorder %s51, %s52
      %p61 = scmp.eq.s32.totalorder %s20, 0
      %p62 = por %p60, %p61
      %p63 = scmp.ne.s32.totalorder %s51, %s52
      %p64 = scmp.eq.s32.totalorder %s21, 7
      %p65 = por %p63, %p64
      %p67 = scmp.ne.s32.totalorder %s52, %s66
      %p68 = scmp.eq.s32.totalorder %s21, 0
      %p69 = por %p67, %p68
      %s71 = sadd.s32 %s70, 1
      %p74 = scmp.eq.s32.totalorder %s15, 7
      %p75 = scmp.ne.s32.totalorder %s70, %s72
      %p76 = scmp.eq.s32.totalorder %s15, 0
      %p77 = por %p75, %p76
      %p78 = scmp.ne.s32.totalorder %s70, %s72
      %p79 = scmp.eq.s32.totalorder %s20, 7
      %p80 = por %p78, %p79
      %p81 = scmp.ne.s32.totalorder %s72, %s73
      %p82 = scmp.eq.s32.totalorder %s20, 0
      %p83 = por %p81, %p82
      %p84 = scmp.ne.s32.totalorder %s72, %s73
      %p85 = scmp.eq.s32.totalorder %s21, 7
      %p86 = por %p84, %p85
      %p88 = scmp.ne.s32.totalorder %s73, %s87
      %p89 = scmp.eq.s32.totalorder %s21, 0
      %p90 = por %p88, %p89
      %s92 = sadd.s32 %s91, 1
      %p95 = scmp.eq.s32.totalorder %s15, 7
      %p96 = scmp.ne.s32.totalorder %s91, %s93
      %p97 = scmp.eq.s32.totalorder %s15, 0
      %p98 = por %p96, %p97
      %p99 = scmp.ne.s32.totalorder %s91, %s93
      %p100 = scmp.eq.s32.totalorder %s20, 7
      %p101 = por %p99, %p100
      %p102 = scmp.ne.s32.totalorder %s93, %s94
      %p103 = scmp.eq.s32.totalorder %s20, 0
      %p104 = por %p102, %p103
      %p105 = scmp.ne.s32.totalorder %s93, %s94
      %p106 = scmp.eq.s32.totalorder %s21, 7
      %p107 = por %p105, %p106
      %p109 = scmp.ne.s32.totalorder %s94, %s108
      %p110 = scmp.eq.s32.totalorder %s21, 0
      %p111 = por %p109, %p110
      %s112 = ssub.s32 %s15, %s22
      %p113 = scmp.eq.s32.totalorder %s112, 0
      %s115 = sadd.s32 %s114, 1
      %s116 = scalar_select %p113, %s114, %s115
      %p119 = pneg %p113
      %p120 = scmp.eq.s32.totalorder %s15, 7
      %p121 = por %p119, %p120
      %p122 = scmp.ne.s32.totalorder %s114, %s117
      %p123 = scmp.eq.s32.totalorder %s15, 0
      %p124 = por %p122, %p123
      %p125 = scmp.ne.s32.totalorder %s114, %s117
      %p126 = scmp.eq.s32.totalorder %s20, 7
      %p127 = por %p125, %p126
      %p128 = scmp.ne.s32.totalorder %s117, %s118
      %p129 = scmp.eq.s32.totalorder %s20, 0
      %p130 = por %p128, %p129
      %p131 = scmp.ne.s32.totalorder %s117, %s118
      %p132 = scmp.eq.s32.totalorder %s21, 7
      %p133 = por %p131, %p132
      %p135 = scmp.ne.s32.totalorder %s118, %s134
      %p136 = scmp.eq.s32.totalorder %s21, 0
      %p137 = por %p135, %p136
      %s139 = sadd.s32 %s138, 1
      %p142 = scmp.eq.s32.totalorder %s15, 7
      %p143 = scmp.ne.s32.totalorder %s138, %s140
      %p144 = scmp.eq.s32.totalorder %s15, 0
      %p145 = por %p143, %p144
      %p146 = scmp.ne.s32.totalorder %s138, %s140
      %p147 = scmp.eq.s32.totalorder %s20, 7
      %p148 = por %p146, %p147
      %p149 = scmp.ne.s32.totalorder %s140, %s141
      %p150 = scmp.eq.s32.totalorder %s20, 0
      %p151 = por %p149, %p150
      %p152 = scmp.ne.s32.totalorder %s140, %s141
      %p153 = scmp.eq.s32.totalorder %s21, 7
      %p154 = por %p152, %p153
      %p156 = scmp.ne.s32.totalorder %s141, %s155
      %p157 = scmp.eq.s32.totalorder %s21, 0
      %p158 = por %p156, %p157
      %s160 = sadd.s32 %s159, 1
      %p163 = scmp.eq.s32.totalorder %s15, 7
      %p164 = scmp.ne.s32.totalorder %s159, %s161
      %p165 = scmp.eq.s32.totalorder %s15, 0
      %p166 = por %p164, %p165
      %p167 = scmp.ne.s32.totalorder %s159, %s161
      %p168 = scmp.eq.s32.totalorder %s20, 7
      %p169 = por %p167, %p168
      %p170 = scmp.ne.s32.totalorder %s161, %s162
      %p171 = scmp.eq.s32.totalorder %s20, 0
      %p172 = por %p170, %p171
      %p173 = scmp.ne.s32.totalorder %s161, %s162
      %p174 = scmp.eq.s32.totalorder %s21, 7
      %p175 = por %p173, %p174
      %p177 = scmp.ne.s32.totalorder %s162, %s176
      %p178 = scmp.eq.s32.totalorder %s21, 0
      %p179 = por %p177, %p178
      %p180 = scmp.le.s32.totalorder 1, %s15
      %p181 = scmp.lt.s32.totalorder %s15, 9
      %p182 = pnand %p180, %p181
      %p183 = pneg %p182
      // Predicated region
      $region9: #{lstm_ae_forward.22} parent=5 // pred_check
        _
      $region10: #{lstm_ae_forward.22} parent=5 // pred_check_branch
        %185 = sbr.rel (%p182) target = $region12
      $region11: #{lstm_ae_forward.22} parent=5 // pred_region
        %s186 = ssub.s32 %s15, 1
        // Predicated region
        $region13: #{lstm_ae_forward.22} parent=11 // pred_check
          %p187 = pneg %p62
        $region14: #{lstm_ae_forward.22} parent=11 // pred_check_branch
          %189 = sbr.rel (%p187) target = $region16
        $region15: #{lstm_ae_forward.22} parent=11 // pred_region
          _
        $region16: #{lstm_ae_forward.22} parent=11 // pred_fallthru
          _
        // Predicated region
        $region17: #{lstm_ae_forward.22} parent=11 // pred_check
          %p190 = pneg %p83
        $region18: #{lstm_ae_forward.22} parent=11 // pred_check_branch
          %192 = sbr.rel (%p190) target = $region20
        $region19: #{lstm_ae_forward.22} parent=11 // pred_region
          _
        $region20: #{lstm_ae_forward.22} parent=11 // pred_fallthru
          _
        // Predicated region
        $region21: #{lstm_ae_forward.22} parent=11 // pred_check
          %p193 = pneg %p104
        $region22: #{lstm_ae_forward.22} parent=11 // pred_check_branch
          %195 = sbr.rel (%p193) target = $region24
        $region23: #{lstm_ae_forward.22} parent=11 // pred_region
          _
        $region24: #{lstm_ae_forward.22} parent=11 // pred_fallthru
          _
      $region12: #{lstm_ae_forward.22} parent=5 // pred_fallthru
        _
      %p196 = scmp.lt.s32.totalorder %s15, 8
      // Predicated region
      $region25: #{lstm_ae_forward.22} parent=5 // pred_check
        %p197 = pneg %p196
      $region26: #{lstm_ae_forward.22} parent=5 // pred_check_branch
        %199 = sbr.rel (%p197) target = $region28
      $region27: #{lstm_ae_forward.22} parent=5 // pred_region
        // Predicated region
        $region29: #{lstm_ae_forward.22} parent=27 // pred_check
          %p200 = pneg %p35
        $region30: #{lstm_ae_forward.22} parent=27 // pred_check_branch
          %202 = sbr.rel (%p200) target = $region32
        $region31: #{lstm_ae_forward.22} parent=27 // pred_region
          %p203 = scmp.lt.s32.totalorder %s15, 7
          %s204 = scalar_select %p203, %s15, 7
          %s205 = smul.addr %s204, 2
          %s206 = scalar_lea.vmem %s0, %s205
        $region32: #{lstm_ae_forward.22} parent=27 // pred_fallthru
          _
      $region28: #{lstm_ae_forward.22} parent=5 // pred_fallthru
        _
      %p207 = scmp.le.s32.totalorder 1, %s15
      %p208 = scmp.lt.s32.totalorder %s15, 9
      %p209 = pnand %p207, %p208
      %p210 = pneg %p209
      // Predicated region
      $region33: #{lstm_ae_forward.22} parent=5 // pred_check
        _
      $region34: #{lstm_ae_forward.22} parent=5 // pred_check_branch
        %212 = sbr.rel (%p209) target = $region36
      $region35: #{lstm_ae_forward.22} parent=5 // pred_region
        %s213 = ssub.s32 %s15, 1
        %p214 = scmp.lt.s32.totalorder %s20, 7
        %s215 = scalar_select %p214, %s20, 7
        %s216 = smul.addr %s215, 2
        %s217 = scalar_lea.vmem %s0, %s216
        %p218 = pneg %p41
        %p219 = pneg %p38
        %p220 = pneg %p62
        %p221 = pneg %p59
        %p222 = pneg %p83
        %p223 = pneg %p80
        %p224 = pneg %p104
        %p225 = pneg %p101
        %p226 = pneg %p130
        %p227 = pneg %p127
        %p228 = scmp.lt.s32.totalorder %s20, 7
        %s229 = scalar_select %p228, %s20, 7
        %s230 = smul.addr %s229, 2
        %s231 = scalar_lea.vmem %s4, %s230
        %p232 = pneg %p151
        %p233 = pneg %p148
        %p234 = pneg %p172
        %p235 = pneg %p169
        %p236 = scmp.lt.s32.totalorder %s20, 7
        %s237 = scalar_select %p236, %s20, 7
        %s238 = smul.addr %s237, 2
        %s239 = scalar_lea.vmem %s0, %s238
        %p240 = scmp.lt.s32.totalorder %s20, 7
        %s241 = scalar_select %p240, %s20, 7
        %s242 = smul.addr %s241, 2
        %s243 = scalar_lea.vmem %s4, %s242
        %p244 = scmp.eq.s32.totalorder %s20, 0
        // Predicated region
        $region37: #{lstm_ae_forward.22} parent=35 // pred_check
          %p245 = pneg %p244
        $region38: #{lstm_ae_forward.22} parent=35 // pred_check_branch
          %247 = sbr.rel (%p245) target = $region40
        $region39: #{lstm_ae_forward.22} parent=35 // pred_region
          %v248 = vld [vmem:[%s2] sm:$0x3]
          %vm249 = vcmask 41984
          %250 = vst.msk [vmem:[#allocation2] sm:$0x3] %vm249, %v248
          %v251 = vld [vmem:[%s3] sm:$0x3]
          %252 = vst.msk [vmem:[#allocation4] sm:$0x3] %vm249, %v251
        $region40: #{lstm_ae_forward.22} parent=35 // pred_fallthru
          _
        %v253 = vld [vmem:[#allocation2] sm:$0x3]
        %v254 = vld [vmem:[#allocation4] sm:$0x3]
        %v255 = vld [vmem:[%s239] sm:$0x3]
        %v256 = vld [vmem:[%s1] sm:$0x3f]
        %vm257 = vcmask 48128
        %v259 = vsel %vm257, %v253, 0
        %vm261 = vcmask 1045504
        %v263 = vsel %vm261, %v256, 0
        %265 = vmatprep.subr.mxu0 0.0
        %266 = vmatpush1.msra.mxu0 %v263
        %267 = vmatprep.subr.mxu0 0.0
        %268 = vmatpush1.msra.mxu0 0.0
        %269 = vmatprep.subr.mxu0 0.0
        %270 = vmatpush1.msra.mxu0 0.0
        %271 = vmatprep.subr.mxu0 0.0
        %272 = vmatpush1.msra.mxu0 0.0
        %273 = vmatprep.subr.mxu0 0.0
        %274 = vmatpush1.msra.mxu0 0.0
        %275 = vmatprep.subr.mxu0 0.0
        %276 = vmatpush1.msra.mxu0 0.0
        %277 = vmatprep.subr.mxu0 0.0
        %278 = vmatpush1.msra.mxu0 0.0
        %279 = vmatprep.subr.mxu0 0.0
        %280 = vmatpush1.msra.mxu0 0.0
        %281 = vmatprep.subr.mxu0 0.0
        %282 = vmatpush1.msra.mxu0 0.0
        %283 = vmatprep.subr.mxu0 0.0
        %284 = vmatpush1.msra.mxu0 0.0
        %285 = vmatprep.subr.mxu0 0.0
        %286 = vmatpush1.msra.mxu0 0.0
        %287 = vmatprep.subr.mxu0 0.0
        %288 = vmatpush1.msra.mxu0 0.0
        %289 = vmatprep.subr.mxu0 0.0
        %290 = vmatpush1.msra.mxu0 0.0
        %291 = vmatprep.subr.mxu0 0.0
        %292 = vmatpush1.msra.mxu0 0.0
        %293 = vmatprep.subr.mxu0 0.0
        %294 = vmatpush1.msra.mxu0 0.0
        %295 = vmatprep.subr.mxu0 0.0
        %296 = vmatpush1.msra.mxu0 0.0
        %297 = vmatprep.subr.mxu0 0.0
        %298 = vmatpush1.msra.mxu0 0.0
        %299 = vmatprep.subr.mxu0 0.0
        %300 = vmatpush1.msra.mxu0 0.0
        %301 = vmatprep.subr.mxu0 0.0
        %302 = vmatpush1.msra.mxu0 0.0
        %303 = vmatprep.subr.mxu0 0.0
        %304 = vmatpush1.msra.mxu0 0.0
        %305 = vmatprep.subr.mxu0 0.0
        %306 = vmatpush1.msra.mxu0 0.0
        %307 = vmatprep.subr.mxu0 0.0
        %308 = vmatpush1.msra.mxu0 0.0
        %309 = vmatprep.subr.mxu0 0.0
        %310 = vmatpush1.msra.mxu0 0.0
        %311 = vmatprep.subr.mxu0 0.0
        %312 = vmatpush1.msra.mxu0 0.0
        %313 = vmatprep.subr.mxu0 0.0
        %314 = vmatpush1.msra.mxu0 0.0
        %315 = vmatprep.subr.mxu0 0.0
        %316 = vmatpush1.msra.mxu0 0.0
        %317 = vmatprep.subr.mxu0 0.0
        %318 = vmatpush1.msra.mxu0 0.0
        %319 = vmatprep.subr.mxu0 0.0
        %320 = vmatpush1.msra.mxu0 0.0
        %321 = vmatprep.subr.mxu0 0.0
        %322 = vmatpush1.msra.mxu0 0.0
        %323 = vmatprep.subr.mxu0 0.0
        %324 = vmatpush1.msra.mxu0 0.0
        %325 = vmatprep.subr.mxu0 0.0
        %326 = vmatpush1.msra.mxu0 0.0
        %327 = vmatprep.subr.mxu0 0.0
        %328 = vmatpush1.msra.mxu0 0.0
        %329 = vmatprep.mubr.f32.mxu0 0.0
        %330 = vmatmul.mubr.f32.gmra.mrb[0].mxu0 %v259
        %v331 = vpop.f32.mrb[0].mxu0
        %v332 = vadd.f32 0.0, %v331
        %v333 = vpop.f32.mrb[0].mxu0
        %334 = vdwg.mxu0
        %v335 = vadd.f32 %v255, %v332
        %v336 = vsub.f32 0.0, %v335
        %v337 = vmul.f32 %v336, 1.442695
        %v338 = vpow.pop %v337
        %v339 = vadd.f32 %v338, 1.0
        %v340 = vrcp.pop %v339
        %v341 = vmul.f32 1.0, %v340
        %v342 = vtanh.pop %v335
        %344 = vrot.lane.b32.xlu0 %v254, 6
        %v345 = vpop.permute.xlu0 %344
        %v347 = vmul.f32 %v341, %v345
        %349 = vrot.lane.b32.xlu0 %v342, 116
        %v350 = vpop.permute.xlu0 %349
        %v352 = vmul.f32 %v341, %v350
        %354 = vrot.lane.b32.xlu0 %v352, 6
        %v355 = vpop.permute.xlu0 %354
        %v357 = vadd.f32 %v347, %v355
        %v358 = vtanh.pop %v357
        %360 = vrot.lane.b32.xlu0 %v358, 12
        %v361 = vpop.permute.xlu0 %360
        %v363 = vmul.f32 %v341, %v361
        %365 = vrot.lane.b32.xlu0 %v363, 110
        %v366 = vpop.permute.xlu0 %365
        %vm368 = vcmask 41984
        %369 = vst.msk [vmem:[#allocation2] sm:$0x3] %vm368, %v366
        %371 = vrot.lane.b32.xlu0 %v357, 122
        %v372 = vpop.permute.xlu0 %371
        %374 = vst.msk [vmem:[#allocation4] sm:$0x3] %vm368, %v372
        %375 = vst.msk [vmem:[%s243] sm:$0x3] %vm368, %v366
        %p376 = scmp.lt.s32.totalorder %s20, 7
        %s377 = scalar_select %p376, %s20, 7
        %s378 = smul.addr %s377, 2
        %s379 = scalar_lea.vmem %s4, %s378
        // Predicated region
        $region41: #{lstm_ae_forward.22} parent=35 // pred_check
          %p380 = pneg %p127
        $region42: #{lstm_ae_forward.22} parent=35 // pred_check_branch
          %382 = sbr.rel (%p380) target = $region44
        $region43: #{lstm_ae_forward.22} parent=35 // pred_region
          _
        $region44: #{lstm_ae_forward.22} parent=35 // pred_fallthru
          _
        // Predicated region
        $region45: #{lstm_ae_forward.22} parent=35 // pred_check
          %p383 = pneg %p148
        $region46: #{lstm_ae_forward.22} parent=35 // pred_check_branch
          %385 = sbr.rel (%p383) target = $region48
        $region47: #{lstm_ae_forward.22} parent=35 // pred_region
          %s387 = ssub.s32 32, 32
          %388 = vsyncadd [#allocation3], %s387
          %s390 = sshll.u32 [#allocation2], 4
          %s391 = int_to_ptr.vmem [resolvable:$true] %s390
          %393 = dma.vmem_to_hbm [thread:$0]  %s391, 32, %s5, [#allocation3]
        $region48: #{lstm_ae_forward.22} parent=35 // pred_fallthru
          _
        // Predicated region
        $region49: #{lstm_ae_forward.22} parent=35 // pred_check
          %p394 = pneg %p169
        $region50: #{lstm_ae_forward.22} parent=35 // pred_check_branch
          %396 = sbr.rel (%p394) target = $region52
        $region51: #{lstm_ae_forward.22} parent=35 // pred_region
          %s398 = ssub.s32 32, 32
          %399 = vsyncadd [#allocation5], %s398
          %s401 = sshll.u32 [#allocation4], 4
          %s402 = int_to_ptr.vmem [resolvable:$true] %s401
          %404 = dma.vmem_to_hbm [thread:$0]  %s402, 32, %s6, [#allocation5]
        $region52: #{lstm_ae_forward.22} parent=35 // pred_fallthru
          _
        // Predicated region
        $region53: #{lstm_ae_forward.22} parent=35 // pred_check
          %p405 = pneg %p148
        $region54: #{lstm_ae_forward.22} parent=35 // pred_check_branch
          %407 = sbr.rel (%p405) target = $region56
        $region55: #{lstm_ae_forward.22} parent=35 // pred_region
          %408 = dma.done [#allocation3], 32
        $region56: #{lstm_ae_forward.22} parent=35 // pred_fallthru
          _
        // Predicated region
        $region57: #{lstm_ae_forward.22} parent=35 // pred_check
          %p409 = pneg %p169
        $region58: #{lstm_ae_forward.22} parent=35 // pred_check_branch
          %411 = sbr.rel (%p409) target = $region60
        $region59: #{lstm_ae_forward.22} parent=35 // pred_region
          %412 = dma.done [#allocation5], 32
        $region60: #{lstm_ae_forward.22} parent=35 // pred_fallthru
          _
      $region36: #{lstm_ae_forward.22} parent=5 // pred_fallthru
        _
      %p413 = scmp.le.s32.totalorder 2, %s15
      // Predicated region
      $region61: #{lstm_ae_forward.22} parent=5 // pred_check
        %p414 = pneg %p413
      $region62: #{lstm_ae_forward.22} parent=5 // pred_check_branch
        %416 = sbr.rel (%p414) target = $region64
      $region63: #{lstm_ae_forward.22} parent=5 // pred_region
        %s417 = ssub.s32 %s15, 2
        // Predicated region
        $region65: #{lstm_ae_forward.22} parent=63 // pred_check
          %p418 = pneg %p133
        $region66: #{lstm_ae_forward.22} parent=63 // pred_check_branch
          %420 = sbr.rel (%p418) target = $region68
        $region67: #{lstm_ae_forward.22} parent=63 // pred_region
          %p421 = scmp.lt.s32.totalorder %s21, 7
          %s422 = scalar_select %p421, %s21, 7
          %s423 = smul.addr %s422, 2
          %s424 = scalar_lea.vmem %s4, %s423
        $region68: #{lstm_ae_forward.22} parent=63 // pred_fallthru
          _
      $region64: #{lstm_ae_forward.22} parent=5 // pred_fallthru
        _
    $region6: #{lstm_ae_forward.22} parent=1 // loop_footer
      %s19 = sadd.s32 1, %s15
    $region7: #{lstm_ae_forward.22} parent=1 // loop_footer_branch
      %14 = sbr.rel target = $region3
    $region8: #{lstm_ae_forward.22} parent=1 // loop_exit
      _
    %425 = vsyncpa [#allocation3], 1
    %s426 = scalar_lea.sflag [#allocation3], 1
    %427 = vsyncpa %s426, 1
    %428 = vsyncpa [#allocation5], 1

// kernel: lstm_ae_forward.23
$region0: #{lstm_ae_forward.23}
  #allocation0 [shape = 'u32[]', space=smem, size = 0x4, offset = 0x4, fixed_abs, tag = 'smem constant byte address 0x4 - core index']
  #allocation1 [shape = 'u32[144,128]{1,0:T(1,128)}', space=vmem, size = 0x12000, scoped, tag = 'internal scratch']
  %s0 = inlined_call_operand.vmem [shape: f32[16,6], index: 0, kind: input, shape index: {}]
  %s1 = inlined_call_operand.vmem [shape: f32[6,36], index: 1, kind: input, shape index: {}]
  %s2 = inlined_call_operand.vmem [shape: f32[1,36], index: 2, kind: input, shape index: {}]
  %s3 = inlined_call_operand.vmem [shape: f32[16,36], index: 3, kind: output, shape index: {}]
  %s4 = sld [smem:[#allocation0]]
  $region22: #{lstm_ae_forward.23} parent=0
    _
  %s6 = ssub.s32 1, %s4
  %s7 = scalar_select 0, %s6, %s4
  // Predicated region
  $region2: #{lstm_ae_forward.23} parent=0 // pred_check
    _
  $region3: #{lstm_ae_forward.23} parent=0 // pred_check_branch
    %9 = sbr.rel (0) target = $region5
  $region4: #{lstm_ae_forward.23} parent=0 // pred_region
    _
  $region5: #{lstm_ae_forward.23} parent=0 // pred_fallthru
    _
  // Predicated region
  $region6: #{lstm_ae_forward.23} parent=0 // pred_check
    _
  $region7: #{lstm_ae_forward.23} parent=0 // pred_check_branch
    %11 = sbr.rel (0) target = $region9
  $region8: #{lstm_ae_forward.23} parent=0 // pred_region
    _
  $region9: #{lstm_ae_forward.23} parent=0 // pred_fallthru
    _
  // Predicated region
  $region10: #{lstm_ae_forward.23} parent=0 // pred_check
    _
  $region11: #{lstm_ae_forward.23} parent=0 // pred_check_branch
    %13 = sbr.rel (0) target = $region13
  $region12: #{lstm_ae_forward.23} parent=0 // pred_region
    _
  $region13: #{lstm_ae_forward.23} parent=0 // pred_fallthru
    _
  %v14 = vld [vmem:[%s0] sm:$0xff]
  %v15 = vld [vmem:[%s0 + $0x8] sm:$0xff]
  %v16 = vld [vmem:[%s1] sm:$0x3f]
  %v17 = vld [vmem:[%s2] sm:$0x1]
  %v19 = vlaneseq
  %v20 = vshrl.u32 %v19, 7
  %v21 = vsub.s32 0, %v20
  %v22 = vrot.slane %v17, %v21
  %vm24 = vcmask 48128
  %v26 = vsel %vm24, %v14, 0
  %v29 = vsel %vm24, %v15, 0
  %vm31 = vcmask 1045504
  %v33 = vsel %vm31, %v16, 0
  %35 = vmatprep.subr.mxu0 0.0
  %36 = vmatpush1.msra.mxu0 %v33
  %37 = vmatprep.subr.mxu0 0.0
  %38 = vmatpush1.msra.mxu0 0.0
  %39 = vmatprep.subr.mxu0 0.0
  %40 = vmatpush1.msra.mxu0 0.0
  %41 = vmatprep.subr.mxu0 0.0
  %42 = vmatpush1.msra.mxu0 0.0
  %43 = vmatprep.subr.mxu0 0.0
  %44 = vmatpush1.msra.mxu0 0.0
  %45 = vmatprep.subr.mxu0 0.0
  %46 = vmatpush1.msra.mxu0 0.0
  %47 = vmatprep.subr.mxu0 0.0
  %48 = vmatpush1.msra.mxu0 0.0
  %49 = vmatprep.subr.mxu0 0.0
  %50 = vmatpush1.msra.mxu0 0.0
  %51 = vmatprep.subr.mxu0 0.0
  %52 = vmatpush1.msra.mxu0 0.0
  %53 = vmatprep.subr.mxu0 0.0
  %54 = vmatpush1.msra.mxu0 0.0
  %55 = vmatprep.subr.mxu0 0.0
  %56 = vmatpush1.msra.mxu0 0.0
  %57 = vmatprep.subr.mxu0 0.0
  %58 = vmatpush1.msra.mxu0 0.0
  %59 = vmatprep.subr.mxu0 0.0
  %60 = vmatpush1.msra.mxu0 0.0
  %61 = vmatprep.subr.mxu0 0.0
  %62 = vmatpush1.msra.mxu0 0.0
  %63 = vmatprep.subr.mxu0 0.0
  %64 = vmatpush1.msra.mxu0 0.0
  %65 = vmatprep.subr.mxu0 0.0
  %66 = vmatpush1.msra.mxu0 0.0
  %67 = vmatprep.subr.mxu0 0.0
  %68 = vmatpush1.msra.mxu0 0.0
  %69 = vmatprep.subr.mxu0 0.0
  %70 = vmatpush1.msra.mxu0 0.0
  %71 = vmatprep.subr.mxu0 0.0
  %72 = vmatpush1.msra.mxu0 0.0
  %73 = vmatprep.subr.mxu0 0.0
  %74 = vmatpush1.msra.mxu0 0.0
  %75 = vmatprep.subr.mxu0 0.0
  %76 = vmatpush1.msra.mxu0 0.0
  %77 = vmatprep.subr.mxu0 0.0
  %78 = vmatpush1.msra.mxu0 0.0
  %79 = vmatprep.subr.mxu0 0.0
  %80 = vmatpush1.msra.mxu0 0.0
  %81 = vmatprep.subr.mxu0 0.0
  %82 = vmatpush1.msra.mxu0 0.0
  %83 = vmatprep.subr.mxu0 0.0
  %84 = vmatpush1.msra.mxu0 0.0
  %85 = vmatprep.subr.mxu0 0.0
  %86 = vmatpush1.msra.mxu0 0.0
  %87 = vmatprep.subr.mxu0 0.0
  %88 = vmatpush1.msra.mxu0 0.0
  %89 = vmatprep.subr.mxu0 0.0
  %90 = vmatpush1.msra.mxu0 0.0
  %91 = vmatprep.subr.mxu0 0.0
  %92 = vmatpush1.msra.mxu0 0.0
  %93 = vmatprep.subr.mxu0 0.0
  %94 = vmatpush1.msra.mxu0 0.0
  %95 = vmatprep.subr.mxu0 0.0
  %96 = vmatpush1.msra.mxu0 0.0
  %97 = vmatprep.subr.mxu0 0.0
  %98 = vmatpush1.msra.mxu0 0.0
  %99 = vmatprep.mubr.f32.mxu0 0.0
  %100 = vmatmul.mubr.f32.gmra.mrb[0].mxu0 %v26
  %v101 = vpop.f32.mrb[0].mxu0
  %v102 = vadd.f32 %v22, %v101
  %v103 = vpop.f32.mrb[0].mxu0
  %104 = vmatprep.mubr.f32.mxu0 0.0
  %105 = vmatmul.mubr.f32.gmra.mrb[0].mxu0 %v29
  %v106 = vpop.f32.mrb[0].mxu0
  %v107 = vadd.f32 %v22, %v106
  %v108 = vpop.f32.mrb[0].mxu0
  %109 = vdwg.mxu0
  %vm110 = vcmask 293888
  %111 = vst.msk [vmem:[%s3] sm:$0xff] %vm110, %v102
  %112 = vst.msk [vmem:[%s3 + $0x8] sm:$0xff] %vm110, %v107
  // Predicated region
  $region14: #{lstm_ae_forward.23} parent=0 // pred_check
    _
  $region15: #{lstm_ae_forward.23} parent=0 // pred_check_branch
    %114 = sbr.rel (0) target = $region17
  $region16: #{lstm_ae_forward.23} parent=0 // pred_region
    _
  $region17: #{lstm_ae_forward.23} parent=0 // pred_fallthru
    _
  // Predicated region
  $region18: #{lstm_ae_forward.23} parent=0 // pred_check
    _
  $region19: #{lstm_ae_forward.23} parent=0 // pred_check_branch
    %116 = sbr.rel (0) target = $region21
  $region20: #{lstm_ae_forward.23} parent=0 // pred_region
    _
  $region21: #{lstm_ae_forward.23} parent=0 // pred_fallthru
    _

// kernel: lstm_ae_forward.24
$region0: #{lstm_ae_forward.24}
  #allocation0 [shape = 'u32[]', space=smem, size = 0x4, offset = 0x4, fixed_abs, tag = 'smem constant byte address 0x4 - core index']
  #allocation1 [shape = 'u32[144,128]{1,0:T(1,128)}', space=vmem, size = 0x12000, scoped, tag = 'internal scratch']
  %s0 = inlined_call_operand.vmem [shape: f32[8,2,36], index: 0, kind: input, shape index: {}]
  %s1 = inlined_call_operand.vmem [shape: f32[9,36], index: 1, kind: input, shape index: {}]
  %s2 = inlined_call_operand.vmem [shape: f32[2,9], index: 2, kind: input, shape index: {}, may-alias: {2,3}]
  %s3 = inlined_call_operand.vmem [shape: f32[2,9], index: 3, kind: input, shape index: {}, may-alias: {2,3}]
  %s4 = inlined_call_operand.vmem [shape: f32[8,2,9], index: 4, kind: output, shape index: {0}]
  %s5 = inlined_call_operand.hbm [shape: f32[2,9], index: 5, kind: output, shape index: {1}]
  %s6 = inlined_call_operand.hbm [shape: f32[2,9], index: 6, kind: output, shape index: {2}]
  %7 = xla_tuple %s4, %s5, %s6
  %s8 = sld [smem:[#allocation0]]
  $region69: #{lstm_ae_forward.24} parent=0
    _
  %s10 = ssub.s32 1, %s8
  %s11 = scalar_select 0, %s10, %s8
  $region1: #{lstm_ae_forward.24} parent=0
    #allocation2 [shape = 'u8[1024]{0}', space=vmem, size = 0x400, scoped, tag = 'output window, operand 1, single buffered']
    #allocation3 [shape = 's32[2]{0}', space=sflag, size = 0x8, scoped, tag = 'scoped memory for lstm_ae_forward.24']
    #allocation4 [shape = 'u8[1024]{0}', space=vmem, size = 0x400, scoped, tag = 'output window, operand 2, single buffered']
    #allocation5 [shape = 's32[1]{0}', space=sflag, size = 0x4, scoped, tag = 'scoped memory for lstm_ae_forward.24']
    %12 = vsyncpa [#allocation3], 0
    %13 = vsyncpa [#allocation5], 0
    loop: start=0, step=1, limit=10
    $region2: #{lstm_ae_forward.24} parent=1 // loop_pre_header
      _
    $region3: #{lstm_ae_forward.24} parent=1 // loop_header
      %s15 = sphi 0, %s19
      %p16 = scmp.ge.s32.totalorder %s15, 10
      %s25 = sphi 0, %s27
      %s28 = sphi 0, %s25
      %s29 = sphi 0, %s28
      %s45 = sphi 0, %s29
      %s49 = sphi 0, %s49
      %s51 = sphi 0, %s49
      %s52 = sphi 0, %s51
      %s66 = sphi 0, %s52
      %s70 = sphi 0, %s70
      %s72 = sphi 0, %s70
      %s73 = sphi 0, %s72
      %s87 = sphi 0, %s73
      %s91 = sphi 0, %s91
      %s93 = sphi 0, %s91
      %s94 = sphi 0, %s93
      %s108 = sphi 0, %s94
      %s114 = sphi 0, %s116
      %s117 = sphi 0, %s114
      %s118 = sphi 0, %s117
      %s134 = sphi 0, %s118
      %s138 = sphi 0, %s138
      %s140 = sphi 0, %s138
      %s141 = sphi 0, %s140
      %s155 = sphi 0, %s141
      %s159 = sphi 0, %s159
      %s161 = sphi 0, %s159
      %s162 = sphi 0, %s161
      %s176 = sphi 0, %s162
    $region4: #{lstm_ae_forward.24} parent=1 // loop_header_branch
      %18 = sbr.rel (%p16) target = $region8
    $region5: #{lstm_ae_forward.24} parent=1 // loop_body
      %s20 = ssub.s32 %s15, 1
      %s21 = ssub.s32 %s15, 2
      %s22 = sadd.s32 %s15, 1
      %s23 = ssub.s32 %s15, %s22
      %p24 = scmp.eq.s32.totalorder %s23, 0
      %s26 = sadd.s32 %s25, 1
      %s27 = scalar_select %p24, %s25, %s26
      %p30 = pneg %p24
      %p31 = scmp.eq.s32.totalorder %s15, 7
      %p32 = por %p30, %p31
      %p33 = scmp.ne.s32.totalorder %s25, %s28
      %p34 = scmp.eq.s32.totalorder %s15, 0
      %p35 = por %p33, %p34
      %p36 = scmp.ne.s32.totalorder %s25, %s28
      %p37 = scmp.eq.s32.totalorder %s20, 7
      %p38 = por %p36, %p37
      %p39 = scmp.ne.s32.totalorder %s28, %s29
      %p40 = scmp.eq.s32.totalorder %s20, 0
      %p41 = por %p39, %p40
      %p42 = scmp.ne.s32.totalorder %s28, %s29
      %p43 = scmp.eq.s32.totalorder %s21, 7
      %p44 = por %p42, %p43
      %p46 = scmp.ne.s32.totalorder %s29, %s45
      %p47 = scmp.eq.s32.totalorder %s21, 0
      %p48 = por %p46, %p47
      %s50 = sadd.s32 %s49, 1
      %p53 = scmp.eq.s32.totalorder %s15, 7
      %p54 = scmp.ne.s32.totalorder %s49, %s51
      %p55 = scmp.eq.s32.totalorder %s15, 0
      %p56 = por %p54, %p55
      %p57 = scmp.ne.s32.totalorder %s49, %s51
      %p58 = scmp.eq.s32.totalorder %s20, 7
      %p59 = por %p57, %p58
      %p60 = scmp.ne.s32.totalorder %s51, %s52
      %p61 = scmp.eq.s32.totalorder %s20, 0
      %p62 = por %p60, %p61
      %p63 = scmp.ne.s32.totalorder %s51, %s52
      %p64 = scmp.eq.s32.totalorder %s21, 7
      %p65 = por %p63, %p64
      %p67 = scmp.ne.s32.totalorder %s52, %s66
      %p68 = scmp.eq.s32.totalorder %s21, 0
      %p69 = por %p67, %p68
      %s71 = sadd.s32 %s70, 1
      %p74 = scmp.eq.s32.totalorder %s15, 7
      %p75 = scmp.ne.s32.totalorder %s70, %s72
      %p76 = scmp.eq.s32.totalorder %s15, 0
      %p77 = por %p75, %p76
      %p78 = scmp.ne.s32.totalorder %s70, %s72
      %p79 = scmp.eq.s32.totalorder %s20, 7
      %p80 = por %p78, %p79
      %p81 = scmp.ne.s32.totalorder %s72, %s73
      %p82 = scmp.eq.s32.totalorder %s20, 0
      %p83 = por %p81, %p82
      %p84 = scmp.ne.s32.totalorder %s72, %s73
      %p85 = scmp.eq.s32.totalorder %s21, 7
      %p86 = por %p84, %p85
      %p88 = scmp.ne.s32.totalorder %s73, %s87
      %p89 = scmp.eq.s32.totalorder %s21, 0
      %p90 = por %p88, %p89
      %s92 = sadd.s32 %s91, 1
      %p95 = scmp.eq.s32.totalorder %s15, 7
      %p96 = scmp.ne.s32.totalorder %s91, %s93
      %p97 = scmp.eq.s32.totalorder %s15, 0
      %p98 = por %p96, %p97
      %p99 = scmp.ne.s32.totalorder %s91, %s93
      %p100 = scmp.eq.s32.totalorder %s20, 7
      %p101 = por %p99, %p100
      %p102 = scmp.ne.s32.totalorder %s93, %s94
      %p103 = scmp.eq.s32.totalorder %s20, 0
      %p104 = por %p102, %p103
      %p105 = scmp.ne.s32.totalorder %s93, %s94
      %p106 = scmp.eq.s32.totalorder %s21, 7
      %p107 = por %p105, %p106
      %p109 = scmp.ne.s32.totalorder %s94, %s108
      %p110 = scmp.eq.s32.totalorder %s21, 0
      %p111 = por %p109, %p110
      %s112 = ssub.s32 %s15, %s22
      %p113 = scmp.eq.s32.totalorder %s112, 0
      %s115 = sadd.s32 %s114, 1
      %s116 = scalar_select %p113, %s114, %s115
      %p119 = pneg %p113
      %p120 = scmp.eq.s32.totalorder %s15, 7
      %p121 = por %p119, %p120
      %p122 = scmp.ne.s32.totalorder %s114, %s117
      %p123 = scmp.eq.s32.totalorder %s15, 0
      %p124 = por %p122, %p123
      %p125 = scmp.ne.s32.totalorder %s114, %s117
      %p126 = scmp.eq.s32.totalorder %s20, 7
      %p127 = por %p125, %p126
      %p128 = scmp.ne.s32.totalorder %s117, %s118
      %p129 = scmp.eq.s32.totalorder %s20, 0
      %p130 = por %p128, %p129
      %p131 = scmp.ne.s32.totalorder %s117, %s118
      %p132 = scmp.eq.s32.totalorder %s21, 7
      %p133 = por %p131, %p132
      %p135 = scmp.ne.s32.totalorder %s118, %s134
      %p136 = scmp.eq.s32.totalorder %s21, 0
      %p137 = por %p135, %p136
      %s139 = sadd.s32 %s138, 1
      %p142 = scmp.eq.s32.totalorder %s15, 7
      %p143 = scmp.ne.s32.totalorder %s138, %s140
      %p144 = scmp.eq.s32.totalorder %s15, 0
      %p145 = por %p143, %p144
      %p146 = scmp.ne.s32.totalorder %s138, %s140
      %p147 = scmp.eq.s32.totalorder %s20, 7
      %p148 = por %p146, %p147
      %p149 = scmp.ne.s32.totalorder %s140, %s141
      %p150 = scmp.eq.s32.totalorder %s20, 0
      %p151 = por %p149, %p150
      %p152 = scmp.ne.s32.totalorder %s140, %s141
      %p153 = scmp.eq.s32.totalorder %s21, 7
      %p154 = por %p152, %p153
      %p156 = scmp.ne.s32.totalorder %s141, %s155
      %p157 = scmp.eq.s32.totalorder %s21, 0
      %p158 = por %p156, %p157
      %s160 = sadd.s32 %s159, 1
      %p163 = scmp.eq.s32.totalorder %s15, 7
      %p164 = scmp.ne.s32.totalorder %s159, %s161
      %p165 = scmp.eq.s32.totalorder %s15, 0
      %p166 = por %p164, %p165
      %p167 = scmp.ne.s32.totalorder %s159, %s161
      %p168 = scmp.eq.s32.totalorder %s20, 7
      %p169 = por %p167, %p168
      %p170 = scmp.ne.s32.totalorder %s161, %s162
      %p171 = scmp.eq.s32.totalorder %s20, 0
      %p172 = por %p170, %p171
      %p173 = scmp.ne.s32.totalorder %s161, %s162
      %p174 = scmp.eq.s32.totalorder %s21, 7
      %p175 = por %p173, %p174
      %p177 = scmp.ne.s32.totalorder %s162, %s176
      %p178 = scmp.eq.s32.totalorder %s21, 0
      %p179 = por %p177, %p178
      %p180 = scmp.le.s32.totalorder 1, %s15
      %p181 = scmp.lt.s32.totalorder %s15, 9
      %p182 = pnand %p180, %p181
      %p183 = pneg %p182
      // Predicated region
      $region9: #{lstm_ae_forward.24} parent=5 // pred_check
        _
      $region10: #{lstm_ae_forward.24} parent=5 // pred_check_branch
        %185 = sbr.rel (%p182) target = $region12
      $region11: #{lstm_ae_forward.24} parent=5 // pred_region
        %s186 = ssub.s32 %s15, 1
        // Predicated region
        $region13: #{lstm_ae_forward.24} parent=11 // pred_check
          %p187 = pneg %p62
        $region14: #{lstm_ae_forward.24} parent=11 // pred_check_branch
          %189 = sbr.rel (%p187) target = $region16
        $region15: #{lstm_ae_forward.24} parent=11 // pred_region
          _
        $region16: #{lstm_ae_forward.24} parent=11 // pred_fallthru
          _
        // Predicated region
        $region17: #{lstm_ae_forward.24} parent=11 // pred_check
          %p190 = pneg %p83
        $region18: #{lstm_ae_forward.24} parent=11 // pred_check_branch
          %192 = sbr.rel (%p190) target = $region20
        $region19: #{lstm_ae_forward.24} parent=11 // pred_region
          _
        $region20: #{lstm_ae_forward.24} parent=11 // pred_fallthru
          _
        // Predicated region
        $region21: #{lstm_ae_forward.24} parent=11 // pred_check
          %p193 = pneg %p104
        $region22: #{lstm_ae_forward.24} parent=11 // pred_check_branch
          %195 = sbr.rel (%p193) target = $region24
        $region23: #{lstm_ae_forward.24} parent=11 // pred_region
          _
        $region24: #{lstm_ae_forward.24} parent=11 // pred_fallthru
          _
      $region12: #{lstm_ae_forward.24} parent=5 // pred_fallthru
        _
      %p196 = scmp.lt.s32.totalorder %s15, 8
      // Predicated region
      $region25: #{lstm_ae_forward.24} parent=5 // pred_check
        %p197 = pneg %p196
      $region26: #{lstm_ae_forward.24} parent=5 // pred_check_branch
        %199 = sbr.rel (%p197) target = $region28
      $region27: #{lstm_ae_forward.24} parent=5 // pred_region
        // Predicated region
        $region29: #{lstm_ae_forward.24} parent=27 // pred_check
          %p200 = pneg %p35
        $region30: #{lstm_ae_forward.24} parent=27 // pred_check_branch
          %202 = sbr.rel (%p200) target = $region32
        $region31: #{lstm_ae_forward.24} parent=27 // pred_region
          %p203 = scmp.lt.s32.totalorder %s15, 7
          %s204 = scalar_select %p203, %s15, 7
          %s205 = smul.addr %s204, 2
          %s206 = scalar_lea.vmem %s0, %s205
        $region32: #{lstm_ae_forward.24} parent=27 // pred_fallthru
          _
      $region28: #{lstm_ae_forward.24} parent=5 // pred_fallthru
        _
      %p207 = scmp.le.s32.totalorder 1, %s15
      %p208 = scmp.lt.s32.totalorder %s15, 9
      %p209 = pnand %p207, %p208
      %p210 = pneg %p209
      // Predicated region
      $region33: #{lstm_ae_forward.24} parent=5 // pred_check
        _
      $region34: #{lstm_ae_forward.24} parent=5 // pred_check_branch
        %212 = sbr.rel (%p209) target = $region36
      $region35: #{lstm_ae_forward.24} parent=5 // pred_region
        %s213 = ssub.s32 %s15, 1
        %p214 = scmp.lt.s32.totalorder %s20, 7
        %s215 = scalar_select %p214, %s20, 7
        %s216 = smul.addr %s215, 2
        %s217 = scalar_lea.vmem %s0, %s216
        %p218 = pneg %p41
        %p219 = pneg %p38
        %p220 = pneg %p62
        %p221 = pneg %p59
        %p222 = pneg %p83
        %p223 = pneg %p80
        %p224 = pneg %p104
        %p225 = pneg %p101
        %p226 = pneg %p130
        %p227 = pneg %p127
        %p228 = scmp.lt.s32.totalorder %s20, 7
        %s229 = scalar_select %p228, %s20, 7
        %s230 = smul.addr %s229, 2
        %s231 = scalar_lea.vmem %s4, %s230
        %p232 = pneg %p151
        %p233 = pneg %p148
        %p234 = pneg %p172
        %p235 = pneg %p169
        %p236 = scmp.lt.s32.totalorder %s20, 7
        %s237 = scalar_select %p236, %s20, 7
        %s238 = smul.addr %s237, 2
        %s239 = scalar_lea.vmem %s0, %s238
        %p240 = scmp.lt.s32.totalorder %s20, 7
        %s241 = scalar_select %p240, %s20, 7
        %s242 = smul.addr %s241, 2
        %s243 = scalar_lea.vmem %s4, %s242
        %p244 = scmp.eq.s32.totalorder %s20, 0
        // Predicated region
        $region37: #{lstm_ae_forward.24} parent=35 // pred_check
          %p245 = pneg %p244
        $region38: #{lstm_ae_forward.24} parent=35 // pred_check_branch
          %247 = sbr.rel (%p245) target = $region40
        $region39: #{lstm_ae_forward.24} parent=35 // pred_region
          %v248 = vld [vmem:[%s2] sm:$0x3]
          %vm249 = vcmask 66560
          %250 = vst.msk [vmem:[#allocation2] sm:$0x3] %vm249, %v248
          %v251 = vld [vmem:[%s3] sm:$0x3]
          %252 = vst.msk [vmem:[#allocation4] sm:$0x3] %vm249, %v251
        $region40: #{lstm_ae_forward.24} parent=35 // pred_fallthru
          _
        %v253 = vld [vmem:[#allocation2] sm:$0x3]
        %v254 = vld [vmem:[#allocation4] sm:$0x3]
        %v255 = vld [vmem:[%s239] sm:$0x3]
        %v256 = vld [vmem:[%s1] sm:$0xff]
        %v257 = vld [vmem:[%s1 + $0x8] sm:$0x1]
        %vm258 = vcmask 72704
        %v260 = vsel %vm258, %v253, 0
        %vm262 = vcmask 1040384
        %v264 = vsel %vm262, %v257, 0
        %266 = vmatprep.subr.mxu0 0.0
        %267 = vmatpush1.msra.mxu0 %v256
        %268 = vmatprep.subr.mxu0 0.0
        %269 = vmatpush1.msra.mxu0 %v264
        %270 = vmatprep.subr.mxu0 0.0
        %271 = vmatpush1.msra.mxu0 0.0
        %272 = vmatprep.subr.mxu0 0.0
        %273 = vmatpush1.msra.mxu0 0.0
        %274 = vmatprep.subr.mxu0 0.0
        %275 = vmatpush1.msra.mxu0 0.0
        %276 = vmatprep.subr.mxu0 0.0
        %277 = vmatpush1.msra.mxu0 0.0
        %278 = vmatprep.subr.mxu0 0.0
        %279 = vmatpush1.msra.mxu0 0.0
        %280 = vmatprep.subr.mxu0 0.0
        %281 = vmatpush1.msra.mxu0 0.0
        %282 = vmatprep.subr.mxu0 0.0
        %283 = vmatpush1.msra.mxu0 0.0
        %284 = vmatprep.subr.mxu0 0.0
        %285 = vmatpush1.msra.mxu0 0.0
        %286 = vmatprep.subr.mxu0 0.0
        %287 = vmatpush1.msra.mxu0 0.0
        %288 = vmatprep.subr.mxu0 0.0
        %289 = vmatpush1.msra.mxu0 0.0
        %290 = vmatprep.subr.mxu0 0.0
        %291 = vmatpush1.msra.mxu0 0.0
        %292 = vmatprep.subr.mxu0 0.0
        %293 = vmatpush1.msra.mxu0 0.0
        %294 = vmatprep.subr.mxu0 0.0
        %295 = vmatpush1.msra.mxu0 0.0
        %296 = vmatprep.subr.mxu0 0.0
        %297 = vmatpush1.msra.mxu0 0.0
        %298 = vmatprep.subr.mxu0 0.0
        %299 = vmatpush1.msra.mxu0 0.0
        %300 = vmatprep.subr.mxu0 0.0
        %301 = vmatpush1.msra.mxu0 0.0
        %302 = vmatprep.subr.mxu0 0.0
        %303 = vmatpush1.msra.mxu0 0.0
        %304 = vmatprep.subr.mxu0 0.0
        %305 = vmatpush1.msra.mxu0 0.0
        %306 = vmatprep.subr.mxu0 0.0
        %307 = vmatpush1.msra.mxu0 0.0
        %308 = vmatprep.subr.mxu0 0.0
        %309 = vmatpush1.msra.mxu0 0.0
        %310 = vmatprep.subr.mxu0 0.0
        %311 = vmatpush1.msra.mxu0 0.0
        %312 = vmatprep.subr.mxu0 0.0
        %313 = vmatpush1.msra.mxu0 0.0
        %314 = vmatprep.subr.mxu0 0.0
        %315 = vmatpush1.msra.mxu0 0.0
        %316 = vmatprep.subr.mxu0 0.0
        %317 = vmatpush1.msra.mxu0 0.0
        %318 = vmatprep.subr.mxu0 0.0
        %319 = vmatpush1.msra.mxu0 0.0
        %320 = vmatprep.subr.mxu0 0.0
        %321 = vmatpush1.msra.mxu0 0.0
        %322 = vmatprep.subr.mxu0 0.0
        %323 = vmatpush1.msra.mxu0 0.0
        %324 = vmatprep.subr.mxu0 0.0
        %325 = vmatpush1.msra.mxu0 0.0
        %326 = vmatprep.subr.mxu0 0.0
        %327 = vmatpush1.msra.mxu0 0.0
        %328 = vmatprep.subr.mxu0 0.0
        %329 = vmatpush1.msra.mxu0 0.0
        %330 = vmatprep.mubr.f32.mxu0 0.0
        %331 = vmatmul.mubr.f32.gmra.mrb[0].mxu0 %v260
        %v332 = vpop.f32.mrb[0].mxu0
        %v333 = vadd.f32 0.0, %v332
        %v334 = vpop.f32.mrb[0].mxu0
        %335 = vdwg.mxu0
        %v336 = vadd.f32 %v255, %v333
        %v337 = vsub.f32 0.0, %v336
        %v338 = vmul.f32 %v337, 1.442695
        %v339 = vpow.pop %v338
        %v340 = vadd.f32 %v339, 1.0
        %v341 = vrcp.pop %v340
        %v342 = vmul.f32 1.0, %v341
        %v343 = vtanh.pop %v336
        %345 = vrot.lane.b32.xlu0 %v254, 9
        %v346 = vpop.permute.xlu0 %345
        %v348 = vmul.f32 %v342, %v346
        %350 = vrot.lane.b32.xlu0 %v343, 110
        %v351 = vpop.permute.xlu0 %350
        %v353 = vmul.f32 %v342, %v351
        %355 = vrot.lane.b32.xlu0 %v353, 9
        %v356 = vpop.permute.xlu0 %355
        %v358 = vadd.f32 %v348, %v356
        %v359 = vtanh.pop %v358
        %361 = vrot.lane.b32.xlu0 %v359, 18
        %v362 = vpop.permute.xlu0 %361
        %v364 = vmul.f32 %v342, %v362
        %366 = vrot.lane.b32.xlu0 %v364, 101
        %v367 = vpop.permute.xlu0 %366
        %vm369 = vcmask 66560
        %370 = vst.msk [vmem:[#allocation2] sm:$0x3] %vm369, %v367
        %372 = vrot.lane.b32.xlu0 %v358, 119
        %v373 = vpop.permute.xlu0 %372
        %375 = vst.msk [vmem:[#allocation4] sm:$0x3] %vm369, %v373
        %376 = vst.msk [vmem:[%s243] sm:$0x3] %vm369, %v367
        %p377 = scmp.lt.s32.totalorder %s20, 7
        %s378 = scalar_select %p377, %s20, 7
        %s379 = smul.addr %s378, 2
        %s380 = scalar_lea.vmem %s4, %s379
        // Predicated region
        $region41: #{lstm_ae_forward.24} parent=35 // pred_check
          %p381 = pneg %p127
        $region42: #{lstm_ae_forward.24} parent=35 // pred_check_branch
          %383 = sbr.rel (%p381) target = $region44
        $region43: #{lstm_ae_forward.24} parent=35 // pred_region
          _
        $region44: #{lstm_ae_forward.24} parent=35 // pred_fallthru
          _
        // Predicated region
        $region45: #{lstm_ae_forward.24} parent=35 // pred_check
          %p384 = pneg %p148
        $region46: #{lstm_ae_forward.24} parent=35 // pred_check_branch
          %386 = sbr.rel (%p384) target = $region48
        $region47: #{lstm_ae_forward.24} parent=35 // pred_region
          %s388 = ssub.s32 32, 32
          %389 = vsyncadd [#allocation3], %s388
          %s391 = sshll.u32 [#allocation2], 4
          %s392 = int_to_ptr.vmem [resolvable:$true] %s391
          %394 = dma.vmem_to_hbm [thread:$0]  %s392, 32, %s5, [#allocation3]
        $region48: #{lstm_ae_forward.24} parent=35 // pred_fallthru
          _
        // Predicated region
        $region49: #{lstm_ae_forward.24} parent=35 // pred_check
          %p395 = pneg %p169
        $region50: #{lstm_ae_forward.24} parent=35 // pred_check_branch
          %397 = sbr.rel (%p395) target = $region52
        $region51: #{lstm_ae_forward.24} parent=35 // pred_region
          %s399 = ssub.s32 32, 32
          %400 = vsyncadd [#allocation5], %s399
          %s402 = sshll.u32 [#allocation4], 4
          %s403 = int_to_ptr.vmem [resolvable:$true] %s402
          %405 = dma.vmem_to_hbm [thread:$0]  %s403, 32, %s6, [#allocation5]
        $region52: #{lstm_ae_forward.24} parent=35 // pred_fallthru
          _
        // Predicated region
        $region53: #{lstm_ae_forward.24} parent=35 // pred_check
          %p406 = pneg %p148
        $region54: #{lstm_ae_forward.24} parent=35 // pred_check_branch
          %408 = sbr.rel (%p406) target = $region56
        $region55: #{lstm_ae_forward.24} parent=35 // pred_region
          %409 = dma.done [#allocation3], 32
        $region56: #{lstm_ae_forward.24} parent=35 // pred_fallthru
          _
        // Predicated region
        $region57: #{lstm_ae_forward.24} parent=35 // pred_check
          %p410 = pneg %p169
        $region58: #{lstm_ae_forward.24} parent=35 // pred_check_branch
          %412 = sbr.rel (%p410) target = $region60
        $region59: #{lstm_ae_forward.24} parent=35 // pred_region
          %413 = dma.done [#allocation5], 32
        $region60: #{lstm_ae_forward.24} parent=35 // pred_fallthru
          _
      $region36: #{lstm_ae_forward.24} parent=5 // pred_fallthru
        _
      %p414 = scmp.le.s32.totalorder 2, %s15
      // Predicated region
      $region61: #{lstm_ae_forward.24} parent=5 // pred_check
        %p415 = pneg %p414
      $region62: #{lstm_ae_forward.24} parent=5 // pred_check_branch
        %417 = sbr.rel (%p415) target = $region64
      $region63: #{lstm_ae_forward.24} parent=5 // pred_region
        %s418 = ssub.s32 %s15, 2
        // Predicated region
        $region65: #{lstm_ae_forward.24} parent=63 // pred_check
          %p419 = pneg %p133
        $region66: #{lstm_ae_forward.24} parent=63 // pred_check_branch
          %421 = sbr.rel (%p419) target = $region68
        $region67: #{lstm_ae_forward.24} parent=63 // pred_region
          %p422 = scmp.lt.s32.totalorder %s21, 7
          %s423 = scalar_select %p422, %s21, 7
          %s424 = smul.addr %s423, 2
          %s425 = scalar_lea.vmem %s4, %s424
        $region68: #{lstm_ae_forward.24} parent=63 // pred_fallthru
          _
      $region64: #{lstm_ae_forward.24} parent=5 // pred_fallthru
        _
    $region6: #{lstm_ae_forward.24} parent=1 // loop_footer
      %s19 = sadd.s32 1, %s15
    $region7: #{lstm_ae_forward.24} parent=1 // loop_footer_branch
      %14 = sbr.rel target = $region3
    $region8: #{lstm_ae_forward.24} parent=1 // loop_exit
      _
    %426 = vsyncpa [#allocation3], 1
    %s427 = scalar_lea.sflag [#allocation3], 1
    %428 = vsyncpa %s427, 1
    %429 = vsyncpa [#allocation5], 1

// kernel: lstm_ae_forward.25
$region0: #{lstm_ae_forward.25}
  #allocation0 [shape = 'u32[]', space=smem, size = 0x4, offset = 0x4, fixed_abs, tag = 'smem constant byte address 0x4 - core index']
  #allocation1 [shape = 'u32[144,128]{1,0:T(1,128)}', space=vmem, size = 0x12000, scoped, tag = 'internal scratch']
  %s0 = inlined_call_operand.vmem [shape: f32[16,9], index: 0, kind: input, shape index: {}]
  %s1 = inlined_call_operand.vmem [shape: f32[9,44], index: 1, kind: input, shape index: {}]
  %s2 = inlined_call_operand.vmem [shape: f32[1,44], index: 2, kind: input, shape index: {}]
  %s3 = inlined_call_operand.vmem [shape: f32[16,44], index: 3, kind: output, shape index: {}]
  %s4 = sld [smem:[#allocation0]]
  $region22: #{lstm_ae_forward.25} parent=0
    _
  %s6 = ssub.s32 1, %s4
  %s7 = scalar_select 0, %s6, %s4
  // Predicated region
  $region2: #{lstm_ae_forward.25} parent=0 // pred_check
    _
  $region3: #{lstm_ae_forward.25} parent=0 // pred_check_branch
    %9 = sbr.rel (0) target = $region5
  $region4: #{lstm_ae_forward.25} parent=0 // pred_region
    _
  $region5: #{lstm_ae_forward.25} parent=0 // pred_fallthru
    _
  // Predicated region
  $region6: #{lstm_ae_forward.25} parent=0 // pred_check
    _
  $region7: #{lstm_ae_forward.25} parent=0 // pred_check_branch
    %11 = sbr.rel (0) target = $region9
  $region8: #{lstm_ae_forward.25} parent=0 // pred_region
    _
  $region9: #{lstm_ae_forward.25} parent=0 // pred_fallthru
    _
  // Predicated region
  $region10: #{lstm_ae_forward.25} parent=0 // pred_check
    _
  $region11: #{lstm_ae_forward.25} parent=0 // pred_check_branch
    %13 = sbr.rel (0) target = $region13
  $region12: #{lstm_ae_forward.25} parent=0 // pred_region
    _
  $region13: #{lstm_ae_forward.25} parent=0 // pred_fallthru
    _
  %v14 = vld [vmem:[%s0] sm:$0xff]
  %v15 = vld [vmem:[%s0 + $0x8] sm:$0xff]
  %v16 = vld [vmem:[%s1] sm:$0xff]
  %v17 = vld [vmem:[%s1 + $0x8] sm:$0x1]
  %v18 = vld [vmem:[%s2] sm:$0x1]
  %v20 = vlaneseq
  %v21 = vshrl.u32 %v20, 7
  %v22 = vsub.s32 0, %v21
  %v23 = vrot.slane %v18, %v22
  %vm25 = vcmask 72704
  %v27 = vsel %vm25, %v14, 0
  %v30 = vsel %vm25, %v15, 0
  %vm32 = vcmask 1040384
  %v34 = vsel %vm32, %v17, 0
  %36 = vmatprep.subr.mxu0 0.0
  %37 = vmatpush1.msra.mxu0 %v16
  %38 = vmatprep.subr.mxu0 0.0
  %39 = vmatpush1.msra.mxu0 %v34
  %40 = vmatprep.subr.mxu0 0.0
  %41 = vmatpush1.msra.mxu0 0.0
  %42 = vmatprep.subr.mxu0 0.0
  %43 = vmatpush1.msra.mxu0 0.0
  %44 = vmatprep.subr.mxu0 0.0
  %45 = vmatpush1.msra.mxu0 0.0
  %46 = vmatprep.subr.mxu0 0.0
  %47 = vmatpush1.msra.mxu0 0.0
  %48 = vmatprep.subr.mxu0 0.0
  %49 = vmatpush1.msra.mxu0 0.0
  %50 = vmatprep.subr.mxu0 0.0
  %51 = vmatpush1.msra.mxu0 0.0
  %52 = vmatprep.subr.mxu0 0.0
  %53 = vmatpush1.msra.mxu0 0.0
  %54 = vmatprep.subr.mxu0 0.0
  %55 = vmatpush1.msra.mxu0 0.0
  %56 = vmatprep.subr.mxu0 0.0
  %57 = vmatpush1.msra.mxu0 0.0
  %58 = vmatprep.subr.mxu0 0.0
  %59 = vmatpush1.msra.mxu0 0.0
  %60 = vmatprep.subr.mxu0 0.0
  %61 = vmatpush1.msra.mxu0 0.0
  %62 = vmatprep.subr.mxu0 0.0
  %63 = vmatpush1.msra.mxu0 0.0
  %64 = vmatprep.subr.mxu0 0.0
  %65 = vmatpush1.msra.mxu0 0.0
  %66 = vmatprep.subr.mxu0 0.0
  %67 = vmatpush1.msra.mxu0 0.0
  %68 = vmatprep.subr.mxu0 0.0
  %69 = vmatpush1.msra.mxu0 0.0
  %70 = vmatprep.subr.mxu0 0.0
  %71 = vmatpush1.msra.mxu0 0.0
  %72 = vmatprep.subr.mxu0 0.0
  %73 = vmatpush1.msra.mxu0 0.0
  %74 = vmatprep.subr.mxu0 0.0
  %75 = vmatpush1.msra.mxu0 0.0
  %76 = vmatprep.subr.mxu0 0.0
  %77 = vmatpush1.msra.mxu0 0.0
  %78 = vmatprep.subr.mxu0 0.0
  %79 = vmatpush1.msra.mxu0 0.0
  %80 = vmatprep.subr.mxu0 0.0
  %81 = vmatpush1.msra.mxu0 0.0
  %82 = vmatprep.subr.mxu0 0.0
  %83 = vmatpush1.msra.mxu0 0.0
  %84 = vmatprep.subr.mxu0 0.0
  %85 = vmatpush1.msra.mxu0 0.0
  %86 = vmatprep.subr.mxu0 0.0
  %87 = vmatpush1.msra.mxu0 0.0
  %88 = vmatprep.subr.mxu0 0.0
  %89 = vmatpush1.msra.mxu0 0.0
  %90 = vmatprep.subr.mxu0 0.0
  %91 = vmatpush1.msra.mxu0 0.0
  %92 = vmatprep.subr.mxu0 0.0
  %93 = vmatpush1.msra.mxu0 0.0
  %94 = vmatprep.subr.mxu0 0.0
  %95 = vmatpush1.msra.mxu0 0.0
  %96 = vmatprep.subr.mxu0 0.0
  %97 = vmatpush1.msra.mxu0 0.0
  %98 = vmatprep.subr.mxu0 0.0
  %99 = vmatpush1.msra.mxu0 0.0
  %100 = vmatprep.mubr.f32.mxu0 0.0
  %101 = vmatmul.mubr.f32.gmra.mrb[0].mxu0 %v27
  %v102 = vpop.f32.mrb[0].mxu0
  %v103 = vadd.f32 %v23, %v102
  %v104 = vpop.f32.mrb[0].mxu0
  %105 = vmatprep.mubr.f32.mxu0 0.0
  %106 = vmatmul.mubr.f32.gmra.mrb[0].mxu0 %v30
  %v107 = vpop.f32.mrb[0].mxu0
  %v108 = vadd.f32 %v23, %v107
  %v109 = vpop.f32.mrb[0].mxu0
  %110 = vdwg.mxu0
  %vm111 = vcmask 359424
  %112 = vst.msk [vmem:[%s3] sm:$0xff] %vm111, %v103
  %113 = vst.msk [vmem:[%s3 + $0x8] sm:$0xff] %vm111, %v108
  // Predicated region
  $region14: #{lstm_ae_forward.25} parent=0 // pred_check
    _
  $region15: #{lstm_ae_forward.25} parent=0 // pred_check_branch
    %115 = sbr.rel (0) target = $region17
  $region16: #{lstm_ae_forward.25} parent=0 // pred_region
    _
  $region17: #{lstm_ae_forward.25} parent=0 // pred_fallthru
    _
  // Predicated region
  $region18: #{lstm_ae_forward.25} parent=0 // pred_check
    _
  $region19: #{lstm_ae_forward.25} parent=0 // pred_check_branch
    %117 = sbr.rel (0) target = $region21
  $region20: #{lstm_ae_forward.25} parent=0 // pred_region
    _
  $region21: #{lstm_ae_forward.25} parent=0 // pred_fallthru
    _

// kernel: lstm_ae_forward.26
$region0: #{lstm_ae_forward.26}
  #allocation0 [shape = 'u32[]', space=smem, size = 0x4, offset = 0x4, fixed_abs, tag = 'smem constant byte address 0x4 - core index']
  #allocation1 [shape = 'u32[144,128]{1,0:T(1,128)}', space=vmem, size = 0x12000, scoped, tag = 'internal scratch']
  %s0 = inlined_call_operand.vmem [shape: f32[8,2,44], index: 0, kind: input, shape index: {}]
  %s1 = inlined_call_operand.vmem [shape: f32[11,44], index: 1, kind: input, shape index: {}]
  %s2 = inlined_call_operand.vmem [shape: f32[2,11], index: 2, kind: input, shape index: {}, may-alias: {2,3}]
  %s3 = inlined_call_operand.vmem [shape: f32[2,11], index: 3, kind: input, shape index: {}, may-alias: {2,3}]
  %s4 = inlined_call_operand.vmem [shape: f32[8,2,11], index: 4, kind: output, shape index: {0}]
  %s5 = inlined_call_operand.hbm [shape: f32[2,11], index: 5, kind: output, shape index: {1}]
  %s6 = inlined_call_operand.hbm [shape: f32[2,11], index: 6, kind: output, shape index: {2}]
  %7 = xla_tuple %s4, %s5, %s6
  %s8 = sld [smem:[#allocation0]]
  $region69: #{lstm_ae_forward.26} parent=0
    _
  %s10 = ssub.s32 1, %s8
  %s11 = scalar_select 0, %s10, %s8
  $region1: #{lstm_ae_forward.26} parent=0
    #allocation2 [shape = 'u8[1024]{0}', space=vmem, size = 0x400, scoped, tag = 'output window, operand 1, single buffered']
    #allocation3 [shape = 's32[2]{0}', space=sflag, size = 0x8, scoped, tag = 'scoped memory for lstm_ae_forward.26']
    #allocation4 [shape = 'u8[1024]{0}', space=vmem, size = 0x400, scoped, tag = 'output window, operand 2, single buffered']
    #allocation5 [shape = 's32[1]{0}', space=sflag, size = 0x4, scoped, tag = 'scoped memory for lstm_ae_forward.26']
    %12 = vsyncpa [#allocation3], 0
    %13 = vsyncpa [#allocation5], 0
    loop: start=0, step=1, limit=10
    $region2: #{lstm_ae_forward.26} parent=1 // loop_pre_header
      _
    $region3: #{lstm_ae_forward.26} parent=1 // loop_header
      %s15 = sphi 0, %s19
      %p16 = scmp.ge.s32.totalorder %s15, 10
      %s25 = sphi 0, %s27
      %s28 = sphi 0, %s25
      %s29 = sphi 0, %s28
      %s45 = sphi 0, %s29
      %s49 = sphi 0, %s49
      %s51 = sphi 0, %s49
      %s52 = sphi 0, %s51
      %s66 = sphi 0, %s52
      %s70 = sphi 0, %s70
      %s72 = sphi 0, %s70
      %s73 = sphi 0, %s72
      %s87 = sphi 0, %s73
      %s91 = sphi 0, %s91
      %s93 = sphi 0, %s91
      %s94 = sphi 0, %s93
      %s108 = sphi 0, %s94
      %s114 = sphi 0, %s116
      %s117 = sphi 0, %s114
      %s118 = sphi 0, %s117
      %s134 = sphi 0, %s118
      %s138 = sphi 0, %s138
      %s140 = sphi 0, %s138
      %s141 = sphi 0, %s140
      %s155 = sphi 0, %s141
      %s159 = sphi 0, %s159
      %s161 = sphi 0, %s159
      %s162 = sphi 0, %s161
      %s176 = sphi 0, %s162
    $region4: #{lstm_ae_forward.26} parent=1 // loop_header_branch
      %18 = sbr.rel (%p16) target = $region8
    $region5: #{lstm_ae_forward.26} parent=1 // loop_body
      %s20 = ssub.s32 %s15, 1
      %s21 = ssub.s32 %s15, 2
      %s22 = sadd.s32 %s15, 1
      %s23 = ssub.s32 %s15, %s22
      %p24 = scmp.eq.s32.totalorder %s23, 0
      %s26 = sadd.s32 %s25, 1
      %s27 = scalar_select %p24, %s25, %s26
      %p30 = pneg %p24
      %p31 = scmp.eq.s32.totalorder %s15, 7
      %p32 = por %p30, %p31
      %p33 = scmp.ne.s32.totalorder %s25, %s28
      %p34 = scmp.eq.s32.totalorder %s15, 0
      %p35 = por %p33, %p34
      %p36 = scmp.ne.s32.totalorder %s25, %s28
      %p37 = scmp.eq.s32.totalorder %s20, 7
      %p38 = por %p36, %p37
      %p39 = scmp.ne.s32.totalorder %s28, %s29
      %p40 = scmp.eq.s32.totalorder %s20, 0
      %p41 = por %p39, %p40
      %p42 = scmp.ne.s32.totalorder %s28, %s29
      %p43 = scmp.eq.s32.totalorder %s21, 7
      %p44 = por %p42, %p43
      %p46 = scmp.ne.s32.totalorder %s29, %s45
      %p47 = scmp.eq.s32.totalorder %s21, 0
      %p48 = por %p46, %p47
      %s50 = sadd.s32 %s49, 1
      %p53 = scmp.eq.s32.totalorder %s15, 7
      %p54 = scmp.ne.s32.totalorder %s49, %s51
      %p55 = scmp.eq.s32.totalorder %s15, 0
      %p56 = por %p54, %p55
      %p57 = scmp.ne.s32.totalorder %s49, %s51
      %p58 = scmp.eq.s32.totalorder %s20, 7
      %p59 = por %p57, %p58
      %p60 = scmp.ne.s32.totalorder %s51, %s52
      %p61 = scmp.eq.s32.totalorder %s20, 0
      %p62 = por %p60, %p61
      %p63 = scmp.ne.s32.totalorder %s51, %s52
      %p64 = scmp.eq.s32.totalorder %s21, 7
      %p65 = por %p63, %p64
      %p67 = scmp.ne.s32.totalorder %s52, %s66
      %p68 = scmp.eq.s32.totalorder %s21, 0
      %p69 = por %p67, %p68
      %s71 = sadd.s32 %s70, 1
      %p74 = scmp.eq.s32.totalorder %s15, 7
      %p75 = scmp.ne.s32.totalorder %s70, %s72
      %p76 = scmp.eq.s32.totalorder %s15, 0
      %p77 = por %p75, %p76
      %p78 = scmp.ne.s32.totalorder %s70, %s72
      %p79 = scmp.eq.s32.totalorder %s20, 7
      %p80 = por %p78, %p79
      %p81 = scmp.ne.s32.totalorder %s72, %s73
      %p82 = scmp.eq.s32.totalorder %s20, 0
      %p83 = por %p81, %p82
      %p84 = scmp.ne.s32.totalorder %s72, %s73
      %p85 = scmp.eq.s32.totalorder %s21, 7
      %p86 = por %p84, %p85
      %p88 = scmp.ne.s32.totalorder %s73, %s87
      %p89 = scmp.eq.s32.totalorder %s21, 0
      %p90 = por %p88, %p89
      %s92 = sadd.s32 %s91, 1
      %p95 = scmp.eq.s32.totalorder %s15, 7
      %p96 = scmp.ne.s32.totalorder %s91, %s93
      %p97 = scmp.eq.s32.totalorder %s15, 0
      %p98 = por %p96, %p97
      %p99 = scmp.ne.s32.totalorder %s91, %s93
      %p100 = scmp.eq.s32.totalorder %s20, 7
      %p101 = por %p99, %p100
      %p102 = scmp.ne.s32.totalorder %s93, %s94
      %p103 = scmp.eq.s32.totalorder %s20, 0
      %p104 = por %p102, %p103
      %p105 = scmp.ne.s32.totalorder %s93, %s94
      %p106 = scmp.eq.s32.totalorder %s21, 7
      %p107 = por %p105, %p106
      %p109 = scmp.ne.s32.totalorder %s94, %s108
      %p110 = scmp.eq.s32.totalorder %s21, 0
      %p111 = por %p109, %p110
      %s112 = ssub.s32 %s15, %s22
      %p113 = scmp.eq.s32.totalorder %s112, 0
      %s115 = sadd.s32 %s114, 1
      %s116 = scalar_select %p113, %s114, %s115
      %p119 = pneg %p113
      %p120 = scmp.eq.s32.totalorder %s15, 7
      %p121 = por %p119, %p120
      %p122 = scmp.ne.s32.totalorder %s114, %s117
      %p123 = scmp.eq.s32.totalorder %s15, 0
      %p124 = por %p122, %p123
      %p125 = scmp.ne.s32.totalorder %s114, %s117
      %p126 = scmp.eq.s32.totalorder %s20, 7
      %p127 = por %p125, %p126
      %p128 = scmp.ne.s32.totalorder %s117, %s118
      %p129 = scmp.eq.s32.totalorder %s20, 0
      %p130 = por %p128, %p129
      %p131 = scmp.ne.s32.totalorder %s117, %s118
      %p132 = scmp.eq.s32.totalorder %s21, 7
      %p133 = por %p131, %p132
      %p135 = scmp.ne.s32.totalorder %s118, %s134
      %p136 = scmp.eq.s32.totalorder %s21, 0
      %p137 = por %p135, %p136
      %s139 = sadd.s32 %s138, 1
      %p142 = scmp.eq.s32.totalorder %s15, 7
      %p143 = scmp.ne.s32.totalorder %s138, %s140
      %p144 = scmp.eq.s32.totalorder %s15, 0
      %p145 = por %p143, %p144
      %p146 = scmp.ne.s32.totalorder %s138, %s140
      %p147 = scmp.eq.s32.totalorder %s20, 7
      %p148 = por %p146, %p147
      %p149 = scmp.ne.s32.totalorder %s140, %s141
      %p150 = scmp.eq.s32.totalorder %s20, 0
      %p151 = por %p149, %p150
      %p152 = scmp.ne.s32.totalorder %s140, %s141
      %p153 = scmp.eq.s32.totalorder %s21, 7
      %p154 = por %p152, %p153
      %p156 = scmp.ne.s32.totalorder %s141, %s155
      %p157 = scmp.eq.s32.totalorder %s21, 0
      %p158 = por %p156, %p157
      %s160 = sadd.s32 %s159, 1
      %p163 = scmp.eq.s32.totalorder %s15, 7
      %p164 = scmp.ne.s32.totalorder %s159, %s161
      %p165 = scmp.eq.s32.totalorder %s15, 0
      %p166 = por %p164, %p165
      %p167 = scmp.ne.s32.totalorder %s159, %s161
      %p168 = scmp.eq.s32.totalorder %s20, 7
      %p169 = por %p167, %p168
      %p170 = scmp.ne.s32.totalorder %s161, %s162
      %p171 = scmp.eq.s32.totalorder %s20, 0
      %p172 = por %p170, %p171
      %p173 = scmp.ne.s32.totalorder %s161, %s162
      %p174 = scmp.eq.s32.totalorder %s21, 7
      %p175 = por %p173, %p174
      %p177 = scmp.ne.s32.totalorder %s162, %s176
      %p178 = scmp.eq.s32.totalorder %s21, 0
      %p179 = por %p177, %p178
      %p180 = scmp.le.s32.totalorder 1, %s15
      %p181 = scmp.lt.s32.totalorder %s15, 9
      %p182 = pnand %p180, %p181
      %p183 = pneg %p182
      // Predicated region
      $region9: #{lstm_ae_forward.26} parent=5 // pred_check
        _
      $region10: #{lstm_ae_forward.26} parent=5 // pred_check_branch
        %185 = sbr.rel (%p182) target = $region12
      $region11: #{lstm_ae_forward.26} parent=5 // pred_region
        %s186 = ssub.s32 %s15, 1
        // Predicated region
        $region13: #{lstm_ae_forward.26} parent=11 // pred_check
          %p187 = pneg %p62
        $region14: #{lstm_ae_forward.26} parent=11 // pred_check_branch
          %189 = sbr.rel (%p187) target = $region16
        $region15: #{lstm_ae_forward.26} parent=11 // pred_region
          _
        $region16: #{lstm_ae_forward.26} parent=11 // pred_fallthru
          _
        // Predicated region
        $region17: #{lstm_ae_forward.26} parent=11 // pred_check
          %p190 = pneg %p83
        $region18: #{lstm_ae_forward.26} parent=11 // pred_check_branch
          %192 = sbr.rel (%p190) target = $region20
        $region19: #{lstm_ae_forward.26} parent=11 // pred_region
          _
        $region20: #{lstm_ae_forward.26} parent=11 // pred_fallthru
          _
        // Predicated region
        $region21: #{lstm_ae_forward.26} parent=11 // pred_check
          %p193 = pneg %p104
        $region22: #{lstm_ae_forward.26} parent=11 // pred_check_branch
          %195 = sbr.rel (%p193) target = $region24
        $region23: #{lstm_ae_forward.26} parent=11 // pred_region
          _
        $region24: #{lstm_ae_forward.26} parent=11 // pred_fallthru
          _
      $region12: #{lstm_ae_forward.26} parent=5 // pred_fallthru
        _
      %p196 = scmp.lt.s32.totalorder %s15, 8
      // Predicated region
      $region25: #{lstm_ae_forward.26} parent=5 // pred_check
        %p197 = pneg %p196
      $region26: #{lstm_ae_forward.26} parent=5 // pred_check_branch
        %199 = sbr.rel (%p197) target = $region28
      $region27: #{lstm_ae_forward.26} parent=5 // pred_region
        // Predicated region
        $region29: #{lstm_ae_forward.26} parent=27 // pred_check
          %p200 = pneg %p35
        $region30: #{lstm_ae_forward.26} parent=27 // pred_check_branch
          %202 = sbr.rel (%p200) target = $region32
        $region31: #{lstm_ae_forward.26} parent=27 // pred_region
          %p203 = scmp.lt.s32.totalorder %s15, 7
          %s204 = scalar_select %p203, %s15, 7
          %s205 = smul.addr %s204, 2
          %s206 = scalar_lea.vmem %s0, %s205
        $region32: #{lstm_ae_forward.26} parent=27 // pred_fallthru
          _
      $region28: #{lstm_ae_forward.26} parent=5 // pred_fallthru
        _
      %p207 = scmp.le.s32.totalorder 1, %s15
      %p208 = scmp.lt.s32.totalorder %s15, 9
      %p209 = pnand %p207, %p208
      %p210 = pneg %p209
      // Predicated region
      $region33: #{lstm_ae_forward.26} parent=5 // pred_check
        _
      $region34: #{lstm_ae_forward.26} parent=5 // pred_check_branch
        %212 = sbr.rel (%p209) target = $region36
      $region35: #{lstm_ae_forward.26} parent=5 // pred_region
        %s213 = ssub.s32 %s15, 1
        %p214 = scmp.lt.s32.totalorder %s20, 7
        %s215 = scalar_select %p214, %s20, 7
        %s216 = smul.addr %s215, 2
        %s217 = scalar_lea.vmem %s0, %s216
        %p218 = pneg %p41
        %p219 = pneg %p38
        %p220 = pneg %p62
        %p221 = pneg %p59
        %p222 = pneg %p83
        %p223 = pneg %p80
        %p224 = pneg %p104
        %p225 = pneg %p101
        %p226 = pneg %p130
        %p227 = pneg %p127
        %p228 = scmp.lt.s32.totalorder %s20, 7
        %s229 = scalar_select %p228, %s20, 7
        %s230 = smul.addr %s229, 2
        %s231 = scalar_lea.vmem %s4, %s230
        %p232 = pneg %p151
        %p233 = pneg %p148
        %p234 = pneg %p172
        %p235 = pneg %p169
        %p236 = scmp.lt.s32.totalorder %s20, 7
        %s237 = scalar_select %p236, %s20, 7
        %s238 = smul.addr %s237, 2
        %s239 = scalar_lea.vmem %s0, %s238
        %p240 = scmp.lt.s32.totalorder %s20, 7
        %s241 = scalar_select %p240, %s20, 7
        %s242 = smul.addr %s241, 2
        %s243 = scalar_lea.vmem %s4, %s242
        %p244 = scmp.eq.s32.totalorder %s20, 0
        // Predicated region
        $region37: #{lstm_ae_forward.26} parent=35 // pred_check
          %p245 = pneg %p244
        $region38: #{lstm_ae_forward.26} parent=35 // pred_check_branch
          %247 = sbr.rel (%p245) target = $region40
        $region39: #{lstm_ae_forward.26} parent=35 // pred_region
          %v248 = vld [vmem:[%s2] sm:$0x3]
          %vm249 = vcmask 82944
          %250 = vst.msk [vmem:[#allocation2] sm:$0x3] %vm249, %v248
          %v251 = vld [vmem:[%s3] sm:$0x3]
          %252 = vst.msk [vmem:[#allocation4] sm:$0x3] %vm249, %v251
        $region40: #{lstm_ae_forward.26} parent=35 // pred_fallthru
          _
        %v253 = vld [vmem:[#allocation2] sm:$0x3]
        %v254 = vld [vmem:[#allocation4] sm:$0x3]
        %v255 = vld [vmem:[%s239] sm:$0x3]
        %v256 = vld [vmem:[%s1] sm:$0xff]
        %v257 = vld [vmem:[%s1 + $0x8] sm:$0x7]
        %vm258 = vcmask 89088
        %v260 = vsel %vm258, %v253, 0
        %vm262 = vcmask 1042432
        %v264 = vsel %vm262, %v257, 0
        %266 = vmatprep.subr.mxu0 0.0
        %267 = vmatpush1.msra.mxu0 %v256
        %268 = vmatprep.subr.mxu0 0.0
        %269 = vmatpush1.msra.mxu0 %v264
        %270 = vmatprep.subr.mxu0 0.0
        %271 = vmatpush1.msra.mxu0 0.0
        %272 = vmatprep.subr.mxu0 0.0
        %273 = vmatpush1.msra.mxu0 0.0
        %274 = vmatprep.subr.mxu0 0.0
        %275 = vmatpush1.msra.mxu0 0.0
        %276 = vmatprep.subr.mxu0 0.0
        %277 = vmatpush1.msra.mxu0 0.0
        %278 = vmatprep.subr.mxu0 0.0
        %279 = vmatpush1.msra.mxu0 0.0
        %280 = vmatprep.subr.mxu0 0.0
        %281 = vmatpush1.msra.mxu0 0.0
        %282 = vmatprep.subr.mxu0 0.0
        %283 = vmatpush1.msra.mxu0 0.0
        %284 = vmatprep.subr.mxu0 0.0
        %285 = vmatpush1.msra.mxu0 0.0
        %286 = vmatprep.subr.mxu0 0.0
        %287 = vmatpush1.msra.mxu0 0.0
        %288 = vmatprep.subr.mxu0 0.0
        %289 = vmatpush1.msra.mxu0 0.0
        %290 = vmatprep.subr.mxu0 0.0
        %291 = vmatpush1.msra.mxu0 0.0
        %292 = vmatprep.subr.mxu0 0.0
        %293 = vmatpush1.msra.mxu0 0.0
        %294 = vmatprep.subr.mxu0 0.0
        %295 = vmatpush1.msra.mxu0 0.0
        %296 = vmatprep.subr.mxu0 0.0
        %297 = vmatpush1.msra.mxu0 0.0
        %298 = vmatprep.subr.mxu0 0.0
        %299 = vmatpush1.msra.mxu0 0.0
        %300 = vmatprep.subr.mxu0 0.0
        %301 = vmatpush1.msra.mxu0 0.0
        %302 = vmatprep.subr.mxu0 0.0
        %303 = vmatpush1.msra.mxu0 0.0
        %304 = vmatprep.subr.mxu0 0.0
        %305 = vmatpush1.msra.mxu0 0.0
        %306 = vmatprep.subr.mxu0 0.0
        %307 = vmatpush1.msra.mxu0 0.0
        %308 = vmatprep.subr.mxu0 0.0
        %309 = vmatpush1.msra.mxu0 0.0
        %310 = vmatprep.subr.mxu0 0.0
        %311 = vmatpush1.msra.mxu0 0.0
        %312 = vmatprep.subr.mxu0 0.0
        %313 = vmatpush1.msra.mxu0 0.0
        %314 = vmatprep.subr.mxu0 0.0
        %315 = vmatpush1.msra.mxu0 0.0
        %316 = vmatprep.subr.mxu0 0.0
        %317 = vmatpush1.msra.mxu0 0.0
        %318 = vmatprep.subr.mxu0 0.0
        %319 = vmatpush1.msra.mxu0 0.0
        %320 = vmatprep.subr.mxu0 0.0
        %321 = vmatpush1.msra.mxu0 0.0
        %322 = vmatprep.subr.mxu0 0.0
        %323 = vmatpush1.msra.mxu0 0.0
        %324 = vmatprep.subr.mxu0 0.0
        %325 = vmatpush1.msra.mxu0 0.0
        %326 = vmatprep.subr.mxu0 0.0
        %327 = vmatpush1.msra.mxu0 0.0
        %328 = vmatprep.subr.mxu0 0.0
        %329 = vmatpush1.msra.mxu0 0.0
        %330 = vmatprep.mubr.f32.mxu0 0.0
        %331 = vmatmul.mubr.f32.gmra.mrb[0].mxu0 %v260
        %v332 = vpop.f32.mrb[0].mxu0
        %v333 = vadd.f32 0.0, %v332
        %v334 = vpop.f32.mrb[0].mxu0
        %335 = vdwg.mxu0
        %v336 = vadd.f32 %v255, %v333
        %v337 = vsub.f32 0.0, %v336
        %v338 = vmul.f32 %v337, 1.442695
        %v339 = vpow.pop %v338
        %v340 = vadd.f32 %v339, 1.0
        %v341 = vrcp.pop %v340
        %v342 = vmul.f32 1.0, %v341
        %v343 = vtanh.pop %v336
        %345 = vrot.lane.b32.xlu0 %v254, 11
        %v346 = vpop.permute.xlu0 %345
        %v348 = vmul.f32 %v342, %v346
        %350 = vrot.lane.b32.xlu0 %v343, 106
        %v351 = vpop.permute.xlu0 %350
        %v353 = vmul.f32 %v342, %v351
        %355 = vrot.lane.b32.xlu0 %v353, 11
        %v356 = vpop.permute.xlu0 %355
        %v358 = vadd.f32 %v348, %v356
        %v359 = vtanh.pop %v358
        %361 = vrot.lane.b32.xlu0 %v359, 22
        %v362 = vpop.permute.xlu0 %361
        %v364 = vmul.f32 %v342, %v362
        %366 = vrot.lane.b32.xlu0 %v364, 95
        %v367 = vpop.permute.xlu0 %366
        %vm369 = vcmask 82944
        %370 = vst.msk [vmem:[#allocation2] sm:$0x3] %vm369, %v367
        %372 = vrot.lane.b32.xlu0 %v358, 117
        %v373 = vpop.permute.xlu0 %372
        %375 = vst.msk [vmem:[#allocation4] sm:$0x3] %vm369, %v373
        %376 = vst.msk [vmem:[%s243] sm:$0x3] %vm369, %v367
        %p377 = scmp.lt.s32.totalorder %s20, 7
        %s378 = scalar_select %p377, %s20, 7
        %s379 = smul.addr %s378, 2
        %s380 = scalar_lea.vmem %s4, %s379
        // Predicated region
        $region41: #{lstm_ae_forward.26} parent=35 // pred_check
          %p381 = pneg %p127
        $region42: #{lstm_ae_forward.26} parent=35 // pred_check_branch
          %383 = sbr.rel (%p381) target = $region44
        $region43: #{lstm_ae_forward.26} parent=35 // pred_region
          _
        $region44: #{lstm_ae_forward.26} parent=35 // pred_fallthru
          _
        // Predicated region
        $region45: #{lstm_ae_forward.26} parent=35 // pred_check
          %p384 = pneg %p148
        $region46: #{lstm_ae_forward.26} parent=35 // pred_check_branch
          %386 = sbr.rel (%p384) target = $region48
        $region47: #{lstm_ae_forward.26} parent=35 // pred_region
          %s388 = ssub.s32 32, 32
          %389 = vsyncadd [#allocation3], %s388
          %s391 = sshll.u32 [#allocation2], 4
          %s392 = int_to_ptr.vmem [resolvable:$true] %s391
          %394 = dma.vmem_to_hbm [thread:$0]  %s392, 32, %s5, [#allocation3]
        $region48: #{lstm_ae_forward.26} parent=35 // pred_fallthru
          _
        // Predicated region
        $region49: #{lstm_ae_forward.26} parent=35 // pred_check
          %p395 = pneg %p169
        $region50: #{lstm_ae_forward.26} parent=35 // pred_check_branch
          %397 = sbr.rel (%p395) target = $region52
        $region51: #{lstm_ae_forward.26} parent=35 // pred_region
          %s399 = ssub.s32 32, 32
          %400 = vsyncadd [#allocation5], %s399
          %s402 = sshll.u32 [#allocation4], 4
          %s403 = int_to_ptr.vmem [resolvable:$true] %s402
          %405 = dma.vmem_to_hbm [thread:$0]  %s403, 32, %s6, [#allocation5]
        $region52: #{lstm_ae_forward.26} parent=35 // pred_fallthru
          _
        // Predicated region
        $region53: #{lstm_ae_forward.26} parent=35 // pred_check
          %p406 = pneg %p148
        $region54: #{lstm_ae_forward.26} parent=35 // pred_check_branch
          %408 = sbr.rel (%p406) target = $region56
        $region55: #{lstm_ae_forward.26} parent=35 // pred_region
          %409 = dma.done [#allocation3], 32
        $region56: #{lstm_ae_forward.26} parent=35 // pred_fallthru
          _
        // Predicated region
        $region57: #{lstm_ae_forward.26} parent=35 // pred_check
          %p410 = pneg %p169
        $region58: #{lstm_ae_forward.26} parent=35 // pred_check_branch
          %412 = sbr.rel (%p410) target = $region60
        $region59: #{lstm_ae_forward.26} parent=35 // pred_region
          %413 = dma.done [#allocation5], 32
        $region60: #{lstm_ae_forward.26} parent=35 // pred_fallthru
          _
      $region36: #{lstm_ae_forward.26} parent=5 // pred_fallthru
        _
      %p414 = scmp.le.s32.totalorder 2, %s15
      // Predicated region
      $region61: #{lstm_ae_forward.26} parent=5 // pred_check
        %p415 = pneg %p414
      $region62: #{lstm_ae_forward.26} parent=5 // pred_check_branch
        %417 = sbr.rel (%p415) target = $region64
      $region63: #{lstm_ae_forward.26} parent=5 // pred_region
        %s418 = ssub.s32 %s15, 2
        // Predicated region
        $region65: #{lstm_ae_forward.26} parent=63 // pred_check
          %p419 = pneg %p133
        $region66: #{lstm_ae_forward.26} parent=63 // pred_check_branch
          %421 = sbr.rel (%p419) target = $region68
        $region67: #{lstm_ae_forward.26} parent=63 // pred_region
          %p422 = scmp.lt.s32.totalorder %s21, 7
          %s423 = scalar_select %p422, %s21, 7
          %s424 = smul.addr %s423, 2
          %s425 = scalar_lea.vmem %s4, %s424
        $region68: #{lstm_ae_forward.26} parent=63 // pred_fallthru
          _
      $region64: #{lstm_ae_forward.26} parent=5 // pred_fallthru
        _
    $region6: #{lstm_ae_forward.26} parent=1 // loop_footer
      %s19 = sadd.s32 1, %s15
    $region7: #{lstm_ae_forward.26} parent=1 // loop_footer_branch
      %14 = sbr.rel target = $region3
    $region8: #{lstm_ae_forward.26} parent=1 // loop_exit
      _
    %426 = vsyncpa [#allocation3], 1
    %s427 = scalar_lea.sflag [#allocation3], 1
    %428 = vsyncpa %s427, 1
    %429 = vsyncpa [#allocation5], 1

// kernel: lstm_ae_forward.27
$region0: #{lstm_ae_forward.27}
  #allocation0 [shape = 'u32[]', space=smem, size = 0x4, offset = 0x4, fixed_abs, tag = 'smem constant byte address 0x4 - core index']
  #allocation1 [shape = 'u32[144,128]{1,0:T(1,128)}', space=vmem, size = 0x12000, scoped, tag = 'internal scratch']
  %s0 = inlined_call_operand.vmem [shape: f32[16,11], index: 0, kind: input, shape index: {}]
  %s1 = inlined_call_operand.vmem [shape: f32[11,56], index: 1, kind: input, shape index: {}]
  %s2 = inlined_call_operand.vmem [shape: f32[1,56], index: 2, kind: input, shape index: {}]
  %s3 = inlined_call_operand.vmem [shape: f32[16,56], index: 3, kind: output, shape index: {}]
  %s4 = sld [smem:[#allocation0]]
  $region22: #{lstm_ae_forward.27} parent=0
    _
  %s6 = ssub.s32 1, %s4
  %s7 = scalar_select 0, %s6, %s4
  // Predicated region
  $region2: #{lstm_ae_forward.27} parent=0 // pred_check
    _
  $region3: #{lstm_ae_forward.27} parent=0 // pred_check_branch
    %9 = sbr.rel (0) target = $region5
  $region4: #{lstm_ae_forward.27} parent=0 // pred_region
    _
  $region5: #{lstm_ae_forward.27} parent=0 // pred_fallthru
    _
  // Predicated region
  $region6: #{lstm_ae_forward.27} parent=0 // pred_check
    _
  $region7: #{lstm_ae_forward.27} parent=0 // pred_check_branch
    %11 = sbr.rel (0) target = $region9
  $region8: #{lstm_ae_forward.27} parent=0 // pred_region
    _
  $region9: #{lstm_ae_forward.27} parent=0 // pred_fallthru
    _
  // Predicated region
  $region10: #{lstm_ae_forward.27} parent=0 // pred_check
    _
  $region11: #{lstm_ae_forward.27} parent=0 // pred_check_branch
    %13 = sbr.rel (0) target = $region13
  $region12: #{lstm_ae_forward.27} parent=0 // pred_region
    _
  $region13: #{lstm_ae_forward.27} parent=0 // pred_fallthru
    _
  %v14 = vld [vmem:[%s0] sm:$0xff]
  %v15 = vld [vmem:[%s0 + $0x8] sm:$0xff]
  %v16 = vld [vmem:[%s1] sm:$0xff]
  %v17 = vld [vmem:[%s1 + $0x8] sm:$0x7]
  %v18 = vld [vmem:[%s2] sm:$0x1]
  %v20 = vlaneseq
  %v21 = vshrl.u32 %v20, 7
  %v22 = vsub.s32 0, %v21
  %v23 = vrot.slane %v18, %v22
  %vm25 = vcmask 89088
  %v27 = vsel %vm25, %v14, 0
  %v30 = vsel %vm25, %v15, 0
  %vm32 = vcmask 1042432
  %v34 = vsel %vm32, %v17, 0
  %36 = vmatprep.subr.mxu0 0.0
  %37 = vmatpush1.msra.mxu0 %v16
  %38 = vmatprep.subr.mxu0 0.0
  %39 = vmatpush1.msra.mxu0 %v34
  %40 = vmatprep.subr.mxu0 0.0
  %41 = vmatpush1.msra.mxu0 0.0
  %42 = vmatprep.subr.mxu0 0.0
  %43 = vmatpush1.msra.mxu0 0.0
  %44 = vmatprep.subr.mxu0 0.0
  %45 = vmatpush1.msra.mxu0 0.0
  %46 = vmatprep.subr.mxu0 0.0
  %47 = vmatpush1.msra.mxu0 0.0
  %48 = vmatprep.subr.mxu0 0.0
  %49 = vmatpush1.msra.mxu0 0.0
  %50 = vmatprep.subr.mxu0 0.0
  %51 = vmatpush1.msra.mxu0 0.0
  %52 = vmatprep.subr.mxu0 0.0
  %53 = vmatpush1.msra.mxu0 0.0
  %54 = vmatprep.subr.mxu0 0.0
  %55 = vmatpush1.msra.mxu0 0.0
  %56 = vmatprep.subr.mxu0 0.0
  %57 = vmatpush1.msra.mxu0 0.0
  %58 = vmatprep.subr.mxu0 0.0
  %59 = vmatpush1.msra.mxu0 0.0
  %60 = vmatprep.subr.mxu0 0.0
  %61 = vmatpush1.msra.mxu0 0.0
  %62 = vmatprep.subr.mxu0 0.0
  %63 = vmatpush1.msra.mxu0 0.0
  %64 = vmatprep.subr.mxu0 0.0
  %65 = vmatpush1.msra.mxu0 0.0
  %66 = vmatprep.subr.mxu0 0.0
  %67 = vmatpush1.msra.mxu0 0.0
  %68 = vmatprep.subr.mxu0 0.0
  %69 = vmatpush1.msra.mxu0 0.0
  %70 = vmatprep.subr.mxu0 0.0
  %71 = vmatpush1.msra.mxu0 0.0
  %72 = vmatprep.subr.mxu0 0.0
  %73 = vmatpush1.msra.mxu0 0.0
  %74 = vmatprep.subr.mxu0 0.0
  %75 = vmatpush1.msra.mxu0 0.0
  %76 = vmatprep.subr.mxu0 0.0
  %77 = vmatpush1.msra.mxu0 0.0
  %78 = vmatprep.subr.mxu0 0.0
  %79 = vmatpush1.msra.mxu0 0.0
  %80 = vmatprep.subr.mxu0 0.0
  %81 = vmatpush1.msra.mxu0 0.0
  %82 = vmatprep.subr.mxu0 0.0
  %83 = vmatpush1.msra.mxu0 0.0
  %84 = vmatprep.subr.mxu0 0.0
  %85 = vmatpush1.msra.mxu0 0.0
  %86 = vmatprep.subr.mxu0 0.0
  %87 = vmatpush1.msra.mxu0 0.0
  %88 = vmatprep.subr.mxu0 0.0
  %89 = vmatpush1.msra.mxu0 0.0
  %90 = vmatprep.subr.mxu0 0.0
  %91 = vmatpush1.msra.mxu0 0.0
  %92 = vmatprep.subr.mxu0 0.0
  %93 = vmatpush1.msra.mxu0 0.0
  %94 = vmatprep.subr.mxu0 0.0
  %95 = vmatpush1.msra.mxu0 0.0
  %96 = vmatprep.subr.mxu0 0.0
  %97 = vmatpush1.msra.mxu0 0.0
  %98 = vmatprep.subr.mxu0 0.0
  %99 = vmatpush1.msra.mxu0 0.0
  %100 = vmatprep.mubr.f32.mxu0 0.0
  %101 = vmatmul.mubr.f32.gmra.mrb[0].mxu0 %v27
  %v102 = vpop.f32.mrb[0].mxu0
  %v103 = vadd.f32 %v23, %v102
  %v104 = vpop.f32.mrb[0].mxu0
  %105 = vmatprep.mubr.f32.mxu0 0.0
  %106 = vmatmul.mubr.f32.gmra.mrb[0].mxu0 %v30
  %v107 = vpop.f32.mrb[0].mxu0
  %v108 = vadd.f32 %v23, %v107
  %v109 = vpop.f32.mrb[0].mxu0
  %110 = vdwg.mxu0
  %vm111 = vcmask 457728
  %112 = vst.msk [vmem:[%s3] sm:$0xff] %vm111, %v103
  %113 = vst.msk [vmem:[%s3 + $0x8] sm:$0xff] %vm111, %v108
  // Predicated region
  $region14: #{lstm_ae_forward.27} parent=0 // pred_check
    _
  $region15: #{lstm_ae_forward.27} parent=0 // pred_check_branch
    %115 = sbr.rel (0) target = $region17
  $region16: #{lstm_ae_forward.27} parent=0 // pred_region
    _
  $region17: #{lstm_ae_forward.27} parent=0 // pred_fallthru
    _
  // Predicated region
  $region18: #{lstm_ae_forward.27} parent=0 // pred_check
    _
  $region19: #{lstm_ae_forward.27} parent=0 // pred_check_branch
    %117 = sbr.rel (0) target = $region21
  $region20: #{lstm_ae_forward.27} parent=0 // pred_region
    _
  $region21: #{lstm_ae_forward.27} parent=0 // pred_fallthru
    _

// kernel: lstm_ae_forward.29
$region0: #{lstm_ae_forward.29}
  #allocation0 [shape = 'u32[]', space=smem, size = 0x4, offset = 0x4, fixed_abs, tag = 'smem constant byte address 0x4 - core index']
  #allocation1 [shape = 'u32[144,128]{1,0:T(1,128)}', space=vmem, size = 0x12000, scoped, tag = 'internal scratch']
  %s0 = inlined_call_operand.vmem [shape: f32[16,14], index: 0, kind: input, shape index: {}]
  %s1 = inlined_call_operand.vmem [shape: f32[14,64], index: 1, kind: input, shape index: {}]
  %s2 = inlined_call_operand.vmem [shape: f32[1,64], index: 2, kind: input, shape index: {}]
  %s3 = inlined_call_operand.vmem [shape: f32[16,64], index: 3, kind: output, shape index: {}]
  %s4 = sld [smem:[#allocation0]]
  $region22: #{lstm_ae_forward.29} parent=0
    _
  %s6 = ssub.s32 1, %s4
  %s7 = scalar_select 0, %s6, %s4
  // Predicated region
  $region2: #{lstm_ae_forward.29} parent=0 // pred_check
    _
  $region3: #{lstm_ae_forward.29} parent=0 // pred_check_branch
    %9 = sbr.rel (0) target = $region5
  $region4: #{lstm_ae_forward.29} parent=0 // pred_region
    _
  $region5: #{lstm_ae_forward.29} parent=0 // pred_fallthru
    _
  // Predicated region
  $region6: #{lstm_ae_forward.29} parent=0 // pred_check
    _
  $region7: #{lstm_ae_forward.29} parent=0 // pred_check_branch
    %11 = sbr.rel (0) target = $region9
  $region8: #{lstm_ae_forward.29} parent=0 // pred_region
    _
  $region9: #{lstm_ae_forward.29} parent=0 // pred_fallthru
    _
  // Predicated region
  $region10: #{lstm_ae_forward.29} parent=0 // pred_check
    _
  $region11: #{lstm_ae_forward.29} parent=0 // pred_check_branch
    %13 = sbr.rel (0) target = $region13
  $region12: #{lstm_ae_forward.29} parent=0 // pred_region
    _
  $region13: #{lstm_ae_forward.29} parent=0 // pred_fallthru
    _
  %v14 = vld [vmem:[%s0] sm:$0xff]
  %v15 = vld [vmem:[%s0 + $0x8] sm:$0xff]
  %v16 = vld [vmem:[%s1] sm:$0xff]
  %v17 = vld [vmem:[%s1 + $0x8] sm:$0x3f]
  %v18 = vld [vmem:[%s2] sm:$0x1]
  %v20 = vlaneseq
  %v21 = vshrl.u32 %v20, 7
  %v22 = vsub.s32 0, %v21
  %v23 = vrot.slane %v18, %v22
  %vm25 = vcmask 113664
  %v27 = vsel %vm25, %v14, 0
  %v30 = vsel %vm25, %v15, 0
  %vm32 = vcmask 1045504
  %v34 = vsel %vm32, %v17, 0
  %36 = vmatprep.subr.mxu0 0.0
  %37 = vmatpush1.msra.mxu0 %v16
  %38 = vmatprep.subr.mxu0 0.0
  %39 = vmatpush1.msra.mxu0 %v34
  %40 = vmatprep.subr.mxu0 0.0
  %41 = vmatpush1.msra.mxu0 0.0
  %42 = vmatprep.subr.mxu0 0.0
  %43 = vmatpush1.msra.mxu0 0.0
  %44 = vmatprep.subr.mxu0 0.0
  %45 = vmatpush1.msra.mxu0 0.0
  %46 = vmatprep.subr.mxu0 0.0
  %47 = vmatpush1.msra.mxu0 0.0
  %48 = vmatprep.subr.mxu0 0.0
  %49 = vmatpush1.msra.mxu0 0.0
  %50 = vmatprep.subr.mxu0 0.0
  %51 = vmatpush1.msra.mxu0 0.0
  %52 = vmatprep.subr.mxu0 0.0
  %53 = vmatpush1.msra.mxu0 0.0
  %54 = vmatprep.subr.mxu0 0.0
  %55 = vmatpush1.msra.mxu0 0.0
  %56 = vmatprep.subr.mxu0 0.0
  %57 = vmatpush1.msra.mxu0 0.0
  %58 = vmatprep.subr.mxu0 0.0
  %59 = vmatpush1.msra.mxu0 0.0
  %60 = vmatprep.subr.mxu0 0.0
  %61 = vmatpush1.msra.mxu0 0.0
  %62 = vmatprep.subr.mxu0 0.0
  %63 = vmatpush1.msra.mxu0 0.0
  %64 = vmatprep.subr.mxu0 0.0
  %65 = vmatpush1.msra.mxu0 0.0
  %66 = vmatprep.subr.mxu0 0.0
  %67 = vmatpush1.msra.mxu0 0.0
  %68 = vmatprep.subr.mxu0 0.0
  %69 = vmatpush1.msra.mxu0 0.0
  %70 = vmatprep.subr.mxu0 0.0
  %71 = vmatpush1.msra.mxu0 0.0
  %72 = vmatprep.subr.mxu0 0.0
  %73 = vmatpush1.msra.mxu0 0.0
  %74 = vmatprep.subr.mxu0 0.0
  %75 = vmatpush1.msra.mxu0 0.0
  %76 = vmatprep.subr.mxu0 0.0
  %77 = vmatpush1.msra.mxu0 0.0
  %78 = vmatprep.subr.mxu0 0.0
  %79 = vmatpush1.msra.mxu0 0.0
  %80 = vmatprep.subr.mxu0 0.0
  %81 = vmatpush1.msra.mxu0 0.0
  %82 = vmatprep.subr.mxu0 0.0
  %83 = vmatpush1.msra.mxu0 0.0
  %84 = vmatprep.subr.mxu0 0.0
  %85 = vmatpush1.msra.mxu0 0.0
  %86 = vmatprep.subr.mxu0 0.0
  %87 = vmatpush1.msra.mxu0 0.0
  %88 = vmatprep.subr.mxu0 0.0
  %89 = vmatpush1.msra.mxu0 0.0
  %90 = vmatprep.subr.mxu0 0.0
  %91 = vmatpush1.msra.mxu0 0.0
  %92 = vmatprep.subr.mxu0 0.0
  %93 = vmatpush1.msra.mxu0 0.0
  %94 = vmatprep.subr.mxu0 0.0
  %95 = vmatpush1.msra.mxu0 0.0
  %96 = vmatprep.subr.mxu0 0.0
  %97 = vmatpush1.msra.mxu0 0.0
  %98 = vmatprep.subr.mxu0 0.0
  %99 = vmatpush1.msra.mxu0 0.0
  %100 = vmatprep.mubr.f32.mxu0 0.0
  %101 = vmatmul.mubr.f32.gmra.mrb[0].mxu0 %v27
  %v102 = vpop.f32.mrb[0].mxu0
  %v103 = vadd.f32 %v23, %v102
  %v104 = vpop.f32.mrb[0].mxu0
  %105 = vmatprep.mubr.f32.mxu0 0.0
  %106 = vmatmul.mubr.f32.gmra.mrb[0].mxu0 %v30
  %v107 = vpop.f32.mrb[0].mxu0
  %v108 = vadd.f32 %v23, %v107
  %v109 = vpop.f32.mrb[0].mxu0
  %110 = vdwg.mxu0
  %vm111 = vcmask 523264
  %112 = vst.msk [vmem:[%s3] sm:$0xff] %vm111, %v103
  %113 = vst.msk [vmem:[%s3 + $0x8] sm:$0xff] %vm111, %v108
  // Predicated region
  $region14: #{lstm_ae_forward.29} parent=0 // pred_check
    _
  $region15: #{lstm_ae_forward.29} parent=0 // pred_check_branch
    %115 = sbr.rel (0) target = $region17
  $region16: #{lstm_ae_forward.29} parent=0 // pred_region
    _
  $region17: #{lstm_ae_forward.29} parent=0 // pred_fallthru
    _
  // Predicated region
  $region18: #{lstm_ae_forward.29} parent=0 // pred_check
    _
  $region19: #{lstm_ae_forward.29} parent=0 // pred_check_branch
    %117 = sbr.rel (0) target = $region21
  $region20: #{lstm_ae_forward.29} parent=0 // pred_region
    _
  $region21: #{lstm_ae_forward.29} parent=0 // pred_fallthru
    _

// kernel: lstm_ae_forward.28
$region0: #{lstm_ae_forward.28}
  #allocation0 [shape = 'u32[]', space=smem, size = 0x4, offset = 0x4, fixed_abs, tag = 'smem constant byte address 0x4 - core index']
  #allocation1 [shape = 'u32[144,128]{1,0:T(1,128)}', space=vmem, size = 0x12000, scoped, tag = 'internal scratch']
  %s0 = inlined_call_operand.vmem [shape: f32[8,2,56], index: 0, kind: input, shape index: {}]
  %s1 = inlined_call_operand.vmem [shape: f32[14,56], index: 1, kind: input, shape index: {}]
  %s2 = inlined_call_operand.vmem [shape: f32[2,14], index: 2, kind: input, shape index: {}, may-alias: {2,3}]
  %s3 = inlined_call_operand.vmem [shape: f32[2,14], index: 3, kind: input, shape index: {}, may-alias: {2,3}]
  %s4 = inlined_call_operand.vmem [shape: f32[8,2,14], index: 4, kind: output, shape index: {0}]
  %s5 = inlined_call_operand.hbm [shape: f32[2,14], index: 5, kind: output, shape index: {1}]
  %s6 = inlined_call_operand.hbm [shape: f32[2,14], index: 6, kind: output, shape index: {2}]
  %7 = xla_tuple %s4, %s5, %s6
  %s8 = sld [smem:[#allocation0]]
  $region69: #{lstm_ae_forward.28} parent=0
    _
  %s10 = ssub.s32 1, %s8
  %s11 = scalar_select 0, %s10, %s8
  $region1: #{lstm_ae_forward.28} parent=0
    #allocation2 [shape = 'u8[1024]{0}', space=vmem, size = 0x400, scoped, tag = 'output window, operand 1, single buffered']
    #allocation3 [shape = 's32[2]{0}', space=sflag, size = 0x8, scoped, tag = 'scoped memory for lstm_ae_forward.28']
    #allocation4 [shape = 'u8[1024]{0}', space=vmem, size = 0x400, scoped, tag = 'output window, operand 2, single buffered']
    #allocation5 [shape = 's32[1]{0}', space=sflag, size = 0x4, scoped, tag = 'scoped memory for lstm_ae_forward.28']
    %12 = vsyncpa [#allocation3], 0
    %13 = vsyncpa [#allocation5], 0
    loop: start=0, step=1, limit=10
    $region2: #{lstm_ae_forward.28} parent=1 // loop_pre_header
      _
    $region3: #{lstm_ae_forward.28} parent=1 // loop_header
      %s15 = sphi 0, %s19
      %p16 = scmp.ge.s32.totalorder %s15, 10
      %s25 = sphi 0, %s27
      %s28 = sphi 0, %s25
      %s29 = sphi 0, %s28
      %s45 = sphi 0, %s29
      %s49 = sphi 0, %s49
      %s51 = sphi 0, %s49
      %s52 = sphi 0, %s51
      %s66 = sphi 0, %s52
      %s70 = sphi 0, %s70
      %s72 = sphi 0, %s70
      %s73 = sphi 0, %s72
      %s87 = sphi 0, %s73
      %s91 = sphi 0, %s91
      %s93 = sphi 0, %s91
      %s94 = sphi 0, %s93
      %s108 = sphi 0, %s94
      %s114 = sphi 0, %s116
      %s117 = sphi 0, %s114
      %s118 = sphi 0, %s117
      %s134 = sphi 0, %s118
      %s138 = sphi 0, %s138
      %s140 = sphi 0, %s138
      %s141 = sphi 0, %s140
      %s155 = sphi 0, %s141
      %s159 = sphi 0, %s159
      %s161 = sphi 0, %s159
      %s162 = sphi 0, %s161
      %s176 = sphi 0, %s162
    $region4: #{lstm_ae_forward.28} parent=1 // loop_header_branch
      %18 = sbr.rel (%p16) target = $region8
    $region5: #{lstm_ae_forward.28} parent=1 // loop_body
      %s20 = ssub.s32 %s15, 1
      %s21 = ssub.s32 %s15, 2
      %s22 = sadd.s32 %s15, 1
      %s23 = ssub.s32 %s15, %s22
      %p24 = scmp.eq.s32.totalorder %s23, 0
      %s26 = sadd.s32 %s25, 1
      %s27 = scalar_select %p24, %s25, %s26
      %p30 = pneg %p24
      %p31 = scmp.eq.s32.totalorder %s15, 7
      %p32 = por %p30, %p31
      %p33 = scmp.ne.s32.totalorder %s25, %s28
      %p34 = scmp.eq.s32.totalorder %s15, 0
      %p35 = por %p33, %p34
      %p36 = scmp.ne.s32.totalorder %s25, %s28
      %p37 = scmp.eq.s32.totalorder %s20, 7
      %p38 = por %p36, %p37
      %p39 = scmp.ne.s32.totalorder %s28, %s29
      %p40 = scmp.eq.s32.totalorder %s20, 0
      %p41 = por %p39, %p40
      %p42 = scmp.ne.s32.totalorder %s28, %s29
      %p43 = scmp.eq.s32.totalorder %s21, 7
      %p44 = por %p42, %p43
      %p46 = scmp.ne.s32.totalorder %s29, %s45
      %p47 = scmp.eq.s32.totalorder %s21, 0
      %p48 = por %p46, %p47
      %s50 = sadd.s32 %s49, 1
      %p53 = scmp.eq.s32.totalorder %s15, 7
      %p54 = scmp.ne.s32.totalorder %s49, %s51
      %p55 = scmp.eq.s32.totalorder %s15, 0
      %p56 = por %p54, %p55
      %p57 = scmp.ne.s32.totalorder %s49, %s51
      %p58 = scmp.eq.s32.totalorder %s20, 7
      %p59 = por %p57, %p58
      %p60 = scmp.ne.s32.totalorder %s51, %s52
      %p61 = scmp.eq.s32.totalorder %s20, 0
      %p62 = por %p60, %p61
      %p63 = scmp.ne.s32.totalorder %s51, %s52
      %p64 = scmp.eq.s32.totalorder %s21, 7
      %p65 = por %p63, %p64
      %p67 = scmp.ne.s32.totalorder %s52, %s66
      %p68 = scmp.eq.s32.totalorder %s21, 0
      %p69 = por %p67, %p68
      %s71 = sadd.s32 %s70, 1
      %p74 = scmp.eq.s32.totalorder %s15, 7
      %p75 = scmp.ne.s32.totalorder %s70, %s72
      %p76 = scmp.eq.s32.totalorder %s15, 0
      %p77 = por %p75, %p76
      %p78 = scmp.ne.s32.totalorder %s70, %s72
      %p79 = scmp.eq.s32.totalorder %s20, 7
      %p80 = por %p78, %p79
      %p81 = scmp.ne.s32.totalorder %s72, %s73
      %p82 = scmp.eq.s32.totalorder %s20, 0
      %p83 = por %p81, %p82
      %p84 = scmp.ne.s32.totalorder %s72, %s73
      %p85 = scmp.eq.s32.totalorder %s21, 7
      %p86 = por %p84, %p85
      %p88 = scmp.ne.s32.totalorder %s73, %s87
      %p89 = scmp.eq.s32.totalorder %s21, 0
      %p90 = por %p88, %p89
      %s92 = sadd.s32 %s91, 1
      %p95 = scmp.eq.s32.totalorder %s15, 7
      %p96 = scmp.ne.s32.totalorder %s91, %s93
      %p97 = scmp.eq.s32.totalorder %s15, 0
      %p98 = por %p96, %p97
      %p99 = scmp.ne.s32.totalorder %s91, %s93
      %p100 = scmp.eq.s32.totalorder %s20, 7
      %p101 = por %p99, %p100
      %p102 = scmp.ne.s32.totalorder %s93, %s94
      %p103 = scmp.eq.s32.totalorder %s20, 0
      %p104 = por %p102, %p103
      %p105 = scmp.ne.s32.totalorder %s93, %s94
      %p106 = scmp.eq.s32.totalorder %s21, 7
      %p107 = por %p105, %p106
      %p109 = scmp.ne.s32.totalorder %s94, %s108
      %p110 = scmp.eq.s32.totalorder %s21, 0
      %p111 = por %p109, %p110
      %s112 = ssub.s32 %s15, %s22
      %p113 = scmp.eq.s32.totalorder %s112, 0
      %s115 = sadd.s32 %s114, 1
      %s116 = scalar_select %p113, %s114, %s115
      %p119 = pneg %p113
      %p120 = scmp.eq.s32.totalorder %s15, 7
      %p121 = por %p119, %p120
      %p122 = scmp.ne.s32.totalorder %s114, %s117
      %p123 = scmp.eq.s32.totalorder %s15, 0
      %p124 = por %p122, %p123
      %p125 = scmp.ne.s32.totalorder %s114, %s117
      %p126 = scmp.eq.s32.totalorder %s20, 7
      %p127 = por %p125, %p126
      %p128 = scmp.ne.s32.totalorder %s117, %s118
      %p129 = scmp.eq.s32.totalorder %s20, 0
      %p130 = por %p128, %p129
      %p131 = scmp.ne.s32.totalorder %s117, %s118
      %p132 = scmp.eq.s32.totalorder %s21, 7
      %p133 = por %p131, %p132
      %p135 = scmp.ne.s32.totalorder %s118, %s134
      %p136 = scmp.eq.s32.totalorder %s21, 0
      %p137 = por %p135, %p136
      %s139 = sadd.s32 %s138, 1
      %p142 = scmp.eq.s32.totalorder %s15, 7
      %p143 = scmp.ne.s32.totalorder %s138, %s140
      %p144 = scmp.eq.s32.totalorder %s15, 0
      %p145 = por %p143, %p144
      %p146 = scmp.ne.s32.totalorder %s138, %s140
      %p147 = scmp.eq.s32.totalorder %s20, 7
      %p148 = por %p146, %p147
      %p149 = scmp.ne.s32.totalorder %s140, %s141
      %p150 = scmp.eq.s32.totalorder %s20, 0
      %p151 = por %p149, %p150
      %p152 = scmp.ne.s32.totalorder %s140, %s141
      %p153 = scmp.eq.s32.totalorder %s21, 7
      %p154 = por %p152, %p153
      %p156 = scmp.ne.s32.totalorder %s141, %s155
      %p157 = scmp.eq.s32.totalorder %s21, 0
      %p158 = por %p156, %p157
      %s160 = sadd.s32 %s159, 1
      %p163 = scmp.eq.s32.totalorder %s15, 7
      %p164 = scmp.ne.s32.totalorder %s159, %s161
      %p165 = scmp.eq.s32.totalorder %s15, 0
      %p166 = por %p164, %p165
      %p167 = scmp.ne.s32.totalorder %s159, %s161
      %p168 = scmp.eq.s32.totalorder %s20, 7
      %p169 = por %p167, %p168
      %p170 = scmp.ne.s32.totalorder %s161, %s162
      %p171 = scmp.eq.s32.totalorder %s20, 0
      %p172 = por %p170, %p171
      %p173 = scmp.ne.s32.totalorder %s161, %s162
      %p174 = scmp.eq.s32.totalorder %s21, 7
      %p175 = por %p173, %p174
      %p177 = scmp.ne.s32.totalorder %s162, %s176
      %p178 = scmp.eq.s32.totalorder %s21, 0
      %p179 = por %p177, %p178
      %p180 = scmp.le.s32.totalorder 1, %s15
      %p181 = scmp.lt.s32.totalorder %s15, 9
      %p182 = pnand %p180, %p181
      %p183 = pneg %p182
      // Predicated region
      $region9: #{lstm_ae_forward.28} parent=5 // pred_check
        _
      $region10: #{lstm_ae_forward.28} parent=5 // pred_check_branch
        %185 = sbr.rel (%p182) target = $region12
      $region11: #{lstm_ae_forward.28} parent=5 // pred_region
        %s186 = ssub.s32 %s15, 1
        // Predicated region
        $region13: #{lstm_ae_forward.28} parent=11 // pred_check
          %p187 = pneg %p62
        $region14: #{lstm_ae_forward.28} parent=11 // pred_check_branch
          %189 = sbr.rel (%p187) target = $region16
        $region15: #{lstm_ae_forward.28} parent=11 // pred_region
          _
        $region16: #{lstm_ae_forward.28} parent=11 // pred_fallthru
          _
        // Predicated region
        $region17: #{lstm_ae_forward.28} parent=11 // pred_check
          %p190 = pneg %p83
        $region18: #{lstm_ae_forward.28} parent=11 // pred_check_branch
          %192 = sbr.rel (%p190) target = $region20
        $region19: #{lstm_ae_forward.28} parent=11 // pred_region
          _
        $region20: #{lstm_ae_forward.28} parent=11 // pred_fallthru
          _
        // Predicated region
        $region21: #{lstm_ae_forward.28} parent=11 // pred_check
          %p193 = pneg %p104
        $region22: #{lstm_ae_forward.28} parent=11 // pred_check_branch
          %195 = sbr.rel (%p193) target = $region24
        $region23: #{lstm_ae_forward.28} parent=11 // pred_region
          _
        $region24: #{lstm_ae_forward.28} parent=11 // pred_fallthru
          _
      $region12: #{lstm_ae_forward.28} parent=5 // pred_fallthru
        _
      %p196 = scmp.lt.s32.totalorder %s15, 8
      // Predicated region
      $region25: #{lstm_ae_forward.28} parent=5 // pred_check
        %p197 = pneg %p196
      $region26: #{lstm_ae_forward.28} parent=5 // pred_check_branch
        %199 = sbr.rel (%p197) target = $region28
      $region27: #{lstm_ae_forward.28} parent=5 // pred_region
        // Predicated region
        $region29: #{lstm_ae_forward.28} parent=27 // pred_check
          %p200 = pneg %p35
        $region30: #{lstm_ae_forward.28} parent=27 // pred_check_branch
          %202 = sbr.rel (%p200) target = $region32
        $region31: #{lstm_ae_forward.28} parent=27 // pred_region
          %p203 = scmp.lt.s32.totalorder %s15, 7
          %s204 = scalar_select %p203, %s15, 7
          %s205 = smul.addr %s204, 2
          %s206 = scalar_lea.vmem %s0, %s205
        $region32: #{lstm_ae_forward.28} parent=27 // pred_fallthru
          _
      $region28: #{lstm_ae_forward.28} parent=5 // pred_fallthru
        _
      %p207 = scmp.le.s32.totalorder 1, %s15
      %p208 = scmp.lt.s32.totalorder %s15, 9
      %p209 = pnand %p207, %p208
      %p210 = pneg %p209
      // Predicated region
      $region33: #{lstm_ae_forward.28} parent=5 // pred_check
        _
      $region34: #{lstm_ae_forward.28} parent=5 // pred_check_branch
        %212 = sbr.rel (%p209) target = $region36
      $region35: #{lstm_ae_forward.28} parent=5 // pred_region
        %s213 = ssub.s32 %s15, 1
        %p214 = scmp.lt.s32.totalorder %s20, 7
        %s215 = scalar_select %p214, %s20, 7
        %s216 = smul.addr %s215, 2
        %s217 = scalar_lea.vmem %s0, %s216
        %p218 = pneg %p41
        %p219 = pneg %p38
        %p220 = pneg %p62
        %p221 = pneg %p59
        %p222 = pneg %p83
        %p223 = pneg %p80
        %p224 = pneg %p104
        %p225 = pneg %p101
        %p226 = pneg %p130
        %p227 = pneg %p127
        %p228 = scmp.lt.s32.totalorder %s20, 7
        %s229 = scalar_select %p228, %s20, 7
        %s230 = smul.addr %s229, 2
        %s231 = scalar_lea.vmem %s4, %s230
        %p232 = pneg %p151
        %p233 = pneg %p148
        %p234 = pneg %p172
        %p235 = pneg %p169
        %p236 = scmp.lt.s32.totalorder %s20, 7
        %s237 = scalar_select %p236, %s20, 7
        %s238 = smul.addr %s237, 2
        %s239 = scalar_lea.vmem %s0, %s238
        %p240 = scmp.lt.s32.totalorder %s20, 7
        %s241 = scalar_select %p240, %s20, 7
        %s242 = smul.addr %s241, 2
        %s243 = scalar_lea.vmem %s4, %s242
        %p244 = scmp.eq.s32.totalorder %s20, 0
        // Predicated region
        $region37: #{lstm_ae_forward.28} parent=35 // pred_check
          %p245 = pneg %p244
        $region38: #{lstm_ae_forward.28} parent=35 // pred_check_branch
          %247 = sbr.rel (%p245) target = $region40
        $region39: #{lstm_ae_forward.28} parent=35 // pred_region
          %v248 = vld [vmem:[%s2] sm:$0x3]
          %vm249 = vcmask 107520
          %250 = vst.msk [vmem:[#allocation2] sm:$0x3] %vm249, %v248
          %v251 = vld [vmem:[%s3] sm:$0x3]
          %252 = vst.msk [vmem:[#allocation4] sm:$0x3] %vm249, %v251
        $region40: #{lstm_ae_forward.28} parent=35 // pred_fallthru
          _
        %v253 = vld [vmem:[#allocation2] sm:$0x3]
        %v254 = vld [vmem:[#allocation4] sm:$0x3]
        %v255 = vld [vmem:[%s239] sm:$0x3]
        %v256 = vld [vmem:[%s1] sm:$0xff]
        %v257 = vld [vmem:[%s1 + $0x8] sm:$0x3f]
        %vm258 = vcmask 113664
        %v260 = vsel %vm258, %v253, 0
        %vm262 = vcmask 1045504
        %v264 = vsel %vm262, %v257, 0
        %266 = vmatprep.subr.mxu0 0.0
        %267 = vmatpush1.msra.mxu0 %v256
        %268 = vmatprep.subr.mxu0 0.0
        %269 = vmatpush1.msra.mxu0 %v264
        %270 = vmatprep.subr.mxu0 0.0
        %271 = vmatpush1.msra.mxu0 0.0
        %272 = vmatprep.subr.mxu0 0.0
        %273 = vmatpush1.msra.mxu0 0.0
        %274 = vmatprep.subr.mxu0 0.0
        %275 = vmatpush1.msra.mxu0 0.0
        %276 = vmatprep.subr.mxu0 0.0
        %277 = vmatpush1.msra.mxu0 0.0
        %278 = vmatprep.subr.mxu0 0.0
        %279 = vmatpush1.msra.mxu0 0.0
        %280 = vmatprep.subr.mxu0 0.0
        %281 = vmatpush1.msra.mxu0 0.0
        %282 = vmatprep.subr.mxu0 0.0
        %283 = vmatpush1.msra.mxu0 0.0
        %284 = vmatprep.subr.mxu0 0.0
        %285 = vmatpush1.msra.mxu0 0.0
        %286 = vmatprep.subr.mxu0 0.0
        %287 = vmatpush1.msra.mxu0 0.0
        %288 = vmatprep.subr.mxu0 0.0
        %289 = vmatpush1.msra.mxu0 0.0
        %290 = vmatprep.subr.mxu0 0.0
        %291 = vmatpush1.msra.mxu0 0.0
        %292 = vmatprep.subr.mxu0 0.0
        %293 = vmatpush1.msra.mxu0 0.0
        %294 = vmatprep.subr.mxu0 0.0
        %295 = vmatpush1.msra.mxu0 0.0
        %296 = vmatprep.subr.mxu0 0.0
        %297 = vmatpush1.msra.mxu0 0.0
        %298 = vmatprep.subr.mxu0 0.0
        %299 = vmatpush1.msra.mxu0 0.0
        %300 = vmatprep.subr.mxu0 0.0
        %301 = vmatpush1.msra.mxu0 0.0
        %302 = vmatprep.subr.mxu0 0.0
        %303 = vmatpush1.msra.mxu0 0.0
        %304 = vmatprep.subr.mxu0 0.0
        %305 = vmatpush1.msra.mxu0 0.0
        %306 = vmatprep.subr.mxu0 0.0
        %307 = vmatpush1.msra.mxu0 0.0
        %308 = vmatprep.subr.mxu0 0.0
        %309 = vmatpush1.msra.mxu0 0.0
        %310 = vmatprep.subr.mxu0 0.0
        %311 = vmatpush1.msra.mxu0 0.0
        %312 = vmatprep.subr.mxu0 0.0
        %313 = vmatpush1.msra.mxu0 0.0
        %314 = vmatprep.subr.mxu0 0.0
        %315 = vmatpush1.msra.mxu0 0.0
        %316 = vmatprep.subr.mxu0 0.0
        %317 = vmatpush1.msra.mxu0 0.0
        %318 = vmatprep.subr.mxu0 0.0
        %319 = vmatpush1.msra.mxu0 0.0
        %320 = vmatprep.subr.mxu0 0.0
        %321 = vmatpush1.msra.mxu0 0.0
        %322 = vmatprep.subr.mxu0 0.0
        %323 = vmatpush1.msra.mxu0 0.0
        %324 = vmatprep.subr.mxu0 0.0
        %325 = vmatpush1.msra.mxu0 0.0
        %326 = vmatprep.subr.mxu0 0.0
        %327 = vmatpush1.msra.mxu0 0.0
        %328 = vmatprep.subr.mxu0 0.0
        %329 = vmatpush1.msra.mxu0 0.0
        %330 = vmatprep.mubr.f32.mxu0 0.0
        %331 = vmatmul.mubr.f32.gmra.mrb[0].mxu0 %v260
        %v332 = vpop.f32.mrb[0].mxu0
        %v333 = vadd.f32 0.0, %v332
        %v334 = vpop.f32.mrb[0].mxu0
        %335 = vdwg.mxu0
        %v336 = vadd.f32 %v255, %v333
        %v337 = vsub.f32 0.0, %v336
        %v338 = vmul.f32 %v337, 1.442695
        %v339 = vpow.pop %v338
        %v340 = vadd.f32 %v339, 1.0
        %v341 = vrcp.pop %v340
        %v342 = vmul.f32 1.0, %v341
        %v343 = vtanh.pop %v336
        %345 = vrot.lane.b32.xlu0 %v254, 14
        %v346 = vpop.permute.xlu0 %345
        %v348 = vmul.f32 %v342, %v346
        %350 = vrot.lane.b32.xlu0 %v343, 100
        %v351 = vpop.permute.xlu0 %350
        %v353 = vmul.f32 %v342, %v351
        %355 = vrot.lane.b32.xlu0 %v353, 14
        %v356 = vpop.permute.xlu0 %355
        %v358 = vadd.f32 %v348, %v356
        %v359 = vtanh.pop %v358
        %361 = vrot.lane.b32.xlu0 %v359, 28
        %v362 = vpop.permute.xlu0 %361
        %v364 = vmul.f32 %v342, %v362
        %366 = vrot.lane.b32.xlu0 %v364, 86
        %v367 = vpop.permute.xlu0 %366
        %vm369 = vcmask 107520
        %370 = vst.msk [vmem:[#allocation2] sm:$0x3] %vm369, %v367
        %372 = vrot.lane.b32.xlu0 %v358, 114
        %v373 = vpop.permute.xlu0 %372
        %375 = vst.msk [vmem:[#allocation4] sm:$0x3] %vm369, %v373
        %376 = vst.msk [vmem:[%s243] sm:$0x3] %vm369, %v367
        %p377 = scmp.lt.s32.totalorder %s20, 7
        %s378 = scalar_select %p377, %s20, 7
        %s379 = smul.addr %s378, 2
        %s380 = scalar_lea.vmem %s4, %s379
        // Predicated region
        $region41: #{lstm_ae_forward.28} parent=35 // pred_check
          %p381 = pneg %p127
        $region42: #{lstm_ae_forward.28} parent=35 // pred_check_branch
          %383 = sbr.rel (%p381) target = $region44
        $region43: #{lstm_ae_forward.28} parent=35 // pred_region
          _
        $region44: #{lstm_ae_forward.28} parent=35 // pred_fallthru
          _
        // Predicated region
        $region45: #{lstm_ae_forward.28} parent=35 // pred_check
          %p384 = pneg %p148
        $region46: #{lstm_ae_forward.28} parent=35 // pred_check_branch
          %386 = sbr.rel (%p384) target = $region48
        $region47: #{lstm_ae_forward.28} parent=35 // pred_region
          %s388 = ssub.s32 32, 32
          %389 = vsyncadd [#allocation3], %s388
          %s391 = sshll.u32 [#allocation2], 4
          %s392 = int_to_ptr.vmem [resolvable:$true] %s391
          %394 = dma.vmem_to_hbm [thread:$0]  %s392, 32, %s5, [#allocation3]
        $region48: #{lstm_ae_forward.28} parent=35 // pred_fallthru
          _
        // Predicated region
        $region49: #{lstm_ae_forward.28} parent=35 // pred_check
          %p395 = pneg %p169
        $region50: #{lstm_ae_forward.28} parent=35 // pred_check_branch
          %397 = sbr.rel (%p395) target = $region52
        $region51: #{lstm_ae_forward.28} parent=35 // pred_region
          %s399 = ssub.s32 32, 32
          %400 = vsyncadd [#allocation5], %s399
          %s402 = sshll.u32 [#allocation4], 4
          %s403 = int_to_ptr.vmem [resolvable:$true] %s402
          %405 = dma.vmem_to_hbm [thread:$0]  %s403, 32, %s6, [#allocation5]
        $region52: #{lstm_ae_forward.28} parent=35 // pred_fallthru
          _
        // Predicated region
        $region53: #{lstm_ae_forward.28} parent=35 // pred_check
          %p406 = pneg %p148
        $region54: #{lstm_ae_forward.28} parent=35 // pred_check_branch
          %408 = sbr.rel (%p406) target = $region56
        $region55: #{lstm_ae_forward.28} parent=35 // pred_region
          %409 = dma.done [#allocation3], 32
        $region56: #{lstm_ae_forward.28} parent=35 // pred_fallthru
          _
        // Predicated region
        $region57: #{lstm_ae_forward.28} parent=35 // pred_check
          %p410 = pneg %p169
        $region58: #{lstm_ae_forward.28} parent=35 // pred_check_branch
          %412 = sbr.rel (%p410) target = $region60
        $region59: #{lstm_ae_forward.28} parent=35 // pred_region
          %413 = dma.done [#allocation5], 32
        $region60: #{lstm_ae_forward.28} parent=35 // pred_fallthru
          _
      $region36: #{lstm_ae_forward.28} parent=5 // pred_fallthru
        _
      %p414 = scmp.le.s32.totalorder 2, %s15
      // Predicated region
      $region61: #{lstm_ae_forward.28} parent=5 // pred_check
        %p415 = pneg %p414
      $region62: #{lstm_ae_forward.28} parent=5 // pred_check_branch
        %417 = sbr.rel (%p415) target = $region64
      $region63: #{lstm_ae_forward.28} parent=5 // pred_region
        %s418 = ssub.s32 %s15, 2
        // Predicated region
        $region65: #{lstm_ae_forward.28} parent=63 // pred_check
          %p419 = pneg %p133
        $region66: #{lstm_ae_forward.28} parent=63 // pred_check_branch
          %421 = sbr.rel (%p419) target = $region68
        $region67: #{lstm_ae_forward.28} parent=63 // pred_region
          %p422 = scmp.lt.s32.totalorder %s21, 7
          %s423 = scalar_select %p422, %s21, 7
          %s424 = smul.addr %s423, 2
          %s425 = scalar_lea.vmem %s4, %s424
        $region68: #{lstm_ae_forward.28} parent=63 // pred_fallthru
          _
      $region64: #{lstm_ae_forward.28} parent=5 // pred_fallthru
        _
    $region6: #{lstm_ae_forward.28} parent=1 // loop_footer
      %s19 = sadd.s32 1, %s15
    $region7: #{lstm_ae_forward.28} parent=1 // loop_footer_branch
      %14 = sbr.rel target = $region3
    $region8: #{lstm_ae_forward.28} parent=1 // loop_exit
      _
    %426 = vsyncpa [#allocation3], 1
    %s427 = scalar_lea.sflag [#allocation3], 1
    %428 = vsyncpa %s427, 1
    %429 = vsyncpa [#allocation5], 1

// kernel: lstm_ae_forward.31
$region0: #{lstm_ae_forward.31}
  #allocation0 [shape = 'u32[]', space=smem, size = 0x4, offset = 0x4, fixed_abs, tag = 'smem constant byte address 0x4 - core index']
  #allocation1 [shape = 'u32[144,128]{1,0:T(1,128)}', space=vmem, size = 0x12000, scoped, tag = 'internal scratch']
  %s0 = inlined_call_operand.vmem [shape: f32[16,16], index: 0, kind: input, shape index: {}]
  %s1 = inlined_call_operand.vmem [shape: f32[16,64], index: 1, kind: input, shape index: {}]
  %s2 = inlined_call_operand.vmem [shape: f32[1,64], index: 2, kind: input, shape index: {}]
  %s3 = inlined_call_operand.vmem [shape: f32[16,64], index: 3, kind: output, shape index: {}]
  %s4 = sld [smem:[#allocation0]]
  $region22: #{lstm_ae_forward.31} parent=0
    _
  %s6 = ssub.s32 1, %s4
  %s7 = scalar_select 0, %s6, %s4
  // Predicated region
  $region2: #{lstm_ae_forward.31} parent=0 // pred_check
    _
  $region3: #{lstm_ae_forward.31} parent=0 // pred_check_branch
    %9 = sbr.rel (0) target = $region5
  $region4: #{lstm_ae_forward.31} parent=0 // pred_region
    _
  $region5: #{lstm_ae_forward.31} parent=0 // pred_fallthru
    _
  // Predicated region
  $region6: #{lstm_ae_forward.31} parent=0 // pred_check
    _
  $region7: #{lstm_ae_forward.31} parent=0 // pred_check_branch
    %11 = sbr.rel (0) target = $region9
  $region8: #{lstm_ae_forward.31} parent=0 // pred_region
    _
  $region9: #{lstm_ae_forward.31} parent=0 // pred_fallthru
    _
  // Predicated region
  $region10: #{lstm_ae_forward.31} parent=0 // pred_check
    _
  $region11: #{lstm_ae_forward.31} parent=0 // pred_check_branch
    %13 = sbr.rel (0) target = $region13
  $region12: #{lstm_ae_forward.31} parent=0 // pred_region
    _
  $region13: #{lstm_ae_forward.31} parent=0 // pred_fallthru
    _
  %v14 = vld [vmem:[%s0] sm:$0xff]
  %v15 = vld [vmem:[%s0 + $0x8] sm:$0xff]
  %v16 = vld [vmem:[%s1] sm:$0xff]
  %v17 = vld [vmem:[%s1 + $0x8] sm:$0xff]
  %v18 = vld [vmem:[%s2] sm:$0x1]
  %v20 = vlaneseq
  %v21 = vshrl.u32 %v20, 7
  %v22 = vsub.s32 0, %v21
  %v23 = vrot.slane %v18, %v22
  %vm25 = vcmask 130048
  %v27 = vsel %vm25, %v14, 0
  %v30 = vsel %vm25, %v15, 0
  %32 = vmatprep.subr.mxu0 0.0
  %33 = vmatpush1.msra.mxu0 %v16
  %34 = vmatprep.subr.mxu0 0.0
  %35 = vmatpush1.msra.mxu0 %v17
  %36 = vmatprep.subr.mxu0 0.0
  %37 = vmatpush1.msra.mxu0 0.0
  %38 = vmatprep.subr.mxu0 0.0
  %39 = vmatpush1.msra.mxu0 0.0
  %40 = vmatprep.subr.mxu0 0.0
  %41 = vmatpush1.msra.mxu0 0.0
  %42 = vmatprep.subr.mxu0 0.0
  %43 = vmatpush1.msra.mxu0 0.0
  %44 = vmatprep.subr.mxu0 0.0
  %45 = vmatpush1.msra.mxu0 0.0
  %46 = vmatprep.subr.mxu0 0.0
  %47 = vmatpush1.msra.mxu0 0.0
  %48 = vmatprep.subr.mxu0 0.0
  %49 = vmatpush1.msra.mxu0 0.0
  %50 = vmatprep.subr.mxu0 0.0
  %51 = vmatpush1.msra.mxu0 0.0
  %52 = vmatprep.subr.mxu0 0.0
  %53 = vmatpush1.msra.mxu0 0.0
  %54 = vmatprep.subr.mxu0 0.0
  %55 = vmatpush1.msra.mxu0 0.0
  %56 = vmatprep.subr.mxu0 0.0
  %57 = vmatpush1.msra.mxu0 0.0
  %58 = vmatprep.subr.mxu0 0.0
  %59 = vmatpush1.msra.mxu0 0.0
  %60 = vmatprep.subr.mxu0 0.0
  %61 = vmatpush1.msra.mxu0 0.0
  %62 = vmatprep.subr.mxu0 0.0
  %63 = vmatpush1.msra.mxu0 0.0
  %64 = vmatprep.subr.mxu0 0.0
  %65 = vmatpush1.msra.mxu0 0.0
  %66 = vmatprep.subr.mxu0 0.0
  %67 = vmatpush1.msra.mxu0 0.0
  %68 = vmatprep.subr.mxu0 0.0
  %69 = vmatpush1.msra.mxu0 0.0
  %70 = vmatprep.subr.mxu0 0.0
  %71 = vmatpush1.msra.mxu0 0.0
  %72 = vmatprep.subr.mxu0 0.0
  %73 = vmatpush1.msra.mxu0 0.0
  %74 = vmatprep.subr.mxu0 0.0
  %75 = vmatpush1.msra.mxu0 0.0
  %76 = vmatprep.subr.mxu0 0.0
  %77 = vmatpush1.msra.mxu0 0.0
  %78 = vmatprep.subr.mxu0 0.0
  %79 = vmatpush1.msra.mxu0 0.0
  %80 = vmatprep.subr.mxu0 0.0
  %81 = vmatpush1.msra.mxu0 0.0
  %82 = vmatprep.subr.mxu0 0.0
  %83 = vmatpush1.msra.mxu0 0.0
  %84 = vmatprep.subr.mxu0 0.0
  %85 = vmatpush1.msra.mxu0 0.0
  %86 = vmatprep.subr.mxu0 0.0
  %87 = vmatpush1.msra.mxu0 0.0
  %88 = vmatprep.subr.mxu0 0.0
  %89 = vmatpush1.msra.mxu0 0.0
  %90 = vmatprep.subr.mxu0 0.0
  %91 = vmatpush1.msra.mxu0 0.0
  %92 = vmatprep.subr.mxu0 0.0
  %93 = vmatpush1.msra.mxu0 0.0
  %94 = vmatprep.subr.mxu0 0.0
  %95 = vmatpush1.msra.mxu0 0.0
  %96 = vmatprep.mubr.f32.mxu0 0.0
  %97 = vmatmul.mubr.f32.gmra.mrb[0].mxu0 %v27
  %v98 = vpop.f32.mrb[0].mxu0
  %v99 = vadd.f32 %v23, %v98
  %v100 = vpop.f32.mrb[0].mxu0
  %101 = vmatprep.mubr.f32.mxu0 0.0
  %102 = vmatmul.mubr.f32.gmra.mrb[0].mxu0 %v30
  %v103 = vpop.f32.mrb[0].mxu0
  %v104 = vadd.f32 %v23, %v103
  %v105 = vpop.f32.mrb[0].mxu0
  %106 = vdwg.mxu0
  %vm107 = vcmask 523264
  %108 = vst.msk [vmem:[%s3] sm:$0xff] %vm107, %v99
  %109 = vst.msk [vmem:[%s3 + $0x8] sm:$0xff] %vm107, %v104
  // Predicated region
  $region14: #{lstm_ae_forward.31} parent=0 // pred_check
    _
  $region15: #{lstm_ae_forward.31} parent=0 // pred_check_branch
    %111 = sbr.rel (0) target = $region17
  $region16: #{lstm_ae_forward.31} parent=0 // pred_region
    _
  $region17: #{lstm_ae_forward.31} parent=0 // pred_fallthru
    _
  // Predicated region
  $region18: #{lstm_ae_forward.31} parent=0 // pred_check
    _
  $region19: #{lstm_ae_forward.31} parent=0 // pred_check_branch
    %113 = sbr.rel (0) target = $region21
  $region20: #{lstm_ae_forward.31} parent=0 // pred_region
    _
  $region21: #{lstm_ae_forward.31} parent=0 // pred_fallthru
    _

// kernel: lstm_ae_forward.32
$region0: #{lstm_ae_forward.32}
  #allocation0 [shape = 'u32[]', space=smem, size = 0x4, offset = 0x4, fixed_abs, tag = 'smem constant byte address 0x4 - core index']
  #allocation1 [shape = 'u32[144,128]{1,0:T(1,128)}', space=vmem, size = 0x12000, scoped, tag = 'internal scratch']
  %s0 = inlined_call_operand.vmem [shape: f32[8,2,64], index: 0, kind: input, shape index: {}]
  %s1 = inlined_call_operand.vmem [shape: f32[16,64], index: 1, kind: input, shape index: {}]
  %s2 = inlined_call_operand.vmem [shape: f32[2,16], index: 2, kind: input, shape index: {}]
  %s3 = inlined_call_operand.vmem [shape: f32[2,16], index: 3, kind: input, shape index: {}]
  %s4 = inlined_call_operand.vmem [shape: f32[8,2,16], index: 4, kind: output, shape index: {0}]
  %s5 = inlined_call_operand.hbm [shape: f32[2,16], index: 5, kind: output, shape index: {1}]
  %s6 = inlined_call_operand.hbm [shape: f32[2,16], index: 6, kind: output, shape index: {2}]
  %7 = xla_tuple %s4, %s5, %s6
  %s8 = sld [smem:[#allocation0]]
  $region69: #{lstm_ae_forward.32} parent=0
    _
  %s10 = ssub.s32 1, %s8
  %s11 = scalar_select 0, %s10, %s8
  $region1: #{lstm_ae_forward.32} parent=0
    #allocation2 [shape = 'u8[1024]{0}', space=vmem, size = 0x400, scoped, tag = 'output window, operand 1, single buffered']
    #allocation3 [shape = 's32[2]{0}', space=sflag, size = 0x8, scoped, tag = 'scoped memory for lstm_ae_forward.32']
    #allocation4 [shape = 'u8[1024]{0}', space=vmem, size = 0x400, scoped, tag = 'output window, operand 2, single buffered']
    #allocation5 [shape = 's32[1]{0}', space=sflag, size = 0x4, scoped, tag = 'scoped memory for lstm_ae_forward.32']
    %12 = vsyncpa [#allocation3], 0
    %13 = vsyncpa [#allocation5], 0
    loop: start=0, step=1, limit=10
    $region2: #{lstm_ae_forward.32} parent=1 // loop_pre_header
      _
    $region3: #{lstm_ae_forward.32} parent=1 // loop_header
      %s15 = sphi 0, %s19
      %p16 = scmp.ge.s32.totalorder %s15, 10
      %s25 = sphi 0, %s27
      %s28 = sphi 0, %s25
      %s29 = sphi 0, %s28
      %s45 = sphi 0, %s29
      %s49 = sphi 0, %s49
      %s51 = sphi 0, %s49
      %s52 = sphi 0, %s51
      %s66 = sphi 0, %s52
      %s70 = sphi 0, %s70
      %s72 = sphi 0, %s70
      %s73 = sphi 0, %s72
      %s87 = sphi 0, %s73
      %s91 = sphi 0, %s91
      %s93 = sphi 0, %s91
      %s94 = sphi 0, %s93
      %s108 = sphi 0, %s94
      %s114 = sphi 0, %s116
      %s117 = sphi 0, %s114
      %s118 = sphi 0, %s117
      %s134 = sphi 0, %s118
      %s138 = sphi 0, %s138
      %s140 = sphi 0, %s138
      %s141 = sphi 0, %s140
      %s155 = sphi 0, %s141
      %s159 = sphi 0, %s159
      %s161 = sphi 0, %s159
      %s162 = sphi 0, %s161
      %s176 = sphi 0, %s162
    $region4: #{lstm_ae_forward.32} parent=1 // loop_header_branch
      %18 = sbr.rel (%p16) target = $region8
    $region5: #{lstm_ae_forward.32} parent=1 // loop_body
      %s20 = ssub.s32 %s15, 1
      %s21 = ssub.s32 %s15, 2
      %s22 = sadd.s32 %s15, 1
      %s23 = ssub.s32 %s15, %s22
      %p24 = scmp.eq.s32.totalorder %s23, 0
      %s26 = sadd.s32 %s25, 1
      %s27 = scalar_select %p24, %s25, %s26
      %p30 = pneg %p24
      %p31 = scmp.eq.s32.totalorder %s15, 7
      %p32 = por %p30, %p31
      %p33 = scmp.ne.s32.totalorder %s25, %s28
      %p34 = scmp.eq.s32.totalorder %s15, 0
      %p35 = por %p33, %p34
      %p36 = scmp.ne.s32.totalorder %s25, %s28
      %p37 = scmp.eq.s32.totalorder %s20, 7
      %p38 = por %p36, %p37
      %p39 = scmp.ne.s32.totalorder %s28, %s29
      %p40 = scmp.eq.s32.totalorder %s20, 0
      %p41 = por %p39, %p40
      %p42 = scmp.ne.s32.totalorder %s28, %s29
      %p43 = scmp.eq.s32.totalorder %s21, 7
      %p44 = por %p42, %p43
      %p46 = scmp.ne.s32.totalorder %s29, %s45
      %p47 = scmp.eq.s32.totalorder %s21, 0
      %p48 = por %p46, %p47
      %s50 = sadd.s32 %s49, 1
      %p53 = scmp.eq.s32.totalorder %s15, 7
      %p54 = scmp.ne.s32.totalorder %s49, %s51
      %p55 = scmp.eq.s32.totalorder %s15, 0
      %p56 = por %p54, %p55
      %p57 = scmp.ne.s32.totalorder %s49, %s51
      %p58 = scmp.eq.s32.totalorder %s20, 7
      %p59 = por %p57, %p58
      %p60 = scmp.ne.s32.totalorder %s51, %s52
      %p61 = scmp.eq.s32.totalorder %s20, 0
      %p62 = por %p60, %p61
      %p63 = scmp.ne.s32.totalorder %s51, %s52
      %p64 = scmp.eq.s32.totalorder %s21, 7
      %p65 = por %p63, %p64
      %p67 = scmp.ne.s32.totalorder %s52, %s66
      %p68 = scmp.eq.s32.totalorder %s21, 0
      %p69 = por %p67, %p68
      %s71 = sadd.s32 %s70, 1
      %p74 = scmp.eq.s32.totalorder %s15, 7
      %p75 = scmp.ne.s32.totalorder %s70, %s72
      %p76 = scmp.eq.s32.totalorder %s15, 0
      %p77 = por %p75, %p76
      %p78 = scmp.ne.s32.totalorder %s70, %s72
      %p79 = scmp.eq.s32.totalorder %s20, 7
      %p80 = por %p78, %p79
      %p81 = scmp.ne.s32.totalorder %s72, %s73
      %p82 = scmp.eq.s32.totalorder %s20, 0
      %p83 = por %p81, %p82
      %p84 = scmp.ne.s32.totalorder %s72, %s73
      %p85 = scmp.eq.s32.totalorder %s21, 7
      %p86 = por %p84, %p85
      %p88 = scmp.ne.s32.totalorder %s73, %s87
      %p89 = scmp.eq.s32.totalorder %s21, 0
      %p90 = por %p88, %p89
      %s92 = sadd.s32 %s91, 1
      %p95 = scmp.eq.s32.totalorder %s15, 7
      %p96 = scmp.ne.s32.totalorder %s91, %s93
      %p97 = scmp.eq.s32.totalorder %s15, 0
      %p98 = por %p96, %p97
      %p99 = scmp.ne.s32.totalorder %s91, %s93
      %p100 = scmp.eq.s32.totalorder %s20, 7
      %p101 = por %p99, %p100
      %p102 = scmp.ne.s32.totalorder %s93, %s94
      %p103 = scmp.eq.s32.totalorder %s20, 0
      %p104 = por %p102, %p103
      %p105 = scmp.ne.s32.totalorder %s93, %s94
      %p106 = scmp.eq.s32.totalorder %s21, 7
      %p107 = por %p105, %p106
      %p109 = scmp.ne.s32.totalorder %s94, %s108
      %p110 = scmp.eq.s32.totalorder %s21, 0
      %p111 = por %p109, %p110
      %s112 = ssub.s32 %s15, %s22
      %p113 = scmp.eq.s32.totalorder %s112, 0
      %s115 = sadd.s32 %s114, 1
      %s116 = scalar_select %p113, %s114, %s115
      %p119 = pneg %p113
      %p120 = scmp.eq.s32.totalorder %s15, 7
      %p121 = por %p119, %p120
      %p122 = scmp.ne.s32.totalorder %s114, %s117
      %p123 = scmp.eq.s32.totalorder %s15, 0
      %p124 = por %p122, %p123
      %p125 = scmp.ne.s32.totalorder %s114, %s117
      %p126 = scmp.eq.s32.totalorder %s20, 7
      %p127 = por %p125, %p126
      %p128 = scmp.ne.s32.totalorder %s117, %s118
      %p129 = scmp.eq.s32.totalorder %s20, 0
      %p130 = por %p128, %p129
      %p131 = scmp.ne.s32.totalorder %s117, %s118
      %p132 = scmp.eq.s32.totalorder %s21, 7
      %p133 = por %p131, %p132
      %p135 = scmp.ne.s32.totalorder %s118, %s134
      %p136 = scmp.eq.s32.totalorder %s21, 0
      %p137 = por %p135, %p136
      %s139 = sadd.s32 %s138, 1
      %p142 = scmp.eq.s32.totalorder %s15, 7
      %p143 = scmp.ne.s32.totalorder %s138, %s140
      %p144 = scmp.eq.s32.totalorder %s15, 0
      %p145 = por %p143, %p144
      %p146 = scmp.ne.s32.totalorder %s138, %s140
      %p147 = scmp.eq.s32.totalorder %s20, 7
      %p148 = por %p146, %p147
      %p149 = scmp.ne.s32.totalorder %s140, %s141
      %p150 = scmp.eq.s32.totalorder %s20, 0
      %p151 = por %p149, %p150
      %p152 = scmp.ne.s32.totalorder %s140, %s141
      %p153 = scmp.eq.s32.totalorder %s21, 7
      %p154 = por %p152, %p153
      %p156 = scmp.ne.s32.totalorder %s141, %s155
      %p157 = scmp.eq.s32.totalorder %s21, 0
      %p158 = por %p156, %p157
      %s160 = sadd.s32 %s159, 1
      %p163 = scmp.eq.s32.totalorder %s15, 7
      %p164 = scmp.ne.s32.totalorder %s159, %s161
      %p165 = scmp.eq.s32.totalorder %s15, 0
      %p166 = por %p164, %p165
      %p167 = scmp.ne.s32.totalorder %s159, %s161
      %p168 = scmp.eq.s32.totalorder %s20, 7
      %p169 = por %p167, %p168
      %p170 = scmp.ne.s32.totalorder %s161, %s162
      %p171 = scmp.eq.s32.totalorder %s20, 0
      %p172 = por %p170, %p171
      %p173 = scmp.ne.s32.totalorder %s161, %s162
      %p174 = scmp.eq.s32.totalorder %s21, 7
      %p175 = por %p173, %p174
      %p177 = scmp.ne.s32.totalorder %s162, %s176
      %p178 = scmp.eq.s32.totalorder %s21, 0
      %p179 = por %p177, %p178
      %p180 = scmp.le.s32.totalorder 1, %s15
      %p181 = scmp.lt.s32.totalorder %s15, 9
      %p182 = pnand %p180, %p181
      %p183 = pneg %p182
      // Predicated region
      $region9: #{lstm_ae_forward.32} parent=5 // pred_check
        _
      $region10: #{lstm_ae_forward.32} parent=5 // pred_check_branch
        %185 = sbr.rel (%p182) target = $region12
      $region11: #{lstm_ae_forward.32} parent=5 // pred_region
        %s186 = ssub.s32 %s15, 1
        // Predicated region
        $region13: #{lstm_ae_forward.32} parent=11 // pred_check
          %p187 = pneg %p62
        $region14: #{lstm_ae_forward.32} parent=11 // pred_check_branch
          %189 = sbr.rel (%p187) target = $region16
        $region15: #{lstm_ae_forward.32} parent=11 // pred_region
          _
        $region16: #{lstm_ae_forward.32} parent=11 // pred_fallthru
          _
        // Predicated region
        $region17: #{lstm_ae_forward.32} parent=11 // pred_check
          %p190 = pneg %p83
        $region18: #{lstm_ae_forward.32} parent=11 // pred_check_branch
          %192 = sbr.rel (%p190) target = $region20
        $region19: #{lstm_ae_forward.32} parent=11 // pred_region
          _
        $region20: #{lstm_ae_forward.32} parent=11 // pred_fallthru
          _
        // Predicated region
        $region21: #{lstm_ae_forward.32} parent=11 // pred_check
          %p193 = pneg %p104
        $region22: #{lstm_ae_forward.32} parent=11 // pred_check_branch
          %195 = sbr.rel (%p193) target = $region24
        $region23: #{lstm_ae_forward.32} parent=11 // pred_region
          _
        $region24: #{lstm_ae_forward.32} parent=11 // pred_fallthru
          _
      $region12: #{lstm_ae_forward.32} parent=5 // pred_fallthru
        _
      %p196 = scmp.lt.s32.totalorder %s15, 8
      // Predicated region
      $region25: #{lstm_ae_forward.32} parent=5 // pred_check
        %p197 = pneg %p196
      $region26: #{lstm_ae_forward.32} parent=5 // pred_check_branch
        %199 = sbr.rel (%p197) target = $region28
      $region27: #{lstm_ae_forward.32} parent=5 // pred_region
        // Predicated region
        $region29: #{lstm_ae_forward.32} parent=27 // pred_check
          %p200 = pneg %p35
        $region30: #{lstm_ae_forward.32} parent=27 // pred_check_branch
          %202 = sbr.rel (%p200) target = $region32
        $region31: #{lstm_ae_forward.32} parent=27 // pred_region
          %p203 = scmp.lt.s32.totalorder %s15, 7
          %s204 = scalar_select %p203, %s15, 7
          %s205 = smul.addr %s204, 2
          %s206 = scalar_lea.vmem %s0, %s205
        $region32: #{lstm_ae_forward.32} parent=27 // pred_fallthru
          _
      $region28: #{lstm_ae_forward.32} parent=5 // pred_fallthru
        _
      %p207 = scmp.le.s32.totalorder 1, %s15
      %p208 = scmp.lt.s32.totalorder %s15, 9
      %p209 = pnand %p207, %p208
      %p210 = pneg %p209
      // Predicated region
      $region33: #{lstm_ae_forward.32} parent=5 // pred_check
        _
      $region34: #{lstm_ae_forward.32} parent=5 // pred_check_branch
        %212 = sbr.rel (%p209) target = $region36
      $region35: #{lstm_ae_forward.32} parent=5 // pred_region
        %s213 = ssub.s32 %s15, 1
        %p214 = scmp.lt.s32.totalorder %s20, 7
        %s215 = scalar_select %p214, %s20, 7
        %s216 = smul.addr %s215, 2
        %s217 = scalar_lea.vmem %s0, %s216
        %p218 = pneg %p41
        %p219 = pneg %p38
        %p220 = pneg %p62
        %p221 = pneg %p59
        %p222 = pneg %p83
        %p223 = pneg %p80
        %p224 = pneg %p104
        %p225 = pneg %p101
        %p226 = pneg %p130
        %p227 = pneg %p127
        %p228 = scmp.lt.s32.totalorder %s20, 7
        %s229 = scalar_select %p228, %s20, 7
        %s230 = smul.addr %s229, 2
        %s231 = scalar_lea.vmem %s4, %s230
        %p232 = pneg %p151
        %p233 = pneg %p148
        %p234 = pneg %p172
        %p235 = pneg %p169
        %p236 = scmp.lt.s32.totalorder %s20, 7
        %s237 = scalar_select %p236, %s20, 7
        %s238 = smul.addr %s237, 2
        %s239 = scalar_lea.vmem %s0, %s238
        %p240 = scmp.lt.s32.totalorder %s20, 7
        %s241 = scalar_select %p240, %s20, 7
        %s242 = smul.addr %s241, 2
        %s243 = scalar_lea.vmem %s4, %s242
        %p244 = scmp.eq.s32.totalorder %s20, 0
        // Predicated region
        $region37: #{lstm_ae_forward.32} parent=35 // pred_check
          %p245 = pneg %p244
        $region38: #{lstm_ae_forward.32} parent=35 // pred_check_branch
          %247 = sbr.rel (%p245) target = $region40
        $region39: #{lstm_ae_forward.32} parent=35 // pred_region
          %v248 = vld [vmem:[%s2] sm:$0x3]
          %vm249 = vcmask 123904
          %250 = vst.msk [vmem:[#allocation2] sm:$0x3] %vm249, %v248
          %v251 = vld [vmem:[%s3] sm:$0x3]
          %252 = vst.msk [vmem:[#allocation4] sm:$0x3] %vm249, %v251
        $region40: #{lstm_ae_forward.32} parent=35 // pred_fallthru
          _
        %v253 = vld [vmem:[#allocation2] sm:$0x3]
        %v254 = vld [vmem:[#allocation4] sm:$0x3]
        %v255 = vld [vmem:[%s239] sm:$0x3]
        %v256 = vld [vmem:[%s1] sm:$0xff]
        %v257 = vld [vmem:[%s1 + $0x8] sm:$0xff]
        %vm258 = vcmask 130048
        %v260 = vsel %vm258, %v253, 0
        %262 = vmatprep.subr.mxu0 0.0
        %263 = vmatpush1.msra.mxu0 %v256
        %264 = vmatprep.subr.mxu0 0.0
        %265 = vmatpush1.msra.mxu0 %v257
        %266 = vmatprep.subr.mxu0 0.0
        %267 = vmatpush1.msra.mxu0 0.0
        %268 = vmatprep.subr.mxu0 0.0
        %269 = vmatpush1.msra.mxu0 0.0
        %270 = vmatprep.subr.mxu0 0.0
        %271 = vmatpush1.msra.mxu0 0.0
        %272 = vmatprep.subr.mxu0 0.0
        %273 = vmatpush1.msra.mxu0 0.0
        %274 = vmatprep.subr.mxu0 0.0
        %275 = vmatpush1.msra.mxu0 0.0
        %276 = vmatprep.subr.mxu0 0.0
        %277 = vmatpush1.msra.mxu0 0.0
        %278 = vmatprep.subr.mxu0 0.0
        %279 = vmatpush1.msra.mxu0 0.0
        %280 = vmatprep.subr.mxu0 0.0
        %281 = vmatpush1.msra.mxu0 0.0
        %282 = vmatprep.subr.mxu0 0.0
        %283 = vmatpush1.msra.mxu0 0.0
        %284 = vmatprep.subr.mxu0 0.0
        %285 = vmatpush1.msra.mxu0 0.0
        %286 = vmatprep.subr.mxu0 0.0
        %287 = vmatpush1.msra.mxu0 0.0
        %288 = vmatprep.subr.mxu0 0.0
        %289 = vmatpush1.msra.mxu0 0.0
        %290 = vmatprep.subr.mxu0 0.0
        %291 = vmatpush1.msra.mxu0 0.0
        %292 = vmatprep.subr.mxu0 0.0
        %293 = vmatpush1.msra.mxu0 0.0
        %294 = vmatprep.subr.mxu0 0.0
        %295 = vmatpush1.msra.mxu0 0.0
        %296 = vmatprep.subr.mxu0 0.0
        %297 = vmatpush1.msra.mxu0 0.0
        %298 = vmatprep.subr.mxu0 0.0
        %299 = vmatpush1.msra.mxu0 0.0
        %300 = vmatprep.subr.mxu0 0.0
        %301 = vmatpush1.msra.mxu0 0.0
        %302 = vmatprep.subr.mxu0 0.0
        %303 = vmatpush1.msra.mxu0 0.0
        %304 = vmatprep.subr.mxu0 0.0
        %305 = vmatpush1.msra.mxu0 0.0
        %306 = vmatprep.subr.mxu0 0.0
        %307 = vmatpush1.msra.mxu0 0.0
        %308 = vmatprep.subr.mxu0 0.0
        %309 = vmatpush1.msra.mxu0 0.0
        %310 = vmatprep.subr.mxu0 0.0
        %311 = vmatpush1.msra.mxu0 0.0
        %312 = vmatprep.subr.mxu0 0.0
        %313 = vmatpush1.msra.mxu0 0.0
        %314 = vmatprep.subr.mxu0 0.0
        %315 = vmatpush1.msra.mxu0 0.0
        %316 = vmatprep.subr.mxu0 0.0
        %317 = vmatpush1.msra.mxu0 0.0
        %318 = vmatprep.subr.mxu0 0.0
        %319 = vmatpush1.msra.mxu0 0.0
        %320 = vmatprep.subr.mxu0 0.0
        %321 = vmatpush1.msra.mxu0 0.0
        %322 = vmatprep.subr.mxu0 0.0
        %323 = vmatpush1.msra.mxu0 0.0
        %324 = vmatprep.subr.mxu0 0.0
        %325 = vmatpush1.msra.mxu0 0.0
        %326 = vmatprep.mubr.f32.mxu0 0.0
        %327 = vmatmul.mubr.f32.gmra.mrb[0].mxu0 %v260
        %v328 = vpop.f32.mrb[0].mxu0
        %v329 = vadd.f32 0.0, %v328
        %v330 = vpop.f32.mrb[0].mxu0
        %331 = vdwg.mxu0
        %v332 = vadd.f32 %v255, %v329
        %v333 = vsub.f32 0.0, %v332
        %v334 = vmul.f32 %v333, 1.442695
        %v335 = vpow.pop %v334
        %v336 = vadd.f32 %v335, 1.0
        %v337 = vrcp.pop %v336
        %v338 = vmul.f32 1.0, %v337
        %v339 = vtanh.pop %v332
        %341 = vrot.lane.b32.xlu0 %v254, 16
        %v342 = vpop.permute.xlu0 %341
        %v344 = vmul.f32 %v338, %v342
        %346 = vrot.lane.b32.xlu0 %v339, 96
        %v347 = vpop.permute.xlu0 %346
        %v349 = vmul.f32 %v338, %v347
        %351 = vrot.lane.b32.xlu0 %v349, 16
        %v352 = vpop.permute.xlu0 %351
        %v354 = vadd.f32 %v344, %v352
        %v355 = vtanh.pop %v354
        %357 = vrot.lane.b32.xlu0 %v355, 32
        %v358 = vpop.permute.xlu0 %357
        %v360 = vmul.f32 %v338, %v358
        %362 = vrot.lane.b32.xlu0 %v360, 80
        %v363 = vpop.permute.xlu0 %362
        %vm365 = vcmask 123904
        %366 = vst.msk [vmem:[#allocation2] sm:$0x3] %vm365, %v363
        %368 = vrot.lane.b32.xlu0 %v354, 112
        %v369 = vpop.permute.xlu0 %368
        %371 = vst.msk [vmem:[#allocation4] sm:$0x3] %vm365, %v369
        %372 = vst.msk [vmem:[%s243] sm:$0x3] %vm365, %v363
        %p373 = scmp.lt.s32.totalorder %s20, 7
        %s374 = scalar_select %p373, %s20, 7
        %s375 = smul.addr %s374, 2
        %s376 = scalar_lea.vmem %s4, %s375
        // Predicated region
        $region41: #{lstm_ae_forward.32} parent=35 // pred_check
          %p377 = pneg %p127
        $region42: #{lstm_ae_forward.32} parent=35 // pred_check_branch
          %379 = sbr.rel (%p377) target = $region44
        $region43: #{lstm_ae_forward.32} parent=35 // pred_region
          _
        $region44: #{lstm_ae_forward.32} parent=35 // pred_fallthru
          _
        // Predicated region
        $region45: #{lstm_ae_forward.32} parent=35 // pred_check
          %p380 = pneg %p148
        $region46: #{lstm_ae_forward.32} parent=35 // pred_check_branch
          %382 = sbr.rel (%p380) target = $region48
        $region47: #{lstm_ae_forward.32} parent=35 // pred_region
          %s384 = ssub.s32 32, 32
          %385 = vsyncadd [#allocation3], %s384
          %s387 = sshll.u32 [#allocation2], 4
          %s388 = int_to_ptr.vmem [resolvable:$true] %s387
          %390 = dma.vmem_to_hbm [thread:$0]  %s388, 32, %s5, [#allocation3]
        $region48: #{lstm_ae_forward.32} parent=35 // pred_fallthru
          _
        // Predicated region
        $region49: #{lstm_ae_forward.32} parent=35 // pred_check
          %p391 = pneg %p169
        $region50: #{lstm_ae_forward.32} parent=35 // pred_check_branch
          %393 = sbr.rel (%p391) target = $region52
        $region51: #{lstm_ae_forward.32} parent=35 // pred_region
          %s395 = ssub.s32 32, 32
          %396 = vsyncadd [#allocation5], %s395
          %s398 = sshll.u32 [#allocation4], 4
          %s399 = int_to_ptr.vmem [resolvable:$true] %s398
          %401 = dma.vmem_to_hbm [thread:$0]  %s399, 32, %s6, [#allocation5]
        $region52: #{lstm_ae_forward.32} parent=35 // pred_fallthru
          _
        // Predicated region
        $region53: #{lstm_ae_forward.32} parent=35 // pred_check
          %p402 = pneg %p148
        $region54: #{lstm_ae_forward.32} parent=35 // pred_check_branch
          %404 = sbr.rel (%p402) target = $region56
        $region55: #{lstm_ae_forward.32} parent=35 // pred_region
          %405 = dma.done [#allocation3], 32
        $region56: #{lstm_ae_forward.32} parent=35 // pred_fallthru
          _
        // Predicated region
        $region57: #{lstm_ae_forward.32} parent=35 // pred_check
          %p406 = pneg %p169
        $region58: #{lstm_ae_forward.32} parent=35 // pred_check_branch
          %408 = sbr.rel (%p406) target = $region60
        $region59: #{lstm_ae_forward.32} parent=35 // pred_region
          %409 = dma.done [#allocation5], 32
        $region60: #{lstm_ae_forward.32} parent=35 // pred_fallthru
          _
      $region36: #{lstm_ae_forward.32} parent=5 // pred_fallthru
        _
      %p410 = scmp.le.s32.totalorder 2, %s15
      // Predicated region
      $region61: #{lstm_ae_forward.32} parent=5 // pred_check
        %p411 = pneg %p410
      $region62: #{lstm_ae_forward.32} parent=5 // pred_check_branch
        %413 = sbr.rel (%p411) target = $region64
      $region63: #{lstm_ae_forward.32} parent=5 // pred_region
        %s414 = ssub.s32 %s15, 2
        // Predicated region
        $region65: #{lstm_ae_forward.32} parent=63 // pred_check
          %p415 = pneg %p133
        $region66: #{lstm_ae_forward.32} parent=63 // pred_check_branch
          %417 = sbr.rel (%p415) target = $region68
        $region67: #{lstm_ae_forward.32} parent=63 // pred_region
          %p418 = scmp.lt.s32.totalorder %s21, 7
          %s419 = scalar_select %p418, %s21, 7
          %s420 = smul.addr %s419, 2
          %s421 = scalar_lea.vmem %s4, %s420
        $region68: #{lstm_ae_forward.32} parent=63 // pred_fallthru
          _
      $region64: #{lstm_ae_forward.32} parent=5 // pred_fallthru
        _
    $region6: #{lstm_ae_forward.32} parent=1 // loop_footer
      %s19 = sadd.s32 1, %s15
    $region7: #{lstm_ae_forward.32} parent=1 // loop_footer_branch
      %14 = sbr.rel target = $region3
    $region8: #{lstm_ae_forward.32} parent=1 // loop_exit
      _
    %422 = vsyncpa [#allocation3], 1
    %s423 = scalar_lea.sflag [#allocation3], 1
    %424 = vsyncpa %s423, 1
    %425 = vsyncpa [#allocation5], 1

// kernel: lstm_ae_forward.30
$region0: #{lstm_ae_forward.30}
  #allocation0 [shape = 'u32[]', space=smem, size = 0x4, offset = 0x4, fixed_abs, tag = 'smem constant byte address 0x4 - core index']
  #allocation1 [shape = 'u32[144,128]{1,0:T(1,128)}', space=vmem, size = 0x12000, scoped, tag = 'internal scratch']
  %s0 = inlined_call_operand.vmem [shape: f32[8,2,64], index: 0, kind: input, shape index: {}]
  %s1 = inlined_call_operand.vmem [shape: f32[16,64], index: 1, kind: input, shape index: {}]
  %s2 = inlined_call_operand.vmem [shape: f32[2,16], index: 2, kind: input, shape index: {}, may-alias: {2,3}]
  %s3 = inlined_call_operand.vmem [shape: f32[2,16], index: 3, kind: input, shape index: {}, may-alias: {2,3}]
  %s4 = inlined_call_operand.vmem [shape: f32[8,2,16], index: 4, kind: output, shape index: {0}]
  %s5 = inlined_call_operand.vmem [shape: f32[2,16], index: 5, kind: output, shape index: {1}]
  %s6 = inlined_call_operand.vmem [shape: f32[2,16], index: 6, kind: output, shape index: {2}]
  %7 = xla_tuple %s4, %s5, %s6
  %s8 = sld [smem:[#allocation0]]
  $region69: #{lstm_ae_forward.30} parent=0
    _
  %s10 = ssub.s32 1, %s8
  %s11 = scalar_select 0, %s10, %s8
  loop: start=0, step=1, limit=10
  $region2: #{lstm_ae_forward.30} parent=0 // loop_pre_header
    _
  $region3: #{lstm_ae_forward.30} parent=0 // loop_header
    %s13 = sphi 0, %s17
    %p14 = scmp.ge.s32.totalorder %s13, 10
    %s23 = sphi 0, %s25
    %s26 = sphi 0, %s23
    %s27 = sphi 0, %s26
    %s43 = sphi 0, %s27
    %s47 = sphi 0, %s47
    %s49 = sphi 0, %s47
    %s50 = sphi 0, %s49
    %s64 = sphi 0, %s50
    %s68 = sphi 0, %s68
    %s70 = sphi 0, %s68
    %s71 = sphi 0, %s70
    %s85 = sphi 0, %s71
    %s89 = sphi 0, %s89
    %s91 = sphi 0, %s89
    %s92 = sphi 0, %s91
    %s106 = sphi 0, %s92
    %s112 = sphi 0, %s114
    %s115 = sphi 0, %s112
    %s116 = sphi 0, %s115
    %s132 = sphi 0, %s116
    %s136 = sphi 0, %s136
    %s138 = sphi 0, %s136
    %s139 = sphi 0, %s138
    %s153 = sphi 0, %s139
    %s157 = sphi 0, %s157
    %s159 = sphi 0, %s157
    %s160 = sphi 0, %s159
    %s174 = sphi 0, %s160
  $region4: #{lstm_ae_forward.30} parent=0 // loop_header_branch
    %16 = sbr.rel (%p14) target = $region8
  $region5: #{lstm_ae_forward.30} parent=0 // loop_body
    %s18 = ssub.s32 %s13, 1
    %s19 = ssub.s32 %s13, 2
    %s20 = sadd.s32 %s13, 1
    %s21 = ssub.s32 %s13, %s20
    %p22 = scmp.eq.s32.totalorder %s21, 0
    %s24 = sadd.s32 %s23, 1
    %s25 = scalar_select %p22, %s23, %s24
    %p28 = pneg %p22
    %p29 = scmp.eq.s32.totalorder %s13, 7
    %p30 = por %p28, %p29
    %p31 = scmp.ne.s32.totalorder %s23, %s26
    %p32 = scmp.eq.s32.totalorder %s13, 0
    %p33 = por %p31, %p32
    %p34 = scmp.ne.s32.totalorder %s23, %s26
    %p35 = scmp.eq.s32.totalorder %s18, 7
    %p36 = por %p34, %p35
    %p37 = scmp.ne.s32.totalorder %s26, %s27
    %p38 = scmp.eq.s32.totalorder %s18, 0
    %p39 = por %p37, %p38
    %p40 = scmp.ne.s32.totalorder %s26, %s27
    %p41 = scmp.eq.s32.totalorder %s19, 7
    %p42 = por %p40, %p41
    %p44 = scmp.ne.s32.totalorder %s27, %s43
    %p45 = scmp.eq.s32.totalorder %s19, 0
    %p46 = por %p44, %p45
    %s48 = sadd.s32 %s47, 1
    %p51 = scmp.eq.s32.totalorder %s13, 7
    %p52 = scmp.ne.s32.totalorder %s47, %s49
    %p53 = scmp.eq.s32.totalorder %s13, 0
    %p54 = por %p52, %p53
    %p55 = scmp.ne.s32.totalorder %s47, %s49
    %p56 = scmp.eq.s32.totalorder %s18, 7
    %p57 = por %p55, %p56
    %p58 = scmp.ne.s32.totalorder %s49, %s50
    %p59 = scmp.eq.s32.totalorder %s18, 0
    %p60 = por %p58, %p59
    %p61 = scmp.ne.s32.totalorder %s49, %s50
    %p62 = scmp.eq.s32.totalorder %s19, 7
    %p63 = por %p61, %p62
    %p65 = scmp.ne.s32.totalorder %s50, %s64
    %p66 = scmp.eq.s32.totalorder %s19, 0
    %p67 = por %p65, %p66
    %s69 = sadd.s32 %s68, 1
    %p72 = scmp.eq.s32.totalorder %s13, 7
    %p73 = scmp.ne.s32.totalorder %s68, %s70
    %p74 = scmp.eq.s32.totalorder %s13, 0
    %p75 = por %p73, %p74
    %p76 = scmp.ne.s32.totalorder %s68, %s70
    %p77 = scmp.eq.s32.totalorder %s18, 7
    %p78 = por %p76, %p77
    %p79 = scmp.ne.s32.totalorder %s70, %s71
    %p80 = scmp.eq.s32.totalorder %s18, 0
    %p81 = por %p79, %p80
    %p82 = scmp.ne.s32.totalorder %s70, %s71
    %p83 = scmp.eq.s32.totalorder %s19, 7
    %p84 = por %p82, %p83
    %p86 = scmp.ne.s32.totalorder %s71, %s85
    %p87 = scmp.eq.s32.totalorder %s19, 0
    %p88 = por %p86, %p87
    %s90 = sadd.s32 %s89, 1
    %p93 = scmp.eq.s32.totalorder %s13, 7
    %p94 = scmp.ne.s32.totalorder %s89, %s91
    %p95 = scmp.eq.s32.totalorder %s13, 0
    %p96 = por %p94, %p95
    %p97 = scmp.ne.s32.totalorder %s89, %s91
    %p98 = scmp.eq.s32.totalorder %s18, 7
    %p99 = por %p97, %p98
    %p100 = scmp.ne.s32.totalorder %s91, %s92
    %p101 = scmp.eq.s32.totalorder %s18, 0
    %p102 = por %p100, %p101
    %p103 = scmp.ne.s32.totalorder %s91, %s92
    %p104 = scmp.eq.s32.totalorder %s19, 7
    %p105 = por %p103, %p104
    %p107 = scmp.ne.s32.totalorder %s92, %s106
    %p108 = scmp.eq.s32.totalorder %s19, 0
    %p109 = por %p107, %p108
    %s110 = ssub.s32 %s13, %s20
    %p111 = scmp.eq.s32.totalorder %s110, 0
    %s113 = sadd.s32 %s112, 1
    %s114 = scalar_select %p111, %s112, %s113
    %p117 = pneg %p111
    %p118 = scmp.eq.s32.totalorder %s13, 7
    %p119 = por %p117, %p118
    %p120 = scmp.ne.s32.totalorder %s112, %s115
    %p121 = scmp.eq.s32.totalorder %s13, 0
    %p122 = por %p120, %p121
    %p123 = scmp.ne.s32.totalorder %s112, %s115
    %p124 = scmp.eq.s32.totalorder %s18, 7
    %p125 = por %p123, %p124
    %p126 = scmp.ne.s32.totalorder %s115, %s116
    %p127 = scmp.eq.s32.totalorder %s18, 0
    %p128 = por %p126, %p127
    %p129 = scmp.ne.s32.totalorder %s115, %s116
    %p130 = scmp.eq.s32.totalorder %s19, 7
    %p131 = por %p129, %p130
    %p133 = scmp.ne.s32.totalorder %s116, %s132
    %p134 = scmp.eq.s32.totalorder %s19, 0
    %p135 = por %p133, %p134
    %s137 = sadd.s32 %s136, 1
    %p140 = scmp.eq.s32.totalorder %s13, 7
    %p141 = scmp.ne.s32.totalorder %s136, %s138
    %p142 = scmp.eq.s32.totalorder %s13, 0
    %p143 = por %p141, %p142
    %p144 = scmp.ne.s32.totalorder %s136, %s138
    %p145 = scmp.eq.s32.totalorder %s18, 7
    %p146 = por %p144, %p145
    %p147 = scmp.ne.s32.totalorder %s138, %s139
    %p148 = scmp.eq.s32.totalorder %s18, 0
    %p149 = por %p147, %p148
    %p150 = scmp.ne.s32.totalorder %s138, %s139
    %p151 = scmp.eq.s32.totalorder %s19, 7
    %p152 = por %p150, %p151
    %p154 = scmp.ne.s32.totalorder %s139, %s153
    %p155 = scmp.eq.s32.totalorder %s19, 0
    %p156 = por %p154, %p155
    %s158 = sadd.s32 %s157, 1
    %p161 = scmp.eq.s32.totalorder %s13, 7
    %p162 = scmp.ne.s32.totalorder %s157, %s159
    %p163 = scmp.eq.s32.totalorder %s13, 0
    %p164 = por %p162, %p163
    %p165 = scmp.ne.s32.totalorder %s157, %s159
    %p166 = scmp.eq.s32.totalorder %s18, 7
    %p167 = por %p165, %p166
    %p168 = scmp.ne.s32.totalorder %s159, %s160
    %p169 = scmp.eq.s32.totalorder %s18, 0
    %p170 = por %p168, %p169
    %p171 = scmp.ne.s32.totalorder %s159, %s160
    %p172 = scmp.eq.s32.totalorder %s19, 7
    %p173 = por %p171, %p172
    %p175 = scmp.ne.s32.totalorder %s160, %s174
    %p176 = scmp.eq.s32.totalorder %s19, 0
    %p177 = por %p175, %p176
    %p178 = scmp.le.s32.totalorder 1, %s13
    %p179 = scmp.lt.s32.totalorder %s13, 9
    %p180 = pnand %p178, %p179
    %p181 = pneg %p180
    // Predicated region
    $region9: #{lstm_ae_forward.30} parent=5 // pred_check
      _
    $region10: #{lstm_ae_forward.30} parent=5 // pred_check_branch
      %183 = sbr.rel (%p180) target = $region12
    $region11: #{lstm_ae_forward.30} parent=5 // pred_region
      %s184 = ssub.s32 %s13, 1
      // Predicated region
      $region13: #{lstm_ae_forward.30} parent=11 // pred_check
        %p185 = pneg %p60
      $region14: #{lstm_ae_forward.30} parent=11 // pred_check_branch
        %187 = sbr.rel (%p185) target = $region16
      $region15: #{lstm_ae_forward.30} parent=11 // pred_region
        _
      $region16: #{lstm_ae_forward.30} parent=11 // pred_fallthru
        _
      // Predicated region
      $region17: #{lstm_ae_forward.30} parent=11 // pred_check
        %p188 = pneg %p81
      $region18: #{lstm_ae_forward.30} parent=11 // pred_check_branch
        %190 = sbr.rel (%p188) target = $region20
      $region19: #{lstm_ae_forward.30} parent=11 // pred_region
        _
      $region20: #{lstm_ae_forward.30} parent=11 // pred_fallthru
        _
      // Predicated region
      $region21: #{lstm_ae_forward.30} parent=11 // pred_check
        %p191 = pneg %p102
      $region22: #{lstm_ae_forward.30} parent=11 // pred_check_branch
        %193 = sbr.rel (%p191) target = $region24
      $region23: #{lstm_ae_forward.30} parent=11 // pred_region
        _
      $region24: #{lstm_ae_forward.30} parent=11 // pred_fallthru
        _
    $region12: #{lstm_ae_forward.30} parent=5 // pred_fallthru
      _
    %p194 = scmp.lt.s32.totalorder %s13, 8
    // Predicated region
    $region25: #{lstm_ae_forward.30} parent=5 // pred_check
      %p195 = pneg %p194
    $region26: #{lstm_ae_forward.30} parent=5 // pred_check_branch
      %197 = sbr.rel (%p195) target = $region28
    $region27: #{lstm_ae_forward.30} parent=5 // pred_region
      // Predicated region
      $region29: #{lstm_ae_forward.30} parent=27 // pred_check
        %p198 = pneg %p33
      $region30: #{lstm_ae_forward.30} parent=27 // pred_check_branch
        %200 = sbr.rel (%p198) target = $region32
      $region31: #{lstm_ae_forward.30} parent=27 // pred_region
        %p201 = scmp.lt.s32.totalorder %s13, 7
        %s202 = scalar_select %p201, %s13, 7
        %s203 = smul.addr %s202, 2
        %s204 = scalar_lea.vmem %s0, %s203
      $region32: #{lstm_ae_forward.30} parent=27 // pred_fallthru
        _
    $region28: #{lstm_ae_forward.30} parent=5 // pred_fallthru
      _
    %p205 = scmp.le.s32.totalorder 1, %s13
    %p206 = scmp.lt.s32.totalorder %s13, 9
    %p207 = pnand %p205, %p206
    %p208 = pneg %p207
    // Predicated region
    $region33: #{lstm_ae_forward.30} parent=5 // pred_check
      _
    $region34: #{lstm_ae_forward.30} parent=5 // pred_check_branch
      %210 = sbr.rel (%p207) target = $region36
    $region35: #{lstm_ae_forward.30} parent=5 // pred_region
      %s211 = ssub.s32 %s13, 1
      %p212 = scmp.lt.s32.totalorder %s18, 7
      %s213 = scalar_select %p212, %s18, 7
      %s214 = smul.addr %s213, 2
      %s215 = scalar_lea.vmem %s0, %s214
      %p216 = pneg %p39
      %p217 = pneg %p36
      %p218 = pneg %p60
      %p219 = pneg %p57
      %p220 = pneg %p81
      %p221 = pneg %p78
      %p222 = pneg %p102
      %p223 = pneg %p99
      %p224 = pneg %p128
      %p225 = pneg %p125
      %p226 = scmp.lt.s32.totalorder %s18, 7
      %s227 = scalar_select %p226, %s18, 7
      %s228 = smul.addr %s227, 2
      %s229 = scalar_lea.vmem %s4, %s228
      %p230 = pneg %p149
      %p231 = pneg %p146
      %p232 = pneg %p170
      %p233 = pneg %p167
      %p234 = scmp.lt.s32.totalorder %s18, 7
      %s235 = scalar_select %p234, %s18, 7
      %s236 = smul.addr %s235, 2
      %s237 = scalar_lea.vmem %s0, %s236
      %p238 = scmp.lt.s32.totalorder %s18, 7
      %s239 = scalar_select %p238, %s18, 7
      %s240 = smul.addr %s239, 2
      %s241 = scalar_lea.vmem %s4, %s240
      %p242 = scmp.eq.s32.totalorder %s18, 0
      // Predicated region
      $region37: #{lstm_ae_forward.30} parent=35 // pred_check
        %p243 = pneg %p242
      $region38: #{lstm_ae_forward.30} parent=35 // pred_check_branch
        %245 = sbr.rel (%p243) target = $region40
      $region39: #{lstm_ae_forward.30} parent=35 // pred_region
        %v246 = vld [vmem:[%s2] sm:$0x3]
        %vm247 = vcmask 123904
        %248 = vst.msk [vmem:[%s5] sm:$0x3] %vm247, %v246
        %v249 = vld [vmem:[%s3] sm:$0x3]
        %250 = vst.msk [vmem:[%s6] sm:$0x3] %vm247, %v249
      $region40: #{lstm_ae_forward.30} parent=35 // pred_fallthru
        _
      %v251 = vld [vmem:[%s5] sm:$0x3]
      %v252 = vld [vmem:[%s6] sm:$0x3]
      %v253 = vld [vmem:[%s237] sm:$0x3]
      %v254 = vld [vmem:[%s1] sm:$0xff]
      %v255 = vld [vmem:[%s1 + $0x8] sm:$0xff]
      %vm256 = vcmask 130048
      %v258 = vsel %vm256, %v251, 0
      %260 = vmatprep.subr.mxu0 0.0
      %261 = vmatpush1.msra.mxu0 %v254
      %262 = vmatprep.subr.mxu0 0.0
      %263 = vmatpush1.msra.mxu0 %v255
      %264 = vmatprep.subr.mxu0 0.0
      %265 = vmatpush1.msra.mxu0 0.0
      %266 = vmatprep.subr.mxu0 0.0
      %267 = vmatpush1.msra.mxu0 0.0
      %268 = vmatprep.subr.mxu0 0.0
      %269 = vmatpush1.msra.mxu0 0.0
      %270 = vmatprep.subr.mxu0 0.0
      %271 = vmatpush1.msra.mxu0 0.0
      %272 = vmatprep.subr.mxu0 0.0
      %273 = vmatpush1.msra.mxu0 0.0
      %274 = vmatprep.subr.mxu0 0.0
      %275 = vmatpush1.msra.mxu0 0.0
      %276 = vmatprep.subr.mxu0 0.0
      %277 = vmatpush1.msra.mxu0 0.0
      %278 = vmatprep.subr.mxu0 0.0
      %279 = vmatpush1.msra.mxu0 0.0
      %280 = vmatprep.subr.mxu0 0.0
      %281 = vmatpush1.msra.mxu0 0.0
      %282 = vmatprep.subr.mxu0 0.0
      %283 = vmatpush1.msra.mxu0 0.0
      %284 = vmatprep.subr.mxu0 0.0
      %285 = vmatpush1.msra.mxu0 0.0
      %286 = vmatprep.subr.mxu0 0.0
      %287 = vmatpush1.msra.mxu0 0.0
      %288 = vmatprep.subr.mxu0 0.0
      %289 = vmatpush1.msra.mxu0 0.0
      %290 = vmatprep.subr.mxu0 0.0
      %291 = vmatpush1.msra.mxu0 0.0
      %292 = vmatprep.subr.mxu0 0.0
      %293 = vmatpush1.msra.mxu0 0.0
      %294 = vmatprep.subr.mxu0 0.0
      %295 = vmatpush1.msra.mxu0 0.0
      %296 = vmatprep.subr.mxu0 0.0
      %297 = vmatpush1.msra.mxu0 0.0
      %298 = vmatprep.subr.mxu0 0.0
      %299 = vmatpush1.msra.mxu0 0.0
      %300 = vmatprep.subr.mxu0 0.0
      %301 = vmatpush1.msra.mxu0 0.0
      %302 = vmatprep.subr.mxu0 0.0
      %303 = vmatpush1.msra.mxu0 0.0
      %304 = vmatprep.subr.mxu0 0.0
      %305 = vmatpush1.msra.mxu0 0.0
      %306 = vmatprep.subr.mxu0 0.0
      %307 = vmatpush1.msra.mxu0 0.0
      %308 = vmatprep.subr.mxu0 0.0
      %309 = vmatpush1.msra.mxu0 0.0
      %310 = vmatprep.subr.mxu0 0.0
      %311 = vmatpush1.msra.mxu0 0.0
      %312 = vmatprep.subr.mxu0 0.0
      %313 = vmatpush1.msra.mxu0 0.0
      %314 = vmatprep.subr.mxu0 0.0
      %315 = vmatpush1.msra.mxu0 0.0
      %316 = vmatprep.subr.mxu0 0.0
      %317 = vmatpush1.msra.mxu0 0.0
      %318 = vmatprep.subr.mxu0 0.0
      %319 = vmatpush1.msra.mxu0 0.0
      %320 = vmatprep.subr.mxu0 0.0
      %321 = vmatpush1.msra.mxu0 0.0
      %322 = vmatprep.subr.mxu0 0.0
      %323 = vmatpush1.msra.mxu0 0.0
      %324 = vmatprep.mubr.f32.mxu0 0.0
      %325 = vmatmul.mubr.f32.gmra.mrb[0].mxu0 %v258
      %v326 = vpop.f32.mrb[0].mxu0
      %v327 = vadd.f32 0.0, %v326
      %v328 = vpop.f32.mrb[0].mxu0
      %329 = vdwg.mxu0
      %v330 = vadd.f32 %v253, %v327
      %v331 = vsub.f32 0.0, %v330
      %v332 = vmul.f32 %v331, 1.442695
      %v333 = vpow.pop %v332
      %v334 = vadd.f32 %v333, 1.0
      %v335 = vrcp.pop %v334
      %v336 = vmul.f32 1.0, %v335
      %v337 = vtanh.pop %v330
      %339 = vrot.lane.b32.xlu0 %v252, 16
      %v340 = vpop.permute.xlu0 %339
      %v342 = vmul.f32 %v336, %v340
      %344 = vrot.lane.b32.xlu0 %v337, 96
      %v345 = vpop.permute.xlu0 %344
      %v347 = vmul.f32 %v336, %v345
      %349 = vrot.lane.b32.xlu0 %v347, 16
      %v350 = vpop.permute.xlu0 %349
      %v352 = vadd.f32 %v342, %v350
      %v353 = vtanh.pop %v352
      %355 = vrot.lane.b32.xlu0 %v353, 32
      %v356 = vpop.permute.xlu0 %355
      %v358 = vmul.f32 %v336, %v356
      %360 = vrot.lane.b32.xlu0 %v358, 80
      %v361 = vpop.permute.xlu0 %360
      %vm363 = vcmask 123904
      %364 = vst.msk [vmem:[%s5] sm:$0x3] %vm363, %v361
      %366 = vrot.lane.b32.xlu0 %v352, 112
      %v367 = vpop.permute.xlu0 %366
      %369 = vst.msk [vmem:[%s6] sm:$0x3] %vm363, %v367
      %370 = vst.msk [vmem:[%s241] sm:$0x3] %vm363, %v361
      %p371 = scmp.lt.s32.totalorder %s18, 7
      %s372 = scalar_select %p371, %s18, 7
      %s373 = smul.addr %s372, 2
      %s374 = scalar_lea.vmem %s4, %s373
      // Predicated region
      $region41: #{lstm_ae_forward.30} parent=35 // pred_check
        %p375 = pneg %p125
      $region42: #{lstm_ae_forward.30} parent=35 // pred_check_branch
        %377 = sbr.rel (%p375) target = $region44
      $region43: #{lstm_ae_forward.30} parent=35 // pred_region
        _
      $region44: #{lstm_ae_forward.30} parent=35 // pred_fallthru
        _
      // Predicated region
      $region45: #{lstm_ae_forward.30} parent=35 // pred_check
        %p378 = pneg %p146
      $region46: #{lstm_ae_forward.30} parent=35 // pred_check_branch
        %380 = sbr.rel (%p378) target = $region48
      $region47: #{lstm_ae_forward.30} parent=35 // pred_region
        _
      $region48: #{lstm_ae_forward.30} parent=35 // pred_fallthru
        _
      // Predicated region
      $region49: #{lstm_ae_forward.30} parent=35 // pred_check
        %p381 = pneg %p167
      $region50: #{lstm_ae_forward.30} parent=35 // pred_check_branch
        %383 = sbr.rel (%p381) target = $region52
      $region51: #{lstm_ae_forward.30} parent=35 // pred_region
        _
      $region52: #{lstm_ae_forward.30} parent=35 // pred_fallthru
        _
      // Predicated region
      $region53: #{lstm_ae_forward.30} parent=35 // pred_check
        %p384 = pneg %p146
      $region54: #{lstm_ae_forward.30} parent=35 // pred_check_branch
        %386 = sbr.rel (%p384) target = $region56
      $region55: #{lstm_ae_forward.30} parent=35 // pred_region
        _
      $region56: #{lstm_ae_forward.30} parent=35 // pred_fallthru
        _
      // Predicated region
      $region57: #{lstm_ae_forward.30} parent=35 // pred_check
        %p387 = pneg %p167
      $region58: #{lstm_ae_forward.30} parent=35 // pred_check_branch
        %389 = sbr.rel (%p387) target = $region60
      $region59: #{lstm_ae_forward.30} parent=35 // pred_region
        _
      $region60: #{lstm_ae_forward.30} parent=35 // pred_fallthru
        _
    $region36: #{lstm_ae_forward.30} parent=5 // pred_fallthru
      _
    %p390 = scmp.le.s32.totalorder 2, %s13
    // Predicated region
    $region61: #{lstm_ae_forward.30} parent=5 // pred_check
      %p391 = pneg %p390
    $region62: #{lstm_ae_forward.30} parent=5 // pred_check_branch
      %393 = sbr.rel (%p391) target = $region64
    $region63: #{lstm_ae_forward.30} parent=5 // pred_region
      %s394 = ssub.s32 %s13, 2
      // Predicated region
      $region65: #{lstm_ae_forward.30} parent=63 // pred_check
        %p395 = pneg %p131
      $region66: #{lstm_ae_forward.30} parent=63 // pred_check_branch
        %397 = sbr.rel (%p395) target = $region68
      $region67: #{lstm_ae_forward.30} parent=63 // pred_region
        %p398 = scmp.lt.s32.totalorder %s19, 7
        %s399 = scalar_select %p398, %s19, 7
        %s400 = smul.addr %s399, 2
        %s401 = scalar_lea.vmem %s4, %s400
      $region68: #{lstm_ae_forward.30} parent=63 // pred_fallthru
        _
    $region64: #{lstm_ae_forward.30} parent=5 // pred_fallthru
      _
  $region6: #{lstm_ae_forward.30} parent=0 // loop_footer
    %s17 = sadd.s32 1, %s13
  $region7: #{lstm_ae_forward.30} parent=0 // loop_footer_branch
    %12 = sbr.rel target = $region3
  $region8: #{lstm_ae_forward.30} parent=0 // loop_exit
    _

// kernel: lstm_ae_forward.33
$region0: #{lstm_ae_forward.33}
  #allocation0 [shape = 'u32[]', space=smem, size = 0x4, offset = 0x4, fixed_abs, tag = 'smem constant byte address 0x4 - core index']
  #allocation1 [shape = 'u32[144,128]{1,0:T(1,128)}', space=vmem, size = 0x12000, scoped, tag = 'internal scratch']
  %s0 = inlined_call_operand.vmem [shape: f32[16,16], index: 0, kind: input, shape index: {}]
  %s1 = inlined_call_operand.vmem [shape: f32[16,56], index: 1, kind: input, shape index: {}]
  %s2 = inlined_call_operand.vmem [shape: f32[1,56], index: 2, kind: input, shape index: {}]
  %s3 = inlined_call_operand.vmem [shape: f32[16,56], index: 3, kind: output, shape index: {}]
  %s4 = sld [smem:[#allocation0]]
  $region22: #{lstm_ae_forward.33} parent=0
    _
  %s6 = ssub.s32 1, %s4
  %s7 = scalar_select 0, %s6, %s4
  // Predicated region
  $region2: #{lstm_ae_forward.33} parent=0 // pred_check
    _
  $region3: #{lstm_ae_forward.33} parent=0 // pred_check_branch
    %9 = sbr.rel (0) target = $region5
  $region4: #{lstm_ae_forward.33} parent=0 // pred_region
    _
  $region5: #{lstm_ae_forward.33} parent=0 // pred_fallthru
    _
  // Predicated region
  $region6: #{lstm_ae_forward.33} parent=0 // pred_check
    _
  $region7: #{lstm_ae_forward.33} parent=0 // pred_check_branch
    %11 = sbr.rel (0) target = $region9
  $region8: #{lstm_ae_forward.33} parent=0 // pred_region
    _
  $region9: #{lstm_ae_forward.33} parent=0 // pred_fallthru
    _
  // Predicated region
  $region10: #{lstm_ae_forward.33} parent=0 // pred_check
    _
  $region11: #{lstm_ae_forward.33} parent=0 // pred_check_branch
    %13 = sbr.rel (0) target = $region13
  $region12: #{lstm_ae_forward.33} parent=0 // pred_region
    _
  $region13: #{lstm_ae_forward.33} parent=0 // pred_fallthru
    _
  %v14 = vld [vmem:[%s0] sm:$0xff]
  %v15 = vld [vmem:[%s0 + $0x8] sm:$0xff]
  %v16 = vld [vmem:[%s1] sm:$0xff]
  %v17 = vld [vmem:[%s1 + $0x8] sm:$0xff]
  %v18 = vld [vmem:[%s2] sm:$0x1]
  %v20 = vlaneseq
  %v21 = vshrl.u32 %v20, 7
  %v22 = vsub.s32 0, %v21
  %v23 = vrot.slane %v18, %v22
  %vm25 = vcmask 130048
  %v27 = vsel %vm25, %v14, 0
  %v30 = vsel %vm25, %v15, 0
  %32 = vmatprep.subr.mxu0 0.0
  %33 = vmatpush1.msra.mxu0 %v16
  %34 = vmatprep.subr.mxu0 0.0
  %35 = vmatpush1.msra.mxu0 %v17
  %36 = vmatprep.subr.mxu0 0.0
  %37 = vmatpush1.msra.mxu0 0.0
  %38 = vmatprep.subr.mxu0 0.0
  %39 = vmatpush1.msra.mxu0 0.0
  %40 = vmatprep.subr.mxu0 0.0
  %41 = vmatpush1.msra.mxu0 0.0
  %42 = vmatprep.subr.mxu0 0.0
  %43 = vmatpush1.msra.mxu0 0.0
  %44 = vmatprep.subr.mxu0 0.0
  %45 = vmatpush1.msra.mxu0 0.0
  %46 = vmatprep.subr.mxu0 0.0
  %47 = vmatpush1.msra.mxu0 0.0
  %48 = vmatprep.subr.mxu0 0.0
  %49 = vmatpush1.msra.mxu0 0.0
  %50 = vmatprep.subr.mxu0 0.0
  %51 = vmatpush1.msra.mxu0 0.0
  %52 = vmatprep.subr.mxu0 0.0
  %53 = vmatpush1.msra.mxu0 0.0
  %54 = vmatprep.subr.mxu0 0.0
  %55 = vmatpush1.msra.mxu0 0.0
  %56 = vmatprep.subr.mxu0 0.0
  %57 = vmatpush1.msra.mxu0 0.0
  %58 = vmatprep.subr.mxu0 0.0
  %59 = vmatpush1.msra.mxu0 0.0
  %60 = vmatprep.subr.mxu0 0.0
  %61 = vmatpush1.msra.mxu0 0.0
  %62 = vmatprep.subr.mxu0 0.0
  %63 = vmatpush1.msra.mxu0 0.0
  %64 = vmatprep.subr.mxu0 0.0
  %65 = vmatpush1.msra.mxu0 0.0
  %66 = vmatprep.subr.mxu0 0.0
  %67 = vmatpush1.msra.mxu0 0.0
  %68 = vmatprep.subr.mxu0 0.0
  %69 = vmatpush1.msra.mxu0 0.0
  %70 = vmatprep.subr.mxu0 0.0
  %71 = vmatpush1.msra.mxu0 0.0
  %72 = vmatprep.subr.mxu0 0.0
  %73 = vmatpush1.msra.mxu0 0.0
  %74 = vmatprep.subr.mxu0 0.0
  %75 = vmatpush1.msra.mxu0 0.0
  %76 = vmatprep.subr.mxu0 0.0
  %77 = vmatpush1.msra.mxu0 0.0
  %78 = vmatprep.subr.mxu0 0.0
  %79 = vmatpush1.msra.mxu0 0.0
  %80 = vmatprep.subr.mxu0 0.0
  %81 = vmatpush1.msra.mxu0 0.0
  %82 = vmatprep.subr.mxu0 0.0
  %83 = vmatpush1.msra.mxu0 0.0
  %84 = vmatprep.subr.mxu0 0.0
  %85 = vmatpush1.msra.mxu0 0.0
  %86 = vmatprep.subr.mxu0 0.0
  %87 = vmatpush1.msra.mxu0 0.0
  %88 = vmatprep.subr.mxu0 0.0
  %89 = vmatpush1.msra.mxu0 0.0
  %90 = vmatprep.subr.mxu0 0.0
  %91 = vmatpush1.msra.mxu0 0.0
  %92 = vmatprep.subr.mxu0 0.0
  %93 = vmatpush1.msra.mxu0 0.0
  %94 = vmatprep.subr.mxu0 0.0
  %95 = vmatpush1.msra.mxu0 0.0
  %96 = vmatprep.mubr.f32.mxu0 0.0
  %97 = vmatmul.mubr.f32.gmra.mrb[0].mxu0 %v27
  %v98 = vpop.f32.mrb[0].mxu0
  %v99 = vadd.f32 %v23, %v98
  %v100 = vpop.f32.mrb[0].mxu0
  %101 = vmatprep.mubr.f32.mxu0 0.0
  %102 = vmatmul.mubr.f32.gmra.mrb[0].mxu0 %v30
  %v103 = vpop.f32.mrb[0].mxu0
  %v104 = vadd.f32 %v23, %v103
  %v105 = vpop.f32.mrb[0].mxu0
  %106 = vdwg.mxu0
  %vm107 = vcmask 457728
  %108 = vst.msk [vmem:[%s3] sm:$0xff] %vm107, %v99
  %109 = vst.msk [vmem:[%s3 + $0x8] sm:$0xff] %vm107, %v104
  // Predicated region
  $region14: #{lstm_ae_forward.33} parent=0 // pred_check
    _
  $region15: #{lstm_ae_forward.33} parent=0 // pred_check_branch
    %111 = sbr.rel (0) target = $region17
  $region16: #{lstm_ae_forward.33} parent=0 // pred_region
    _
  $region17: #{lstm_ae_forward.33} parent=0 // pred_fallthru
    _
  // Predicated region
  $region18: #{lstm_ae_forward.33} parent=0 // pred_check
    _
  $region19: #{lstm_ae_forward.33} parent=0 // pred_check_branch
    %113 = sbr.rel (0) target = $region21
  $region20: #{lstm_ae_forward.33} parent=0 // pred_region
    _
  $region21: #{lstm_ae_forward.33} parent=0 // pred_fallthru
    _

// kernel: lstm_ae_forward.35
$region0: #{lstm_ae_forward.35}
  #allocation0 [shape = 'u32[]', space=smem, size = 0x4, offset = 0x4, fixed_abs, tag = 'smem constant byte address 0x4 - core index']
  #allocation1 [shape = 'u32[144,128]{1,0:T(1,128)}', space=vmem, size = 0x12000, scoped, tag = 'internal scratch']
  %s0 = inlined_call_operand.vmem [shape: f32[16,14], index: 0, kind: input, shape index: {}]
  %s1 = inlined_call_operand.vmem [shape: f32[14,44], index: 1, kind: input, shape index: {}]
  %s2 = inlined_call_operand.vmem [shape: f32[1,44], index: 2, kind: input, shape index: {}]
  %s3 = inlined_call_operand.vmem [shape: f32[16,44], index: 3, kind: output, shape index: {}]
  %s4 = sld [smem:[#allocation0]]
  $region22: #{lstm_ae_forward.35} parent=0
    _
  %s6 = ssub.s32 1, %s4
  %s7 = scalar_select 0, %s6, %s4
  // Predicated region
  $region2: #{lstm_ae_forward.35} parent=0 // pred_check
    _
  $region3: #{lstm_ae_forward.35} parent=0 // pred_check_branch
    %9 = sbr.rel (0) target = $region5
  $region4: #{lstm_ae_forward.35} parent=0 // pred_region
    _
  $region5: #{lstm_ae_forward.35} parent=0 // pred_fallthru
    _
  // Predicated region
  $region6: #{lstm_ae_forward.35} parent=0 // pred_check
    _
  $region7: #{lstm_ae_forward.35} parent=0 // pred_check_branch
    %11 = sbr.rel (0) target = $region9
  $region8: #{lstm_ae_forward.35} parent=0 // pred_region
    _
  $region9: #{lstm_ae_forward.35} parent=0 // pred_fallthru
    _
  // Predicated region
  $region10: #{lstm_ae_forward.35} parent=0 // pred_check
    _
  $region11: #{lstm_ae_forward.35} parent=0 // pred_check_branch
    %13 = sbr.rel (0) target = $region13
  $region12: #{lstm_ae_forward.35} parent=0 // pred_region
    _
  $region13: #{lstm_ae_forward.35} parent=0 // pred_fallthru
    _
  %v14 = vld [vmem:[%s0] sm:$0xff]
  %v15 = vld [vmem:[%s0 + $0x8] sm:$0xff]
  %v16 = vld [vmem:[%s1] sm:$0xff]
  %v17 = vld [vmem:[%s1 + $0x8] sm:$0x3f]
  %v18 = vld [vmem:[%s2] sm:$0x1]
  %v20 = vlaneseq
  %v21 = vshrl.u32 %v20, 7
  %v22 = vsub.s32 0, %v21
  %v23 = vrot.slane %v18, %v22
  %vm25 = vcmask 113664
  %v27 = vsel %vm25, %v14, 0
  %v30 = vsel %vm25, %v15, 0
  %vm32 = vcmask 1045504
  %v34 = vsel %vm32, %v17, 0
  %36 = vmatprep.subr.mxu0 0.0
  %37 = vmatpush1.msra.mxu0 %v16
  %38 = vmatprep.subr.mxu0 0.0
  %39 = vmatpush1.msra.mxu0 %v34
  %40 = vmatprep.subr.mxu0 0.0
  %41 = vmatpush1.msra.mxu0 0.0
  %42 = vmatprep.subr.mxu0 0.0
  %43 = vmatpush1.msra.mxu0 0.0
  %44 = vmatprep.subr.mxu0 0.0
  %45 = vmatpush1.msra.mxu0 0.0
  %46 = vmatprep.subr.mxu0 0.0
  %47 = vmatpush1.msra.mxu0 0.0
  %48 = vmatprep.subr.mxu0 0.0
  %49 = vmatpush1.msra.mxu0 0.0
  %50 = vmatprep.subr.mxu0 0.0
  %51 = vmatpush1.msra.mxu0 0.0
  %52 = vmatprep.subr.mxu0 0.0
  %53 = vmatpush1.msra.mxu0 0.0
  %54 = vmatprep.subr.mxu0 0.0
  %55 = vmatpush1.msra.mxu0 0.0
  %56 = vmatprep.subr.mxu0 0.0
  %57 = vmatpush1.msra.mxu0 0.0
  %58 = vmatprep.subr.mxu0 0.0
  %59 = vmatpush1.msra.mxu0 0.0
  %60 = vmatprep.subr.mxu0 0.0
  %61 = vmatpush1.msra.mxu0 0.0
  %62 = vmatprep.subr.mxu0 0.0
  %63 = vmatpush1.msra.mxu0 0.0
  %64 = vmatprep.subr.mxu0 0.0
  %65 = vmatpush1.msra.mxu0 0.0
  %66 = vmatprep.subr.mxu0 0.0
  %67 = vmatpush1.msra.mxu0 0.0
  %68 = vmatprep.subr.mxu0 0.0
  %69 = vmatpush1.msra.mxu0 0.0
  %70 = vmatprep.subr.mxu0 0.0
  %71 = vmatpush1.msra.mxu0 0.0
  %72 = vmatprep.subr.mxu0 0.0
  %73 = vmatpush1.msra.mxu0 0.0
  %74 = vmatprep.subr.mxu0 0.0
  %75 = vmatpush1.msra.mxu0 0.0
  %76 = vmatprep.subr.mxu0 0.0
  %77 = vmatpush1.msra.mxu0 0.0
  %78 = vmatprep.subr.mxu0 0.0
  %79 = vmatpush1.msra.mxu0 0.0
  %80 = vmatprep.subr.mxu0 0.0
  %81 = vmatpush1.msra.mxu0 0.0
  %82 = vmatprep.subr.mxu0 0.0
  %83 = vmatpush1.msra.mxu0 0.0
  %84 = vmatprep.subr.mxu0 0.0
  %85 = vmatpush1.msra.mxu0 0.0
  %86 = vmatprep.subr.mxu0 0.0
  %87 = vmatpush1.msra.mxu0 0.0
  %88 = vmatprep.subr.mxu0 0.0
  %89 = vmatpush1.msra.mxu0 0.0
  %90 = vmatprep.subr.mxu0 0.0
  %91 = vmatpush1.msra.mxu0 0.0
  %92 = vmatprep.subr.mxu0 0.0
  %93 = vmatpush1.msra.mxu0 0.0
  %94 = vmatprep.subr.mxu0 0.0
  %95 = vmatpush1.msra.mxu0 0.0
  %96 = vmatprep.subr.mxu0 0.0
  %97 = vmatpush1.msra.mxu0 0.0
  %98 = vmatprep.subr.mxu0 0.0
  %99 = vmatpush1.msra.mxu0 0.0
  %100 = vmatprep.mubr.f32.mxu0 0.0
  %101 = vmatmul.mubr.f32.gmra.mrb[0].mxu0 %v27
  %v102 = vpop.f32.mrb[0].mxu0
  %v103 = vadd.f32 %v23, %v102
  %v104 = vpop.f32.mrb[0].mxu0
  %105 = vmatprep.mubr.f32.mxu0 0.0
  %106 = vmatmul.mubr.f32.gmra.mrb[0].mxu0 %v30
  %v107 = vpop.f32.mrb[0].mxu0
  %v108 = vadd.f32 %v23, %v107
  %v109 = vpop.f32.mrb[0].mxu0
  %110 = vdwg.mxu0
  %vm111 = vcmask 359424
  %112 = vst.msk [vmem:[%s3] sm:$0xff] %vm111, %v103
  %113 = vst.msk [vmem:[%s3 + $0x8] sm:$0xff] %vm111, %v108
  // Predicated region
  $region14: #{lstm_ae_forward.35} parent=0 // pred_check
    _
  $region15: #{lstm_ae_forward.35} parent=0 // pred_check_branch
    %115 = sbr.rel (0) target = $region17
  $region16: #{lstm_ae_forward.35} parent=0 // pred_region
    _
  $region17: #{lstm_ae_forward.35} parent=0 // pred_fallthru
    _
  // Predicated region
  $region18: #{lstm_ae_forward.35} parent=0 // pred_check
    _
  $region19: #{lstm_ae_forward.35} parent=0 // pred_check_branch
    %117 = sbr.rel (0) target = $region21
  $region20: #{lstm_ae_forward.35} parent=0 // pred_region
    _
  $region21: #{lstm_ae_forward.35} parent=0 // pred_fallthru
    _

// kernel: lstm_ae_forward.37
$region0: #{lstm_ae_forward.37}
  #allocation0 [shape = 'u32[]', space=smem, size = 0x4, offset = 0x4, fixed_abs, tag = 'smem constant byte address 0x4 - core index']
  #allocation1 [shape = 'u32[144,128]{1,0:T(1,128)}', space=vmem, size = 0x12000, scoped, tag = 'internal scratch']
  %s0 = inlined_call_operand.vmem [shape: f32[16,11], index: 0, kind: input, shape index: {}]
  %s1 = inlined_call_operand.vmem [shape: f32[11,36], index: 1, kind: input, shape index: {}]
  %s2 = inlined_call_operand.vmem [shape: f32[1,36], index: 2, kind: input, shape index: {}]
  %s3 = inlined_call_operand.vmem [shape: f32[16,36], index: 3, kind: output, shape index: {}]
  %s4 = sld [smem:[#allocation0]]
  $region22: #{lstm_ae_forward.37} parent=0
    _
  %s6 = ssub.s32 1, %s4
  %s7 = scalar_select 0, %s6, %s4
  // Predicated region
  $region2: #{lstm_ae_forward.37} parent=0 // pred_check
    _
  $region3: #{lstm_ae_forward.37} parent=0 // pred_check_branch
    %9 = sbr.rel (0) target = $region5
  $region4: #{lstm_ae_forward.37} parent=0 // pred_region
    _
  $region5: #{lstm_ae_forward.37} parent=0 // pred_fallthru
    _
  // Predicated region
  $region6: #{lstm_ae_forward.37} parent=0 // pred_check
    _
  $region7: #{lstm_ae_forward.37} parent=0 // pred_check_branch
    %11 = sbr.rel (0) target = $region9
  $region8: #{lstm_ae_forward.37} parent=0 // pred_region
    _
  $region9: #{lstm_ae_forward.37} parent=0 // pred_fallthru
    _
  // Predicated region
  $region10: #{lstm_ae_forward.37} parent=0 // pred_check
    _
  $region11: #{lstm_ae_forward.37} parent=0 // pred_check_branch
    %13 = sbr.rel (0) target = $region13
  $region12: #{lstm_ae_forward.37} parent=0 // pred_region
    _
  $region13: #{lstm_ae_forward.37} parent=0 // pred_fallthru
    _
  %v14 = vld [vmem:[%s0] sm:$0xff]
  %v15 = vld [vmem:[%s0 + $0x8] sm:$0xff]
  %v16 = vld [vmem:[%s1] sm:$0xff]
  %v17 = vld [vmem:[%s1 + $0x8] sm:$0x7]
  %v18 = vld [vmem:[%s2] sm:$0x1]
  %v20 = vlaneseq
  %v21 = vshrl.u32 %v20, 7
  %v22 = vsub.s32 0, %v21
  %v23 = vrot.slane %v18, %v22
  %vm25 = vcmask 89088
  %v27 = vsel %vm25, %v14, 0
  %v30 = vsel %vm25, %v15, 0
  %vm32 = vcmask 1042432
  %v34 = vsel %vm32, %v17, 0
  %36 = vmatprep.subr.mxu0 0.0
  %37 = vmatpush1.msra.mxu0 %v16
  %38 = vmatprep.subr.mxu0 0.0
  %39 = vmatpush1.msra.mxu0 %v34
  %40 = vmatprep.subr.mxu0 0.0
  %41 = vmatpush1.msra.mxu0 0.0
  %42 = vmatprep.subr.mxu0 0.0
  %43 = vmatpush1.msra.mxu0 0.0
  %44 = vmatprep.subr.mxu0 0.0
  %45 = vmatpush1.msra.mxu0 0.0
  %46 = vmatprep.subr.mxu0 0.0
  %47 = vmatpush1.msra.mxu0 0.0
  %48 = vmatprep.subr.mxu0 0.0
  %49 = vmatpush1.msra.mxu0 0.0
  %50 = vmatprep.subr.mxu0 0.0
  %51 = vmatpush1.msra.mxu0 0.0
  %52 = vmatprep.subr.mxu0 0.0
  %53 = vmatpush1.msra.mxu0 0.0
  %54 = vmatprep.subr.mxu0 0.0
  %55 = vmatpush1.msra.mxu0 0.0
  %56 = vmatprep.subr.mxu0 0.0
  %57 = vmatpush1.msra.mxu0 0.0
  %58 = vmatprep.subr.mxu0 0.0
  %59 = vmatpush1.msra.mxu0 0.0
  %60 = vmatprep.subr.mxu0 0.0
  %61 = vmatpush1.msra.mxu0 0.0
  %62 = vmatprep.subr.mxu0 0.0
  %63 = vmatpush1.msra.mxu0 0.0
  %64 = vmatprep.subr.mxu0 0.0
  %65 = vmatpush1.msra.mxu0 0.0
  %66 = vmatprep.subr.mxu0 0.0
  %67 = vmatpush1.msra.mxu0 0.0
  %68 = vmatprep.subr.mxu0 0.0
  %69 = vmatpush1.msra.mxu0 0.0
  %70 = vmatprep.subr.mxu0 0.0
  %71 = vmatpush1.msra.mxu0 0.0
  %72 = vmatprep.subr.mxu0 0.0
  %73 = vmatpush1.msra.mxu0 0.0
  %74 = vmatprep.subr.mxu0 0.0
  %75 = vmatpush1.msra.mxu0 0.0
  %76 = vmatprep.subr.mxu0 0.0
  %77 = vmatpush1.msra.mxu0 0.0
  %78 = vmatprep.subr.mxu0 0.0
  %79 = vmatpush1.msra.mxu0 0.0
  %80 = vmatprep.subr.mxu0 0.0
  %81 = vmatpush1.msra.mxu0 0.0
  %82 = vmatprep.subr.mxu0 0.0
  %83 = vmatpush1.msra.mxu0 0.0
  %84 = vmatprep.subr.mxu0 0.0
  %85 = vmatpush1.msra.mxu0 0.0
  %86 = vmatprep.subr.mxu0 0.0
  %87 = vmatpush1.msra.mxu0 0.0
  %88 = vmatprep.subr.mxu0 0.0
  %89 = vmatpush1.msra.mxu0 0.0
  %90 = vmatprep.subr.mxu0 0.0
  %91 = vmatpush1.msra.mxu0 0.0
  %92 = vmatprep.subr.mxu0 0.0
  %93 = vmatpush1.msra.mxu0 0.0
  %94 = vmatprep.subr.mxu0 0.0
  %95 = vmatpush1.msra.mxu0 0.0
  %96 = vmatprep.subr.mxu0 0.0
  %97 = vmatpush1.msra.mxu0 0.0
  %98 = vmatprep.subr.mxu0 0.0
  %99 = vmatpush1.msra.mxu0 0.0
  %100 = vmatprep.mubr.f32.mxu0 0.0
  %101 = vmatmul.mubr.f32.gmra.mrb[0].mxu0 %v27
  %v102 = vpop.f32.mrb[0].mxu0
  %v103 = vadd.f32 %v23, %v102
  %v104 = vpop.f32.mrb[0].mxu0
  %105 = vmatprep.mubr.f32.mxu0 0.0
  %106 = vmatmul.mubr.f32.gmra.mrb[0].mxu0 %v30
  %v107 = vpop.f32.mrb[0].mxu0
  %v108 = vadd.f32 %v23, %v107
  %v109 = vpop.f32.mrb[0].mxu0
  %110 = vdwg.mxu0
  %vm111 = vcmask 293888
  %112 = vst.msk [vmem:[%s3] sm:$0xff] %vm111, %v103
  %113 = vst.msk [vmem:[%s3 + $0x8] sm:$0xff] %vm111, %v108
  // Predicated region
  $region14: #{lstm_ae_forward.37} parent=0 // pred_check
    _
  $region15: #{lstm_ae_forward.37} parent=0 // pred_check_branch
    %115 = sbr.rel (0) target = $region17
  $region16: #{lstm_ae_forward.37} parent=0 // pred_region
    _
  $region17: #{lstm_ae_forward.37} parent=0 // pred_fallthru
    _
  // Predicated region
  $region18: #{lstm_ae_forward.37} parent=0 // pred_check
    _
  $region19: #{lstm_ae_forward.37} parent=0 // pred_check_branch
    %117 = sbr.rel (0) target = $region21
  $region20: #{lstm_ae_forward.37} parent=0 // pred_region
    _
  $region21: #{lstm_ae_forward.37} parent=0 // pred_fallthru
    _

// kernel: lstm_ae_forward.39
$region0: #{lstm_ae_forward.39}
  #allocation0 [shape = 'u32[]', space=smem, size = 0x4, offset = 0x4, fixed_abs, tag = 'smem constant byte address 0x4 - core index']
  #allocation1 [shape = 'u32[144,128]{1,0:T(1,128)}', space=vmem, size = 0x12000, scoped, tag = 'internal scratch']
  %s0 = inlined_call_operand.vmem [shape: f32[16,9], index: 0, kind: input, shape index: {}]
  %s1 = inlined_call_operand.vmem [shape: f32[9,24], index: 1, kind: input, shape index: {}]
  %s2 = inlined_call_operand.vmem [shape: f32[1,24], index: 2, kind: input, shape index: {}]
  %s3 = inlined_call_operand.vmem [shape: f32[16,24], index: 3, kind: output, shape index: {}]
  %s4 = sld [smem:[#allocation0]]
  $region22: #{lstm_ae_forward.39} parent=0
    _
  %s6 = ssub.s32 1, %s4
  %s7 = scalar_select 0, %s6, %s4
  // Predicated region
  $region2: #{lstm_ae_forward.39} parent=0 // pred_check
    _
  $region3: #{lstm_ae_forward.39} parent=0 // pred_check_branch
    %9 = sbr.rel (0) target = $region5
  $region4: #{lstm_ae_forward.39} parent=0 // pred_region
    _
  $region5: #{lstm_ae_forward.39} parent=0 // pred_fallthru
    _
  // Predicated region
  $region6: #{lstm_ae_forward.39} parent=0 // pred_check
    _
  $region7: #{lstm_ae_forward.39} parent=0 // pred_check_branch
    %11 = sbr.rel (0) target = $region9
  $region8: #{lstm_ae_forward.39} parent=0 // pred_region
    _
  $region9: #{lstm_ae_forward.39} parent=0 // pred_fallthru
    _
  // Predicated region
  $region10: #{lstm_ae_forward.39} parent=0 // pred_check
    _
  $region11: #{lstm_ae_forward.39} parent=0 // pred_check_branch
    %13 = sbr.rel (0) target = $region13
  $region12: #{lstm_ae_forward.39} parent=0 // pred_region
    _
  $region13: #{lstm_ae_forward.39} parent=0 // pred_fallthru
    _
  %v14 = vld [vmem:[%s0] sm:$0xff]
  %v15 = vld [vmem:[%s0 + $0x8] sm:$0xff]
  %v16 = vld [vmem:[%s1] sm:$0xff]
  %v17 = vld [vmem:[%s1 + $0x8] sm:$0x1]
  %v18 = vld [vmem:[%s2] sm:$0x1]
  %v20 = vlaneseq
  %v21 = vshrl.u32 %v20, 7
  %v22 = vsub.s32 0, %v21
  %v23 = vrot.slane %v18, %v22
  %vm25 = vcmask 72704
  %v27 = vsel %vm25, %v14, 0
  %v30 = vsel %vm25, %v15, 0
  %vm32 = vcmask 1040384
  %v34 = vsel %vm32, %v17, 0
  %36 = vmatprep.subr.mxu0 0.0
  %37 = vmatpush1.msra.mxu0 %v16
  %38 = vmatprep.subr.mxu0 0.0
  %39 = vmatpush1.msra.mxu0 %v34
  %40 = vmatprep.subr.mxu0 0.0
  %41 = vmatpush1.msra.mxu0 0.0
  %42 = vmatprep.subr.mxu0 0.0
  %43 = vmatpush1.msra.mxu0 0.0
  %44 = vmatprep.subr.mxu0 0.0
  %45 = vmatpush1.msra.mxu0 0.0
  %46 = vmatprep.subr.mxu0 0.0
  %47 = vmatpush1.msra.mxu0 0.0
  %48 = vmatprep.subr.mxu0 0.0
  %49 = vmatpush1.msra.mxu0 0.0
  %50 = vmatprep.subr.mxu0 0.0
  %51 = vmatpush1.msra.mxu0 0.0
  %52 = vmatprep.subr.mxu0 0.0
  %53 = vmatpush1.msra.mxu0 0.0
  %54 = vmatprep.subr.mxu0 0.0
  %55 = vmatpush1.msra.mxu0 0.0
  %56 = vmatprep.subr.mxu0 0.0
  %57 = vmatpush1.msra.mxu0 0.0
  %58 = vmatprep.subr.mxu0 0.0
  %59 = vmatpush1.msra.mxu0 0.0
  %60 = vmatprep.subr.mxu0 0.0
  %61 = vmatpush1.msra.mxu0 0.0
  %62 = vmatprep.subr.mxu0 0.0
  %63 = vmatpush1.msra.mxu0 0.0
  %64 = vmatprep.subr.mxu0 0.0
  %65 = vmatpush1.msra.mxu0 0.0
  %66 = vmatprep.subr.mxu0 0.0
  %67 = vmatpush1.msra.mxu0 0.0
  %68 = vmatprep.subr.mxu0 0.0
  %69 = vmatpush1.msra.mxu0 0.0
  %70 = vmatprep.subr.mxu0 0.0
  %71 = vmatpush1.msra.mxu0 0.0
  %72 = vmatprep.subr.mxu0 0.0
  %73 = vmatpush1.msra.mxu0 0.0
  %74 = vmatprep.subr.mxu0 0.0
  %75 = vmatpush1.msra.mxu0 0.0
  %76 = vmatprep.subr.mxu0 0.0
  %77 = vmatpush1.msra.mxu0 0.0
  %78 = vmatprep.subr.mxu0 0.0
  %79 = vmatpush1.msra.mxu0 0.0
  %80 = vmatprep.subr.mxu0 0.0
  %81 = vmatpush1.msra.mxu0 0.0
  %82 = vmatprep.subr.mxu0 0.0
  %83 = vmatpush1.msra.mxu0 0.0
  %84 = vmatprep.subr.mxu0 0.0
  %85 = vmatpush1.msra.mxu0 0.0
  %86 = vmatprep.subr.mxu0 0.0
  %87 = vmatpush1.msra.mxu0 0.0
  %88 = vmatprep.subr.mxu0 0.0
  %89 = vmatpush1.msra.mxu0 0.0
  %90 = vmatprep.subr.mxu0 0.0
  %91 = vmatpush1.msra.mxu0 0.0
  %92 = vmatprep.subr.mxu0 0.0
  %93 = vmatpush1.msra.mxu0 0.0
  %94 = vmatprep.subr.mxu0 0.0
  %95 = vmatpush1.msra.mxu0 0.0
  %96 = vmatprep.subr.mxu0 0.0
  %97 = vmatpush1.msra.mxu0 0.0
  %98 = vmatprep.subr.mxu0 0.0
  %99 = vmatpush1.msra.mxu0 0.0
  %100 = vmatprep.mubr.f32.mxu0 0.0
  %101 = vmatmul.mubr.f32.gmra.mrb[0].mxu0 %v27
  %v102 = vpop.f32.mrb[0].mxu0
  %v103 = vadd.f32 %v23, %v102
  %v104 = vpop.f32.mrb[0].mxu0
  %105 = vmatprep.mubr.f32.mxu0 0.0
  %106 = vmatmul.mubr.f32.gmra.mrb[0].mxu0 %v30
  %v107 = vpop.f32.mrb[0].mxu0
  %v108 = vadd.f32 %v23, %v107
  %v109 = vpop.f32.mrb[0].mxu0
  %110 = vdwg.mxu0
  %vm111 = vcmask 195584
  %112 = vst.msk [vmem:[%s3] sm:$0xff] %vm111, %v103
  %113 = vst.msk [vmem:[%s3 + $0x8] sm:$0xff] %vm111, %v108
  // Predicated region
  $region14: #{lstm_ae_forward.39} parent=0 // pred_check
    _
  $region15: #{lstm_ae_forward.39} parent=0 // pred_check_branch
    %115 = sbr.rel (0) target = $region17
  $region16: #{lstm_ae_forward.39} parent=0 // pred_region
    _
  $region17: #{lstm_ae_forward.39} parent=0 // pred_fallthru
    _
  // Predicated region
  $region18: #{lstm_ae_forward.39} parent=0 // pred_check
    _
  $region19: #{lstm_ae_forward.39} parent=0 // pred_check_branch
    %117 = sbr.rel (0) target = $region21
  $region20: #{lstm_ae_forward.39} parent=0 // pred_region
    _
  $region21: #{lstm_ae_forward.39} parent=0 // pred_fallthru
    _

// kernel: lstm_ae_forward.41
$region0: #{lstm_ae_forward.41}
  #allocation0 [shape = 'u32[]', space=smem, size = 0x4, offset = 0x4, fixed_abs, tag = 'smem constant byte address 0x4 - core index']
  #allocation1 [shape = 'u32[144,128]{1,0:T(1,128)}', space=vmem, size = 0x12000, scoped, tag = 'internal scratch']
  %s0 = inlined_call_operand.vmem [shape: f32[16,6], index: 0, kind: input, shape index: {}]
  %s1 = inlined_call_operand.vmem [shape: f32[6,4], index: 1, kind: input, shape index: {}]
  %s2 = inlined_call_operand.vmem [shape: f32[1,4], index: 2, kind: input, shape index: {}]
  %s3 = inlined_call_operand.vmem [shape: f32[16,4], index: 3, kind: output, shape index: {}]
  %s4 = sld [smem:[#allocation0]]
  $region22: #{lstm_ae_forward.41} parent=0
    _
  %s6 = ssub.s32 1, %s4
  %s7 = scalar_select 0, %s6, %s4
  // Predicated region
  $region2: #{lstm_ae_forward.41} parent=0 // pred_check
    _
  $region3: #{lstm_ae_forward.41} parent=0 // pred_check_branch
    %9 = sbr.rel (0) target = $region5
  $region4: #{lstm_ae_forward.41} parent=0 // pred_region
    _
  $region5: #{lstm_ae_forward.41} parent=0 // pred_fallthru
    _
  // Predicated region
  $region6: #{lstm_ae_forward.41} parent=0 // pred_check
    _
  $region7: #{lstm_ae_forward.41} parent=0 // pred_check_branch
    %11 = sbr.rel (0) target = $region9
  $region8: #{lstm_ae_forward.41} parent=0 // pred_region
    _
  $region9: #{lstm_ae_forward.41} parent=0 // pred_fallthru
    _
  // Predicated region
  $region10: #{lstm_ae_forward.41} parent=0 // pred_check
    _
  $region11: #{lstm_ae_forward.41} parent=0 // pred_check_branch
    %13 = sbr.rel (0) target = $region13
  $region12: #{lstm_ae_forward.41} parent=0 // pred_region
    _
  $region13: #{lstm_ae_forward.41} parent=0 // pred_fallthru
    _
  %v14 = vld [vmem:[%s0] sm:$0xff]
  %v15 = vld [vmem:[%s0 + $0x8] sm:$0xff]
  %v16 = vld [vmem:[%s1] sm:$0x3f]
  %v17 = vld [vmem:[%s2] sm:$0x1]
  %v19 = vlaneseq
  %v20 = vshrl.u32 %v19, 7
  %v21 = vsub.s32 0, %v20
  %v22 = vrot.slane %v17, %v21
  %vm24 = vcmask 48128
  %v26 = vsel %vm24, %v14, 0
  %v29 = vsel %vm24, %v15, 0
  %vm31 = vcmask 1045504
  %v33 = vsel %vm31, %v16, 0
  %35 = vmatprep.subr.mxu0 0.0
  %36 = vmatpush1.msra.mxu0 %v33
  %37 = vmatprep.subr.mxu0 0.0
  %38 = vmatpush1.msra.mxu0 0.0
  %39 = vmatprep.subr.mxu0 0.0
  %40 = vmatpush1.msra.mxu0 0.0
  %41 = vmatprep.subr.mxu0 0.0
  %42 = vmatpush1.msra.mxu0 0.0
  %43 = vmatprep.subr.mxu0 0.0
  %44 = vmatpush1.msra.mxu0 0.0
  %45 = vmatprep.subr.mxu0 0.0
  %46 = vmatpush1.msra.mxu0 0.0
  %47 = vmatprep.subr.mxu0 0.0
  %48 = vmatpush1.msra.mxu0 0.0
  %49 = vmatprep.subr.mxu0 0.0
  %50 = vmatpush1.msra.mxu0 0.0
  %51 = vmatprep.subr.mxu0 0.0
  %52 = vmatpush1.msra.mxu0 0.0
  %53 = vmatprep.subr.mxu0 0.0
  %54 = vmatpush1.msra.mxu0 0.0
  %55 = vmatprep.subr.mxu0 0.0
  %56 = vmatpush1.msra.mxu0 0.0
  %57 = vmatprep.subr.mxu0 0.0
  %58 = vmatpush1.msra.mxu0 0.0
  %59 = vmatprep.subr.mxu0 0.0
  %60 = vmatpush1.msra.mxu0 0.0
  %61 = vmatprep.subr.mxu0 0.0
  %62 = vmatpush1.msra.mxu0 0.0
  %63 = vmatprep.subr.mxu0 0.0
  %64 = vmatpush1.msra.mxu0 0.0
  %65 = vmatprep.subr.mxu0 0.0
  %66 = vmatpush1.msra.mxu0 0.0
  %67 = vmatprep.subr.mxu0 0.0
  %68 = vmatpush1.msra.mxu0 0.0
  %69 = vmatprep.subr.mxu0 0.0
  %70 = vmatpush1.msra.mxu0 0.0
  %71 = vmatprep.subr.mxu0 0.0
  %72 = vmatpush1.msra.mxu0 0.0
  %73 = vmatprep.subr.mxu0 0.0
  %74 = vmatpush1.msra.mxu0 0.0
  %75 = vmatprep.subr.mxu0 0.0
  %76 = vmatpush1.msra.mxu0 0.0
  %77 = vmatprep.subr.mxu0 0.0
  %78 = vmatpush1.msra.mxu0 0.0
  %79 = vmatprep.subr.mxu0 0.0
  %80 = vmatpush1.msra.mxu0 0.0
  %81 = vmatprep.subr.mxu0 0.0
  %82 = vmatpush1.msra.mxu0 0.0
  %83 = vmatprep.subr.mxu0 0.0
  %84 = vmatpush1.msra.mxu0 0.0
  %85 = vmatprep.subr.mxu0 0.0
  %86 = vmatpush1.msra.mxu0 0.0
  %87 = vmatprep.subr.mxu0 0.0
  %88 = vmatpush1.msra.mxu0 0.0
  %89 = vmatprep.subr.mxu0 0.0
  %90 = vmatpush1.msra.mxu0 0.0
  %91 = vmatprep.subr.mxu0 0.0
  %92 = vmatpush1.msra.mxu0 0.0
  %93 = vmatprep.subr.mxu0 0.0
  %94 = vmatpush1.msra.mxu0 0.0
  %95 = vmatprep.subr.mxu0 0.0
  %96 = vmatpush1.msra.mxu0 0.0
  %97 = vmatprep.subr.mxu0 0.0
  %98 = vmatpush1.msra.mxu0 0.0
  %99 = vmatprep.mubr.f32.mxu0 0.0
  %100 = vmatmul.mubr.f32.gmra.mrb[0].mxu0 %v26
  %v101 = vpop.f32.mrb[0].mxu0
  %v102 = vadd.f32 %v22, %v101
  %v103 = vpop.f32.mrb[0].mxu0
  %104 = vmatprep.mubr.f32.mxu0 0.0
  %105 = vmatmul.mubr.f32.gmra.mrb[0].mxu0 %v29
  %v106 = vpop.f32.mrb[0].mxu0
  %v107 = vadd.f32 %v22, %v106
  %v108 = vpop.f32.mrb[0].mxu0
  %109 = vdwg.mxu0
  %vm110 = vcmask 31744
  %111 = vst.msk [vmem:[%s3] sm:$0xff] %vm110, %v102
  %112 = vst.msk [vmem:[%s3 + $0x8] sm:$0xff] %vm110, %v107
  // Predicated region
  $region14: #{lstm_ae_forward.41} parent=0 // pred_check
    _
  $region15: #{lstm_ae_forward.41} parent=0 // pred_check_branch
    %114 = sbr.rel (0) target = $region17
  $region16: #{lstm_ae_forward.41} parent=0 // pred_region
    _
  $region17: #{lstm_ae_forward.41} parent=0 // pred_fallthru
    _
  // Predicated region
  $region18: #{lstm_ae_forward.41} parent=0 // pred_check
    _
  $region19: #{lstm_ae_forward.41} parent=0 // pred_check_branch
    %116 = sbr.rel (0) target = $region21
  $region20: #{lstm_ae_forward.41} parent=0 // pred_region
    _
  $region21: #{lstm_ae_forward.41} parent=0 // pred_fallthru
    _

</llo_original>
